<compile_context>
chip_gen: v7x
topology: tpu7x:2x2x1
jax: 0.10.0
libtpu: 0.0.40
codegen_flags: <defaults>
</compile_context>

<pallas_src>
import jax
import jax.numpy as jnp
import numpy as np
from jax import lax
from jax.experimental import pallas as pl
from jax.experimental.pallas import tpu as pltpu

_BN_EPS = 1e-5


# ----------------------------- fused Pallas kernel -----------------------------------------

def _basic_block_kernel(p_ref, w00_ref, wa_ref, wb_ref, ba_ref, bf_ref, y_ref, out1p_ref):
    """One grid step = `bp` images.

    p_ref   : (bp, Ho+1, Wo+1, 4*Cin) bf16  polyphase-packed, zero-padded input
    w00_ref : (4*Cin, 2*Cout)         bf16  branch2a tap(0,0) weights | shortcut weights,
                                            BN-scale folded (full-width merged matmul)
    wa_ref  : (3, 4*Cin, Cout)        bf16  branch2a taps (0,1),(1,0),(1,1), BN-scale folded
    wb_ref  : (3, 3, Cout, Cout)      bf16  branch2b weights, BN-scale folded
    ba_ref  : (1, Cout)               f32   branch2a folded BN bias
    bf_ref  : (1, Cout)               f32   branch2b + shortcut folded BN biases (merged)
    y_ref   : (bp, Ho, Wo, Cout)      bf16  output block
    out1p_ref: VMEM (bp, Ho+2, Wo+2, Cout) bf16 scratch: branch2a output with 1-px zero halo
    """
    bp, _, _, c4 = p_ref.shape
    _, ho, wo, cout = y_ref.shape
    m = bp * ho * wo
    wpad = out1p_ref.shape[2]                               # Wo + 2

    # ---- branch2a: 3x3/stride-2 conv expressed as a 2x2/stride-1 conv over the polyphase
    #      packing.  Hoist the W (sublane) shift: one bf16 slab per sx, H shifts are free
    #      major-dim row offsets.  Shortcut (1x1/stride-2) rides along as extra output
    #      columns of the (0,0) tap -> one full-width N=2*Cout matmul.
    slab0 = p_ref[:, :, 0:wo, :]                            # (bp, Ho+1, Wo, 4*Cin) bf16
    slab1 = p_ref[:, :, 1:1 + wo, :]

    win00 = slab0[:, 0:ho].reshape(m, c4)
    r = jnp.dot(win00, w00_ref[...], preferred_element_type=jnp.float32)   # (m, 2*Cout)
    acc1 = r[:, :cout]
    short = r[:, cout:]
    acc1 = acc1 + jnp.dot(slab1[:, 0:ho].reshape(m, c4), wa_ref[0],        # tap (0,1)
                          preferred_element_type=jnp.float32)
    acc1 = acc1 + jnp.dot(slab0[:, 1:1 + ho].reshape(m, c4), wa_ref[1],    # tap (1,0)
                          preferred_element_type=jnp.float32)
    acc1 = acc1 + jnp.dot(slab1[:, 1:1 + ho].reshape(m, c4), wa_ref[2],    # tap (1,1)
                          preferred_element_type=jnp.float32)

    out1 = jnp.maximum(acc1 + ba_ref[...], 0.0).astype(jnp.bfloat16)       # folded bias + relu

    # ---- bf16 halo scratch (kept entirely in VMEM, no HBM round-trip).  Zero only the
    #      1-pixel border; done every step so it is safe under megacore grid sharding.
    out1p_ref[:, 0:1, :, :] = jnp.zeros((bp, 1, wpad, cout), jnp.bfloat16)
    out1p_ref[:, ho + 1:ho + 2, :, :] = jnp.zeros((bp, 1, wpad, cout), jnp.bfloat16)
    out1p_ref[:, :, 0:1, :] = jnp.zeros((bp, ho + 2, 1, cout), jnp.bfloat16)
    out1p_ref[:, :, wo + 1:wpad, :] = jnp.zeros((bp, ho + 2, wpad - wo - 1, cout), jnp.bfloat16)
    out1p_ref[:, 1:1 + ho, 1:1 + wo, :] = out1.reshape(bp, ho, wo, cout)

    # ---- branch2b: 3x3/stride-1 conv as 9 accumulated MXU matmuls.  W shift hoisted to
    #      3 bf16 slabs (already packed for the MXU); residual seeded in `short`.
    acc2 = short
    for dx in range(3):
        slab = out1p_ref[:, :, dx:dx + wo, :]               # (bp, Ho+2, Wo, Cout) bf16
        for dy in range(3):
            win = slab[:, dy:dy + ho].reshape(m, cout)
            acc2 = acc2 + jnp.dot(win, wb_ref[dy, dx],
                                  preferred_element_type=jnp.float32)

    # ---- merged (branch2b + shortcut) bias, final relu, bf16 lane-dense store.
    y = jnp.maximum(acc2 + bf_ref[...], 0.0)
    y_ref[...] = y.reshape(bp, ho, wo, cout).astype(y_ref.dtype)


# ----------------------------- trace-time parameter folding --------------------------------

def _fold_bn(p):
    s = p['gamma'] * lax.rsqrt(p['var'] + _BN_EPS)
    return s, p['beta'] - p['mean'] * s


def prepare_weights(params):
    wa_t = params['branch2a']['w']                 # (Cout, Cin, 3, 3) torch OIHW
    wb_t = params['branch2b']['w']                 # (Cout, Cout, 3, 3)
    ws_t = params['short']['w']                    # (Cout, Cin, 1, 1)
    cout, cin = wa_t.shape[0], wa_t.shape[1]

    sa, ba = _fold_bn(params['branch2a'])
    sb, bb = _fold_bn(params['branch2b'])
    ss, bs = _fold_bn(params['short'])

    # branch2a: repack the 3x3/stride-2 taps as a 2x2/stride-1 conv over the polyphase
    # channel packing [ee, eo, oe, oo]; tap (dy, dx) lands at shift (dy//2, dx//2) and
    # phase 2*(dy%2)+(dx%2).
    wa = jnp.zeros((2, 2, 4 * cin, cout), jnp.float32)
    for dy in range(3):
        for dx in range(3):
            ph = 2 * (dy % 2) + (dx % 2)
            wa = wa.at[dy // 2, dx // 2, ph * cin:(ph + 1) * cin, :].set(wa_t[:, :, dy, dx].T)
    wa = wa * sa[None, None, None, :]

    # shortcut 1x1/stride-2: reads the (odd, odd) phase of the packed input == x[:, ::2, ::2].
    ws = jnp.zeros((4 * cin, cout), jnp.float32)
    ws = ws.at[3 * cin:, :].set(ws_t[:, :, 0, 0].T)
    ws = ws * ss[None, :]

    # Merge shortcut columns into the shift-(0,0) tap -> full-width N=2*Cout matmul.
    w00 = jnp.concatenate([wa[0, 0], ws], axis=1).astype(jnp.bfloat16)          # (4Cin, 2Cout)
    wa_rest = jnp.stack([wa[0, 1], wa[1, 0], wa[1, 1]], axis=0).astype(jnp.bfloat16)

    # branch2b: (3, 3, Cin=Cout, Cout), BN scale folded into the output columns.
    wb = (jnp.transpose(wb_t, (2, 3, 1, 0)) * sb[None, None, None, :]).astype(jnp.bfloat16)

    b_a = ba.reshape(1, cout).astype(jnp.float32)
    b_fin = (bb + bs).reshape(1, cout).astype(jnp.float32)   # branch2b + shortcut biases merged
    return w00, wa_rest, wb, b_a, b_fin


# ----------------------------- forward pass -------------------------------------------------

def basic_block_forward(x_nchw, params, stride=2, images_per_step=None):
    """BasicBlock.forward for variant='b', shortcut=False, act='relu', stride=2 (eval-mode BN).

    Returns NCHW bf16 (downstream block / test casts as needed)."""
    assert stride == 2, "this fused kernel implements the stride-2 downsample configuration"
    n, cin, h, w = x_nchw.shape
    assert h % 2 == 0 and w % 2 == 0
    cout = params['branch2a']['w'].shape[0]
    ho, wo = h // 2, w // 2
    hq, wq, c4 = ho + 1, wo + 1, 4 * cin

    # Images per grid step: flattens into the matmul M dim.  Default keeps >=2 grid steps so
    # ("parallel",) still shards across both v7x TensorCores; raise it for bigger batches
    # (cap lower on v7x: 64 MiB physical VMEM vs 128 MiB on v5e/v6e).
    if images_per_step is None:
        images_per_step = max(1, n // 2)
    bp = images_per_step
    assert n % bp == 0
    grid = (n // bp,)

    # bf16 BEFORE the pad + polyphase repack (halves wrapper-side HBM traffic).  This single
    # space-to-depth repack provides both the stride-2 conv windows and the shortcut
    # downsample (no separate x[:, ::2, ::2] copy).
    x = jnp.transpose(x_nchw, (0, 2, 3, 1)).astype(jnp.bfloat16)        # NCHW -> NHWC
    xp = jnp.pad(x, ((0, 0), (1, 1), (1, 1), (0, 0)))
    p = jnp.concatenate([xp[:, 0::2, 0::2, :], xp[:, 0::2, 1::2, :],
                         xp[:, 1::2, 0::2, :], xp[:, 1::2, 1::2, :]],
                        axis=-1)                                        # (N, Ho+1, Wo+1, 4*Cin)

    w00, wa_rest, wb, b_a, b_fin = prepare_weights(params)

    y = pl.pallas_call(
        _basic_block_kernel,
        out_shape=jax.ShapeDtypeStruct((n, ho, wo, cout), jnp.bfloat16),
        grid=grid,
        in_specs=[
            pl.BlockSpec((bp, hq, wq, c4), lambda b: (b, 0, 0, 0)),     # packed input
            pl.BlockSpec((c4, 2 * cout), lambda b: (0, 0)),             # merged tap(0,0)+shortcut
            pl.BlockSpec((3, c4, cout), lambda b: (0, 0, 0)),           # branch2a remaining taps
            pl.BlockSpec((3, 3, cout, cout), lambda b: (0, 0, 0, 0)),   # branch2b weights
            pl.BlockSpec((1, cout), lambda b: (0, 0)),                  # branch2a bias
            pl.BlockSpec((1, cout), lambda b: (0, 0)),                  # merged final bias
        ],
        out_specs=pl.BlockSpec((bp, ho, wo, cout), lambda b: (b, 0, 0, 0)),
        scratch_shapes=[pltpu.VMEM((bp, ho + 2, wo + 2, cout), jnp.bfloat16)],
        compiler_params=pltpu.CompilerParams(dimension_semantics=("parallel",)),
    )(p, w00, wa_rest, wb, b_a, b_fin)

    return jnp.transpose(y, (0, 3, 1, 2))                               # NHWC -> NCHW (bf16)


# ----------------------------- synthetic parameters -----------------------------------------

def make_params(key, ch_in, ch_out):
    def bn(k, c):
        ks = jax.random.split(k, 4)
        return dict(gamma=1.0 + 0.1 * jax.random.normal(ks[0], (c,), jnp.float32),
                    beta=0.1 * jax.random.normal(ks[1], (c,), jnp.float32),
                    mean=0.1 * jax.random.normal(ks[2], (c,), jnp.float32),
                    var=jnp.abs(jax.random.normal(ks[3], (c,), jnp.float32)) + 0.5)

    ks = jax.random.split(key, 6)
    return {
        'branch2a': dict(w=0.05 * jax.random.normal(ks[0], (ch_out, ch_in, 3, 3), jnp.float32),
                         **bn(ks[1], ch_out)),
        'branch2b': dict(w=0.05 * jax.random.normal(ks[2], (ch_out, ch_out, 3, 3), jnp.float32),
                         **bn(ks[3], ch_out)),
        'short':    dict(w=0.05 * jax.random.normal(ks[4], (ch_out, ch_in, 1, 1), jnp.float32),
                         **bn(ks[5], ch_out)),
    }


# ----------------------------- independent f32 reference ------------------------------------

def reference_forward(x_nchw, params, stride=2):
    x = jnp.transpose(x_nchw, (0, 2, 3, 1)).astype(jnp.float32)

    def conv_norm(xin, p, s, pad, act):
        w = jnp.transpose(p['w'], (2, 3, 1, 0))                        # OIHW -> HWIO
        y = lax.conv_general_dilated(xin, w, (s, s), ((pad, pad), (pad, pad)),
                                     dimension_numbers=('NHWC', 'HWIO', 'NHWC'),
                                     precision=lax.Precision.HIGHEST)
        sc = p['gamma'] * lax.rsqrt(p['var'] + _BN_EPS)
        y = y * sc + (p['beta'] - p['mean'] * sc)
        return jnp.maximum(y, 0.0) if act else y

    out = conv_norm(x, params['branch2a'], stride, 1, True)
    out = conv_norm(out, params['branch2b'], 1, 1, False)
    short = conv_norm(x, params['short'], stride, 0, False)
    y = jnp.maximum(out + short, 0.0)
    return jnp.transpose(y, (0, 3, 1, 2))


# ----------------------------- main ----------------------------------------------------------

if __name__ == "__main__":
    key = jax.random.PRNGKey(0)
    kx, kp = jax.random.split(key)

    # Lane-dense sizing: Cin=64 (packed -> 256 lanes), Cout=128.
    batch, ch_in, ch_out, spatial, stride = 2, 64, 128, 16, 2
    x = jax.random.normal(kx, (batch, ch_in, spatial, spatial), jnp.float32)   # NCHW input
    params = make_params(kp, ch_in, ch_out)

    out = jax.block_until_ready(basic_block_forward(x, params, stride=stride))
    expected_shape = (batch, ch_out, spatial // stride, spatial // stride)
    assert out.shape == expected_shape, (out.shape, expected_shape)

    ref = jax.block_until_ready(reference_forward(x, params, stride=stride))
    # Kernel uses bf16 operands/activations with f32 MXU accumulation; reference is full f32.
    np.testing.assert_allclose(np.asarray(out.astype(jnp.float32)), np.asarray(ref),
                               rtol=5e-2, atol=5e-2)

    print("KERNEL_OK")
</pallas_src>

<mosaic_0001>
module attributes {stable_mosaic.version = 11 : i64} {
  func.func @_basic_block_kernel(%arg0: i32, %arg1: memref<1x9x9x256xbf16, #tpu.memory_space<vmem>>, %arg2: memref<256x256xbf16, #tpu.memory_space<vmem>>, %arg3: memref<3x256x128xbf16, #tpu.memory_space<vmem>>, %arg4: memref<3x3x128x128xbf16, #tpu.memory_space<vmem>>, %arg5: memref<1x128xf32, #tpu.memory_space<vmem>>, %arg6: memref<1x128xf32, #tpu.memory_space<vmem>>, %arg7: memref<1x8x8x128xbf16, #tpu.memory_space<vmem>>, %arg8: memref<1x10x10x128xbf16, #tpu.memory_space<vmem>>) attributes {dimension_semantics = [#tpu.dimension_semantics<parallel>], iteration_bounds = array<i64: 2>, scalar_prefetch = 0 : i64, scratch_operands = 1 : i64, tpu.core_type = #tpu.core_type<tc>, window_params = [{transform_indices = @transform_0, window_bounds = array<i64: 1, 9, 9, 256>}, {pipeline_mode = #tpu.pipeline_mode<synchronous>, transform_indices = @transform_1, window_bounds = array<i64: 256, 256>}, {pipeline_mode = #tpu.pipeline_mode<synchronous>, transform_indices = @transform_2, window_bounds = array<i64: 3, 256, 128>}, {pipeline_mode = #tpu.pipeline_mode<synchronous>, transform_indices = @transform_3, window_bounds = array<i64: 3, 3, 128, 128>}, {pipeline_mode = #tpu.pipeline_mode<synchronous>, transform_indices = @transform_4, window_bounds = array<i64: 1, 128>}, {pipeline_mode = #tpu.pipeline_mode<synchronous>, transform_indices = @transform_5, window_bounds = array<i64: 1, 128>}, {transform_indices = @transform_6, window_bounds = array<i64: 1, 8, 8, 128>}]} {
    %c0 = arith.constant 0 : index
    %c0_0 = arith.constant 0 : index
    %c0_1 = arith.constant 0 : index
    %c0_2 = arith.constant 0 : index
    %0 = vector.load %arg1[%c0, %c0_0, %c0_1, %c0_2] : memref<1x9x9x256xbf16, #tpu.memory_space<vmem>>, vector<1x9x8x256xbf16>
    %c0_3 = arith.constant 0 : index
    %c0_4 = arith.constant 0 : index
    %c1 = arith.constant 1 : index
    %c0_5 = arith.constant 0 : index
    %1 = vector.load %arg1[%c0_3, %c0_4, %c1, %c0_5] : memref<1x9x9x256xbf16, #tpu.memory_space<vmem>>, vector<1x9x8x256xbf16>
    %2 = vector.extract_strided_slice %0 {offsets = [0, 0, 0, 0], sizes = [1, 8, 8, 256], strides = [1, 1, 1, 1]} : vector<1x9x8x256xbf16> to vector<1x8x8x256xbf16>
    %3 = vector.shape_cast %2 : vector<1x8x8x256xbf16> to vector<64x256xbf16>
    %c0_6 = arith.constant 0 : index
    %c0_7 = arith.constant 0 : index
    %4 = vector.load %arg2[%c0_6, %c0_7] : memref<256x256xbf16, #tpu.memory_space<vmem>>, vector<256x256xbf16>
    %cst = arith.constant dense<0.000000e+00> : vector<64x256xf32>
    %5 = tpu.matmul %3, %4, %cst {dimension_numbers = #tpu.dot_dimension_numbers<[1], [0], [0], [1], [0, 0, 1, 1], [], []>} : vector<64x256xbf16>, vector<256x256xbf16>, vector<64x256xf32> -> vector<64x256xf32>
    %6 = vector.extract_strided_slice %5 {offsets = [0, 0], sizes = [64, 128], strides = [1, 1]} : vector<64x256xf32> to vector<64x128xf32>
    %7 = vector.extract_strided_slice %5 {offsets = [0, 128], sizes = [64, 128], strides = [1, 1]} : vector<64x256xf32> to vector<64x128xf32>
    %8 = vector.extract_strided_slice %1 {offsets = [0, 0, 0, 0], sizes = [1, 8, 8, 256], strides = [1, 1, 1, 1]} : vector<1x9x8x256xbf16> to vector<1x8x8x256xbf16>
    %9 = vector.shape_cast %8 : vector<1x8x8x256xbf16> to vector<64x256xbf16>
    %c0_8 = arith.constant 0 : index
    %c0_9 = arith.constant 0 : index
    %c0_10 = arith.constant 0 : index
    %10 = vector.load %arg3[%c0_8, %c0_9, %c0_10] : memref<3x256x128xbf16, #tpu.memory_space<vmem>>, vector<1x256x128xbf16>
    %11 = vector.shape_cast %10 : vector<1x256x128xbf16> to vector<256x128xbf16>
    %cst_11 = arith.constant dense<0.000000e+00> : vector<64x128xf32>
    %12 = tpu.matmul %9, %11, %cst_11 {dimension_numbers = #tpu.dot_dimension_numbers<[1], [0], [0], [1], [0, 0, 1, 1], [], []>} : vector<64x256xbf16>, vector<256x128xbf16>, vector<64x128xf32> -> vector<64x128xf32>
    %13 = arith.addf %6, %12 : vector<64x128xf32>
    %14 = vector.extract_strided_slice %0 {offsets = [0, 1, 0, 0], sizes = [1, 8, 8, 256], strides = [1, 1, 1, 1]} : vector<1x9x8x256xbf16> to vector<1x8x8x256xbf16>
    %15 = vector.shape_cast %14 : vector<1x8x8x256xbf16> to vector<64x256xbf16>
    %c1_12 = arith.constant 1 : index
    %c0_13 = arith.constant 0 : index
    %c0_14 = arith.constant 0 : index
    %16 = vector.load %arg3[%c1_12, %c0_13, %c0_14] : memref<3x256x128xbf16, #tpu.memory_space<vmem>>, vector<1x256x128xbf16>
    %17 = vector.shape_cast %16 : vector<1x256x128xbf16> to vector<256x128xbf16>
    %cst_15 = arith.constant dense<0.000000e+00> : vector<64x128xf32>
    %18 = tpu.matmul %15, %17, %cst_15 {dimension_numbers = #tpu.dot_dimension_numbers<[1], [0], [0], [1], [0, 0, 1, 1], [], []>} : vector<64x256xbf16>, vector<256x128xbf16>, vector<64x128xf32> -> vector<64x128xf32>
    %19 = arith.addf %13, %18 : vector<64x128xf32>
    %20 = vector.extract_strided_slice %1 {offsets = [0, 1, 0, 0], sizes = [1, 8, 8, 256], strides = [1, 1, 1, 1]} : vector<1x9x8x256xbf16> to vector<1x8x8x256xbf16>
    %21 = vector.shape_cast %20 : vector<1x8x8x256xbf16> to vector<64x256xbf16>
    %c2 = arith.constant 2 : index
    %c0_16 = arith.constant 0 : index
    %c0_17 = arith.constant 0 : index
    %22 = vector.load %arg3[%c2, %c0_16, %c0_17] : memref<3x256x128xbf16, #tpu.memory_space<vmem>>, vector<1x256x128xbf16>
    %23 = vector.shape_cast %22 : vector<1x256x128xbf16> to vector<256x128xbf16>
    %cst_18 = arith.constant dense<0.000000e+00> : vector<64x128xf32>
    %24 = tpu.matmul %21, %23, %cst_18 {dimension_numbers = #tpu.dot_dimension_numbers<[1], [0], [0], [1], [0, 0, 1, 1], [], []>} : vector<64x256xbf16>, vector<256x128xbf16>, vector<64x128xf32> -> vector<64x128xf32>
    %25 = arith.addf %19, %24 : vector<64x128xf32>
    %c0_19 = arith.constant 0 : index
    %c0_20 = arith.constant 0 : index
    %26 = vector.load %arg5[%c0_19, %c0_20] : memref<1x128xf32, #tpu.memory_space<vmem>>, vector<1x128xf32>
    %27 = vector.broadcast %26 : vector<1x128xf32> to vector<64x128xf32>
    %28 = arith.addf %25, %27 : vector<64x128xf32>
    %cst_21 = arith.constant 0.000000e+00 : f32
    %29 = vector.broadcast %cst_21 : f32 to vector<64x128xf32>
    %30 = arith.maximumf %28, %29 : vector<64x128xf32>
    %31 = arith.truncf %30 : vector<64x128xf32> to vector<64x128xbf16>
    %cst_22 = arith.constant 0.000000e+00 : bf16
    %32 = vector.broadcast %cst_22 : bf16 to vector<1x1x10x128xbf16>
    %c0_23 = arith.constant 0 : index
    %c0_24 = arith.constant 0 : index
    %c0_25 = arith.constant 0 : index
    %c0_26 = arith.constant 0 : index
    %33 = vector.load %arg8[%c0_23, %c0_24, %c0_25, %c0_26] : memref<1x10x10x128xbf16, #tpu.memory_space<vmem>>, vector<1x1x10x128xbf16>
    tpu.vector_store %arg8[%c0_23, %c0_24, %c0_25, %c0_26], %32 {strides = array<i32>} : memref<1x10x10x128xbf16, #tpu.memory_space<vmem>>, vector<1x1x10x128xbf16>,
    %cst_27 = arith.constant 0.000000e+00 : bf16
    %34 = vector.broadcast %cst_27 : bf16 to vector<1x1x10x128xbf16>
    %c0_28 = arith.constant 0 : index
    %c9 = arith.constant 9 : index
    %c0_29 = arith.constant 0 : index
    %c0_30 = arith.constant 0 : index
    %35 = vector.load %arg8[%c0_28, %c9, %c0_29, %c0_30] : memref<1x10x10x128xbf16, #tpu.memory_space<vmem>>, vector<1x1x10x128xbf16>
    tpu.vector_store %arg8[%c0_28, %c9, %c0_29, %c0_30], %34 {strides = array<i32>} : memref<1x10x10x128xbf16, #tpu.memory_space<vmem>>, vector<1x1x10x128xbf16>,
    %cst_31 = arith.constant 0.000000e+00 : bf16
    %36 = vector.broadcast %cst_31 : bf16 to vector<1x10x1x128xbf16>
    %c0_32 = arith.constant 0 : index
    %c0_33 = arith.constant 0 : index
    %c0_34 = arith.constant 0 : index
    %c0_35 = arith.constant 0 : index
    %37 = vector.load %arg8[%c0_32, %c0_33, %c0_34, %c0_35] : memref<1x10x10x128xbf16, #tpu.memory_space<vmem>>, vector<1x10x1x128xbf16>
    tpu.vector_store %arg8[%c0_32, %c0_33, %c0_34, %c0_35], %36 {strides = array<i32>} : memref<1x10x10x128xbf16, #tpu.memory_space<vmem>>, vector<1x10x1x128xbf16>,
    %cst_36 = arith.constant 0.000000e+00 : bf16
    %38 = vector.broadcast %cst_36 : bf16 to vector<1x10x1x128xbf16>
    %c0_37 = arith.constant 0 : index
    %c0_38 = arith.constant 0 : index
    %c9_39 = arith.constant 9 : index
    %c0_40 = arith.constant 0 : index
    %39 = vector.load %arg8[%c0_37, %c0_38, %c9_39, %c0_40] : memref<1x10x10x128xbf16, #tpu.memory_space<vmem>>, vector<1x10x1x128xbf16>
    tpu.vector_store %arg8[%c0_37, %c0_38, %c9_39, %c0_40], %38 {strides = array<i32>} : memref<1x10x10x128xbf16, #tpu.memory_space<vmem>>, vector<1x10x1x128xbf16>,
    %40 = vector.shape_cast %31 : vector<64x128xbf16> to vector<1x8x8x128xbf16>
    %c0_41 = arith.constant 0 : index
    %c1_42 = arith.constant 1 : index
    %c1_43 = arith.constant 1 : index
    %c0_44 = arith.constant 0 : index
    %41 = vector.load %arg8[%c0_41, %c1_42, %c1_43, %c0_44] : memref<1x10x10x128xbf16, #tpu.memory_space<vmem>>, vector<1x8x8x128xbf16>
    tpu.vector_store %arg8[%c0_41, %c1_42, %c1_43, %c0_44], %40 {strides = array<i32>} : memref<1x10x10x128xbf16, #tpu.memory_space<vmem>>, vector<1x8x8x128xbf16>,
    %c0_45 = arith.constant 0 : index
    %c0_46 = arith.constant 0 : index
    %c0_47 = arith.constant 0 : index
    %c0_48 = arith.constant 0 : index
    %42 = vector.load %arg8[%c0_45, %c0_46, %c0_47, %c0_48] : memref<1x10x10x128xbf16, #tpu.memory_space<vmem>>, vector<1x10x8x128xbf16>
    %43 = vector.extract_strided_slice %42 {offsets = [0, 0, 0, 0], sizes = [1, 8, 8, 128], strides = [1, 1, 1, 1]} : vector<1x10x8x128xbf16> to vector<1x8x8x128xbf16>
    %44 = vector.shape_cast %43 : vector<1x8x8x128xbf16> to vector<64x128xbf16>
    %c0_49 = arith.constant 0 : index
    %c0_50 = arith.constant 0 : index
    %c0_51 = arith.constant 0 : index
    %c0_52 = arith.constant 0 : index
    %45 = vector.load %arg4[%c0_49, %c0_50, %c0_51, %c0_52] : memref<3x3x128x128xbf16, #tpu.memory_space<vmem>>, vector<1x1x128x128xbf16>
    %46 = vector.shape_cast %45 : vector<1x1x128x128xbf16> to vector<128x128xbf16>
    %cst_53 = arith.constant dense<0.000000e+00> : vector<64x128xf32>
    %47 = tpu.matmul %44, %46, %cst_53 {dimension_numbers = #tpu.dot_dimension_numbers<[1], [0], [0], [1], [0, 0, 1, 1], [], []>} : vector<64x128xbf16>, vector<128x128xbf16>, vector<64x128xf32> -> vector<64x128xf32>
    %48 = arith.addf %7, %47 : vector<64x128xf32>
    %49 = vector.extract_strided_slice %42 {offsets = [0, 1, 0, 0], sizes = [1, 8, 8, 128], strides = [1, 1, 1, 1]} : vector<1x10x8x128xbf16> to vector<1x8x8x128xbf16>
    %50 = vector.shape_cast %49 : vector<1x8x8x128xbf16> to vector<64x128xbf16>
    %c1_54 = arith.constant 1 : index
    %c0_55 = arith.constant 0 : index
    %c0_56 = arith.constant 0 : index
    %c0_57 = arith.constant 0 : index
    %51 = vector.load %arg4[%c1_54, %c0_55, %c0_56, %c0_57] : memref<3x3x128x128xbf16, #tpu.memory_space<vmem>>, vector<1x1x128x128xbf16>
    %52 = vector.shape_cast %51 : vector<1x1x128x128xbf16> to vector<128x128xbf16>
    %cst_58 = arith.constant dense<0.000000e+00> : vector<64x128xf32>
    %53 = tpu.matmul %50, %52, %cst_58 {dimension_numbers = #tpu.dot_dimension_numbers<[1], [0], [0], [1], [0, 0, 1, 1], [], []>} : vector<64x128xbf16>, vector<128x128xbf16>, vector<64x128xf32> -> vector<64x128xf32>
    %54 = arith.addf %48, %53 : vector<64x128xf32>
    %55 = vector.extract_strided_slice %42 {offsets = [0, 2, 0, 0], sizes = [1, 8, 8, 128], strides = [1, 1, 1, 1]} : vector<1x10x8x128xbf16> to vector<1x8x8x128xbf16>
    %56 = vector.shape_cast %55 : vector<1x8x8x128xbf16> to vector<64x128xbf16>
    %c2_59 = arith.constant 2 : index
    %c0_60 = arith.constant 0 : index
    %c0_61 = arith.constant 0 : index
    %c0_62 = arith.constant 0 : index
    %57 = vector.load %arg4[%c2_59, %c0_60, %c0_61, %c0_62] : memref<3x3x128x128xbf16, #tpu.memory_space<vmem>>, vector<1x1x128x128xbf16>
    %58 = vector.shape_cast %57 : vector<1x1x128x128xbf16> to vector<128x128xbf16>
    %cst_63 = arith.constant dense<0.000000e+00> : vector<64x128xf32>
    %59 = tpu.matmul %56, %58, %cst_63 {dimension_numbers = #tpu.dot_dimension_numbers<[1], [0], [0], [1], [0, 0, 1, 1], [], []>} : vector<64x128xbf16>, vector<128x128xbf16>, vector<64x128xf32> -> vector<64x128xf32>
    %60 = arith.addf %54, %59 : vector<64x128xf32>
    %c0_64 = arith.constant 0 : index
    %c0_65 = arith.constant 0 : index
    %c1_66 = arith.constant 1 : index
    %c0_67 = arith.constant 0 : index
    %61 = vector.load %arg8[%c0_64, %c0_65, %c1_66, %c0_67] : memref<1x10x10x128xbf16, #tpu.memory_space<vmem>>, vector<1x10x8x128xbf16>
    %62 = vector.extract_strided_slice %61 {offsets = [0, 0, 0, 0], sizes = [1, 8, 8, 128], strides = [1, 1, 1, 1]} : vector<1x10x8x128xbf16> to vector<1x8x8x128xbf16>
    %63 = vector.shape_cast %62 : vector<1x8x8x128xbf16> to vector<64x128xbf16>
    %c0_68 = arith.constant 0 : index
    %c1_69 = arith.constant 1 : index
    %c0_70 = arith.constant 0 : index
    %c0_71 = arith.constant 0 : index
    %64 = vector.load %arg4[%c0_68, %c1_69, %c0_70, %c0_71] : memref<3x3x128x128xbf16, #tpu.memory_space<vmem>>, vector<1x1x128x128xbf16>
    %65 = vector.shape_cast %64 : vector<1x1x128x128xbf16> to vector<128x128xbf16>
    %cst_72 = arith.constant dense<0.000000e+00> : vector<64x128xf32>
    %66 = tpu.matmul %63, %65, %cst_72 {dimension_numbers = #tpu.dot_dimension_numbers<[1], [0], [0], [1], [0, 0, 1, 1], [], []>} : vector<64x128xbf16>, vector<128x128xbf16>, vector<64x128xf32> -> vector<64x128xf32>
    %67 = arith.addf %60, %66 : vector<64x128xf32>
    %68 = vector.extract_strided_slice %61 {offsets = [0, 1, 0, 0], sizes = [1, 8, 8, 128], strides = [1, 1, 1, 1]} : vector<1x10x8x128xbf16> to vector<1x8x8x128xbf16>
    %69 = vector.shape_cast %68 : vector<1x8x8x128xbf16> to vector<64x128xbf16>
    %c1_73 = arith.constant 1 : index
    %c1_74 = arith.constant 1 : index
    %c0_75 = arith.constant 0 : index
    %c0_76 = arith.constant 0 : index
    %70 = vector.load %arg4[%c1_73, %c1_74, %c0_75, %c0_76] : memref<3x3x128x128xbf16, #tpu.memory_space<vmem>>, vector<1x1x128x128xbf16>
    %71 = vector.shape_cast %70 : vector<1x1x128x128xbf16> to vector<128x128xbf16>
    %cst_77 = arith.constant dense<0.000000e+00> : vector<64x128xf32>
    %72 = tpu.matmul %69, %71, %cst_77 {dimension_numbers = #tpu.dot_dimension_numbers<[1], [0], [0], [1], [0, 0, 1, 1], [], []>} : vector<64x128xbf16>, vector<128x128xbf16>, vector<64x128xf32> -> vector<64x128xf32>
    %73 = arith.addf %67, %72 : vector<64x128xf32>
    %74 = vector.extract_strided_slice %61 {offsets = [0, 2, 0, 0], sizes = [1, 8, 8, 128], strides = [1, 1, 1, 1]} : vector<1x10x8x128xbf16> to vector<1x8x8x128xbf16>
    %75 = vector.shape_cast %74 : vector<1x8x8x128xbf16> to vector<64x128xbf16>
    %c2_78 = arith.constant 2 : index
    %c1_79 = arith.constant 1 : index
    %c0_80 = arith.constant 0 : index
    %c0_81 = arith.constant 0 : index
    %76 = vector.load %arg4[%c2_78, %c1_79, %c0_80, %c0_81] : memref<3x3x128x128xbf16, #tpu.memory_space<vmem>>, vector<1x1x128x128xbf16>
    %77 = vector.shape_cast %76 : vector<1x1x128x128xbf16> to vector<128x128xbf16>
    %cst_82 = arith.constant dense<0.000000e+00> : vector<64x128xf32>
    %78 = tpu.matmul %75, %77, %cst_82 {dimension_numbers = #tpu.dot_dimension_numbers<[1], [0], [0], [1], [0, 0, 1, 1], [], []>} : vector<64x128xbf16>, vector<128x128xbf16>, vector<64x128xf32> -> vector<64x128xf32>
    %79 = arith.addf %73, %78 : vector<64x128xf32>
    %c0_83 = arith.constant 0 : index
    %c0_84 = arith.constant 0 : index
    %c2_85 = arith.constant 2 : index
    %c0_86 = arith.constant 0 : index
    %80 = vector.load %arg8[%c0_83, %c0_84, %c2_85, %c0_86] : memref<1x10x10x128xbf16, #tpu.memory_space<vmem>>, vector<1x10x8x128xbf16>
    %81 = vector.extract_strided_slice %80 {offsets = [0, 0, 0, 0], sizes = [1, 8, 8, 128], strides = [1, 1, 1, 1]} : vector<1x10x8x128xbf16> to vector<1x8x8x128xbf16>
    %82 = vector.shape_cast %81 : vector<1x8x8x128xbf16> to vector<64x128xbf16>
    %c0_87 = arith.constant 0 : index
    %c2_88 = arith.constant 2 : index
    %c0_89 = arith.constant 0 : index
    %c0_90 = arith.constant 0 : index
    %83 = vector.load %arg4[%c0_87, %c2_88, %c0_89, %c0_90] : memref<3x3x128x128xbf16, #tpu.memory_space<vmem>>, vector<1x1x128x128xbf16>
    %84 = vector.shape_cast %83 : vector<1x1x128x128xbf16> to vector<128x128xbf16>
    %cst_91 = arith.constant dense<0.000000e+00> : vector<64x128xf32>
    %85 = tpu.matmul %82, %84, %cst_91 {dimension_numbers = #tpu.dot_dimension_numbers<[1], [0], [0], [1], [0, 0, 1, 1], [], []>} : vector<64x128xbf16>, vector<128x128xbf16>, vector<64x128xf32> -> vector<64x128xf32>
    %86 = arith.addf %79, %85 : vector<64x128xf32>
    %87 = vector.extract_strided_slice %80 {offsets = [0, 1, 0, 0], sizes = [1, 8, 8, 128], strides = [1, 1, 1, 1]} : vector<1x10x8x128xbf16> to vector<1x8x8x128xbf16>
    %88 = vector.shape_cast %87 : vector<1x8x8x128xbf16> to vector<64x128xbf16>
    %c1_92 = arith.constant 1 : index
    %c2_93 = arith.constant 2 : index
    %c0_94 = arith.constant 0 : index
    %c0_95 = arith.constant 0 : index
    %89 = vector.load %arg4[%c1_92, %c2_93, %c0_94, %c0_95] : memref<3x3x128x128xbf16, #tpu.memory_space<vmem>>, vector<1x1x128x128xbf16>
    %90 = vector.shape_cast %89 : vector<1x1x128x128xbf16> to vector<128x128xbf16>
    %cst_96 = arith.constant dense<0.000000e+00> : vector<64x128xf32>
    %91 = tpu.matmul %88, %90, %cst_96 {dimension_numbers = #tpu.dot_dimension_numbers<[1], [0], [0], [1], [0, 0, 1, 1], [], []>} : vector<64x128xbf16>, vector<128x128xbf16>, vector<64x128xf32> -> vector<64x128xf32>
    %92 = arith.addf %86, %91 : vector<64x128xf32>
    %93 = vector.extract_strided_slice %80 {offsets = [0, 2, 0, 0], sizes = [1, 8, 8, 128], strides = [1, 1, 1, 1]} : vector<1x10x8x128xbf16> to vector<1x8x8x128xbf16>
    %94 = vector.shape_cast %93 : vector<1x8x8x128xbf16> to vector<64x128xbf16>
    %c2_97 = arith.constant 2 : index
    %c2_98 = arith.constant 2 : index
    %c0_99 = arith.constant 0 : index
    %c0_100 = arith.constant 0 : index
    %95 = vector.load %arg4[%c2_97, %c2_98, %c0_99, %c0_100] : memref<3x3x128x128xbf16, #tpu.memory_space<vmem>>, vector<1x1x128x128xbf16>
    %96 = vector.shape_cast %95 : vector<1x1x128x128xbf16> to vector<128x128xbf16>
    %cst_101 = arith.constant dense<0.000000e+00> : vector<64x128xf32>
    %97 = tpu.matmul %94, %96, %cst_101 {dimension_numbers = #tpu.dot_dimension_numbers<[1], [0], [0], [1], [0, 0, 1, 1], [], []>} : vector<64x128xbf16>, vector<128x128xbf16>, vector<64x128xf32> -> vector<64x128xf32>
    %98 = arith.addf %92, %97 : vector<64x128xf32>
    %c0_102 = arith.constant 0 : index
    %c0_103 = arith.constant 0 : index
    %99 = vector.load %arg6[%c0_102, %c0_103] : memref<1x128xf32, #tpu.memory_space<vmem>>, vector<1x128xf32>
    %100 = vector.broadcast %99 : vector<1x128xf32> to vector<64x128xf32>
    %101 = arith.addf %98, %100 : vector<64x128xf32>
    %cst_104 = arith.constant 0.000000e+00 : f32
    %102 = vector.broadcast %cst_104 : f32 to vector<64x128xf32>
    %103 = arith.maximumf %101, %102 : vector<64x128xf32>
    %104 = vector.shape_cast %103 : vector<64x128xf32> to vector<1x8x8x128xf32>
    %105 = arith.truncf %104 : vector<1x8x8x128xf32> to vector<1x8x8x128xbf16>
    %c0_105 = arith.constant 0 : index
    %c0_106 = arith.constant 0 : index
    %c0_107 = arith.constant 0 : index
    %c0_108 = arith.constant 0 : index
    %106 = vector.load %arg7[%c0_105, %c0_106, %c0_107, %c0_108] : memref<1x8x8x128xbf16, #tpu.memory_space<vmem>>, vector<1x8x8x128xbf16>
    tpu.vector_store %arg7[%c0_105, %c0_106, %c0_107, %c0_108], %105 {strides = array<i32>} : memref<1x8x8x128xbf16, #tpu.memory_space<vmem>>, vector<1x8x8x128xbf16>,
    return
  }
  func.func @transform_0(%arg0: i32) -> (i32, i32, i32, i32) {
    %c0_i32 = arith.constant 0 : i32
    %c0_i32_0 = arith.constant 0 : i32
    %c0_i32_1 = arith.constant 0 : i32
    %c0_i32_2 = arith.constant 0 : i32
    return %arg0, %c0_i32, %c0_i32_0, %c0_i32_1 : i32, i32, i32, i32
  }
  func.func @transform_1(%arg0: i32) -> (i32, i32) {
    %c0_i32 = arith.constant 0 : i32
    %c0_i32_0 = arith.constant 0 : i32
    %c0_i32_1 = arith.constant 0 : i32
    return %c0_i32, %c0_i32_0 : i32, i32
  }
  func.func @transform_2(%arg0: i32) -> (i32, i32, i32) {
    %c0_i32 = arith.constant 0 : i32
    %c0_i32_0 = arith.constant 0 : i32
    %c0_i32_1 = arith.constant 0 : i32
    %c0_i32_2 = arith.constant 0 : i32
    return %c0_i32, %c0_i32_0, %c0_i32_1 : i32, i32, i32
  }
  func.func @transform_3(%arg0: i32) -> (i32, i32, i32, i32) {
    %c0_i32 = arith.constant 0 : i32
    %c0_i32_0 = arith.constant 0 : i32
    %c0_i32_1 = arith.constant 0 : i32
    %c0_i32_2 = arith.constant 0 : i32
    %c0_i32_3 = arith.constant 0 : i32
    return %c0_i32, %c0_i32_0, %c0_i32_1, %c0_i32_2 : i32, i32, i32, i32
  }
  func.func @transform_4(%arg0: i32) -> (i32, i32) {
    %c0_i32 = arith.constant 0 : i32
    %c0_i32_0 = arith.constant 0 : i32
    %c0_i32_1 = arith.constant 0 : i32
    return %c0_i32, %c0_i32_0 : i32, i32
  }
  func.func @transform_5(%arg0: i32) -> (i32, i32) {
    %c0_i32 = arith.constant 0 : i32
    %c0_i32_0 = arith.constant 0 : i32
    %c0_i32_1 = arith.constant 0 : i32
    return %c0_i32, %c0_i32_0 : i32, i32
  }
  func.func @transform_6(%arg0: i32) -> (i32, i32, i32, i32) {
    %c0_i32 = arith.constant 0 : i32
    %c0_i32_0 = arith.constant 0 : i32
    %c0_i32_1 = arith.constant 0 : i32
    %c0_i32_2 = arith.constant 0 : i32
    return %arg0, %c0_i32, %c0_i32_0, %c0_i32_1 : i32, i32, i32, i32
  }
}

</mosaic_0001>

<llo_original>
// kernel: tpu_custom_call.1
$region0: #{tpu_custom_call.1}
  #allocation0 [shape = 'u32[]', space=smem, size = 0x4, offset = 0x4, fixed_abs, tag = 'smem constant byte address 0x4 - core index']
  #allocation1 [shape = 'u32[144,128]{1,0:T(1,128)}', space=vmem, size = 0x12000, scoped, tag = 'internal scratch']
  #allocation2 [shape = 'bf16[1,10,10,128]{3,2,1,0:T(8,128)(2,1)}', space=vmem, size = 0xa000, scoped, tag = 'scratch operand']
  %s0 = inlined_call_operand.vmem [shape: bf16[2,9,9,256], index: 0, kind: input, shape index: {}]
  %s1 = inlined_call_operand.hbm [shape: bf16[256,256], index: 1, kind: input, shape index: {}]
  %s2 = inlined_call_operand.vmem [shape: bf16[3,256,128], index: 2, kind: input, shape index: {}]
  %s3 = inlined_call_operand.hbm [shape: bf16[3,3,128,128], index: 3, kind: input, shape index: {}]
  %s4 = inlined_call_operand.vmem [shape: f32[1,128], index: 4, kind: input, shape index: {}]
  %s5 = inlined_call_operand.vmem [shape: f32[1,128], index: 5, kind: input, shape index: {}]
  %s6 = inlined_call_operand.hbm [shape: bf16[2,8,8,128], index: 6, kind: output, shape index: {}]
  %s7 = sld [smem:[#allocation0]]
  $region65: #{tpu_custom_call.1} parent=0
    _
  %s9 = ssub.s32 1, %s7
  %s10 = scalar_select 0, %s9, %s7
  $region1: #{tpu_custom_call.1} parent=0
    #allocation3 [shape = 'u8[131072]{0}', space=vmem, size = 0x20000, scoped, tag = 'input window, operand 1, single buffered']
    #allocation4 [shape = 's32[2]{0}', space=sflag, size = 0x8, scoped, tag = 'scoped memory for tpu_custom_call.1']
    #allocation5 [shape = 's32[2]{0}', space=sflag, size = 0x8, scoped, tag = 'scoped memory for tpu_custom_call.1']
    #allocation6 [shape = 'u8[294912]{0}', space=vmem, size = 0x48000, scoped, tag = 'input window, operand 3, single buffered']
    #allocation7 [shape = 's32[1]{0}', space=sflag, size = 0x4, scoped, tag = 'scoped memory for tpu_custom_call.1']
    #allocation8 [shape = 'u8[32768]{0}', space=vmem, size = 0x8000, scoped, tag = 'output window, operand 0']
    %11 = vsyncpa [#allocation4], 0
    %12 = vsyncpa [#allocation7], 0
    %13 = vsyncpa [#allocation5], 0
    %s14 = scalar_lea.sflag [#allocation5], 1
    %15 = vsyncpa %s14, 0
    loop: start=0, step=1, limit=4
    $region2: #{tpu_custom_call.1} parent=1 // loop_pre_header
      _
    $region3: #{tpu_custom_call.1} parent=1 // loop_header
      %s17 = sphi 0, %s21
      %p18 = scmp.ge.s32.totalorder %s17, 4
      %s27 = sphi 0, %s29
      %s30 = sphi 0, %s27
      %s31 = sphi 0, %s30
      %s47 = sphi 0, %s31
      %s51 = sphi 0, %s51
      %s53 = sphi 0, %s51
      %s54 = sphi 0, %s53
      %s68 = sphi 0, %s54
      %s72 = sphi 0, %s72
      %s74 = sphi 0, %s72
      %s75 = sphi 0, %s74
      %s89 = sphi 0, %s75
      %s93 = sphi 0, %s93
      %s95 = sphi 0, %s93
      %s96 = sphi 0, %s95
      %s110 = sphi 0, %s96
      %s114 = sphi 0, %s114
      %s116 = sphi 0, %s114
      %s117 = sphi 0, %s116
      %s131 = sphi 0, %s117
      %s135 = sphi 0, %s135
      %s137 = sphi 0, %s135
      %s138 = sphi 0, %s137
      %s152 = sphi 0, %s138
      %s158 = sphi 0, %s160
      %s161 = sphi 0, %s158
      %s162 = sphi 0, %s161
      %s178 = sphi 0, %s162
    $region4: #{tpu_custom_call.1} parent=1 // loop_header_branch
      %20 = sbr.rel (%p18) target = $region8
    $region5: #{tpu_custom_call.1} parent=1 // loop_body
      %s22 = ssub.s32 %s17, 1
      %s23 = ssub.s32 %s17, 2
      %s24 = sadd.s32 %s17, 1
      %s25 = ssub.s32 %s17, %s24
      %p26 = scmp.eq.s32.totalorder %s25, 0
      %s28 = sadd.s32 %s27, 1
      %s29 = scalar_select %p26, %s27, %s28
      %p32 = pneg %p26
      %p33 = scmp.eq.s32.totalorder %s17, 1
      %p34 = por %p32, %p33
      %p35 = scmp.ne.s32.totalorder %s27, %s30
      %p36 = scmp.eq.s32.totalorder %s17, 0
      %p37 = por %p35, %p36
      %p38 = scmp.ne.s32.totalorder %s27, %s30
      %p39 = scmp.eq.s32.totalorder %s22, 1
      %p40 = por %p38, %p39
      %p41 = scmp.ne.s32.totalorder %s30, %s31
      %p42 = scmp.eq.s32.totalorder %s22, 0
      %p43 = por %p41, %p42
      %p44 = scmp.ne.s32.totalorder %s30, %s31
      %p45 = scmp.eq.s32.totalorder %s23, 1
      %p46 = por %p44, %p45
      %p48 = scmp.ne.s32.totalorder %s31, %s47
      %p49 = scmp.eq.s32.totalorder %s23, 0
      %p50 = por %p48, %p49
      %s52 = sadd.s32 %s51, 1
      %p55 = scmp.eq.s32.totalorder %s17, 1
      %p56 = scmp.ne.s32.totalorder %s51, %s53
      %p57 = scmp.eq.s32.totalorder %s17, 0
      %p58 = por %p56, %p57
      %p59 = scmp.ne.s32.totalorder %s51, %s53
      %p60 = scmp.eq.s32.totalorder %s22, 1
      %p61 = por %p59, %p60
      %p62 = scmp.ne.s32.totalorder %s53, %s54
      %p63 = scmp.eq.s32.totalorder %s22, 0
      %p64 = por %p62, %p63
      %p65 = scmp.ne.s32.totalorder %s53, %s54
      %p66 = scmp.eq.s32.totalorder %s23, 1
      %p67 = por %p65, %p66
      %p69 = scmp.ne.s32.totalorder %s54, %s68
      %p70 = scmp.eq.s32.totalorder %s23, 0
      %p71 = por %p69, %p70
      %s73 = sadd.s32 %s72, 1
      %p76 = scmp.eq.s32.totalorder %s17, 1
      %p77 = scmp.ne.s32.totalorder %s72, %s74
      %p78 = scmp.eq.s32.totalorder %s17, 0
      %p79 = por %p77, %p78
      %p80 = scmp.ne.s32.totalorder %s72, %s74
      %p81 = scmp.eq.s32.totalorder %s22, 1
      %p82 = por %p80, %p81
      %p83 = scmp.ne.s32.totalorder %s74, %s75
      %p84 = scmp.eq.s32.totalorder %s22, 0
      %p85 = por %p83, %p84
      %p86 = scmp.ne.s32.totalorder %s74, %s75
      %p87 = scmp.eq.s32.totalorder %s23, 1
      %p88 = por %p86, %p87
      %p90 = scmp.ne.s32.totalorder %s75, %s89
      %p91 = scmp.eq.s32.totalorder %s23, 0
      %p92 = por %p90, %p91
      %s94 = sadd.s32 %s93, 1
      %p97 = scmp.eq.s32.totalorder %s17, 1
      %p98 = scmp.ne.s32.totalorder %s93, %s95
      %p99 = scmp.eq.s32.totalorder %s17, 0
      %p100 = por %p98, %p99
      %p101 = scmp.ne.s32.totalorder %s93, %s95
      %p102 = scmp.eq.s32.totalorder %s22, 1
      %p103 = por %p101, %p102
      %p104 = scmp.ne.s32.totalorder %s95, %s96
      %p105 = scmp.eq.s32.totalorder %s22, 0
      %p106 = por %p104, %p105
      %p107 = scmp.ne.s32.totalorder %s95, %s96
      %p108 = scmp.eq.s32.totalorder %s23, 1
      %p109 = por %p107, %p108
      %p111 = scmp.ne.s32.totalorder %s96, %s110
      %p112 = scmp.eq.s32.totalorder %s23, 0
      %p113 = por %p111, %p112
      %s115 = sadd.s32 %s114, 1
      %p118 = scmp.eq.s32.totalorder %s17, 1
      %p119 = scmp.ne.s32.totalorder %s114, %s116
      %p120 = scmp.eq.s32.totalorder %s17, 0
      %p121 = por %p119, %p120
      %p122 = scmp.ne.s32.totalorder %s114, %s116
      %p123 = scmp.eq.s32.totalorder %s22, 1
      %p124 = por %p122, %p123
      %p125 = scmp.ne.s32.totalorder %s116, %s117
      %p126 = scmp.eq.s32.totalorder %s22, 0
      %p127 = por %p125, %p126
      %p128 = scmp.ne.s32.totalorder %s116, %s117
      %p129 = scmp.eq.s32.totalorder %s23, 1
      %p130 = por %p128, %p129
      %p132 = scmp.ne.s32.totalorder %s117, %s131
      %p133 = scmp.eq.s32.totalorder %s23, 0
      %p134 = por %p132, %p133
      %s136 = sadd.s32 %s135, 1
      %p139 = scmp.eq.s32.totalorder %s17, 1
      %p140 = scmp.ne.s32.totalorder %s135, %s137
      %p141 = scmp.eq.s32.totalorder %s17, 0
      %p142 = por %p140, %p141
      %p143 = scmp.ne.s32.totalorder %s135, %s137
      %p144 = scmp.eq.s32.totalorder %s22, 1
      %p145 = por %p143, %p144
      %p146 = scmp.ne.s32.totalorder %s137, %s138
      %p147 = scmp.eq.s32.totalorder %s22, 0
      %p148 = por %p146, %p147
      %p149 = scmp.ne.s32.totalorder %s137, %s138
      %p150 = scmp.eq.s32.totalorder %s23, 1
      %p151 = por %p149, %p150
      %p153 = scmp.ne.s32.totalorder %s138, %s152
      %p154 = scmp.eq.s32.totalorder %s23, 0
      %p155 = por %p153, %p154
      %s156 = ssub.s32 %s17, %s24
      %p157 = scmp.eq.s32.totalorder %s156, 0
      %s159 = sadd.s32 %s158, 1
      %s160 = scalar_select %p157, %s158, %s159
      %p163 = pneg %p157
      %p164 = scmp.eq.s32.totalorder %s17, 1
      %p165 = por %p163, %p164
      %p166 = scmp.ne.s32.totalorder %s158, %s161
      %p167 = scmp.eq.s32.totalorder %s17, 0
      %p168 = por %p166, %p167
      %p169 = scmp.ne.s32.totalorder %s158, %s161
      %p170 = scmp.eq.s32.totalorder %s22, 1
      %p171 = por %p169, %p170
      %p172 = scmp.ne.s32.totalorder %s161, %s162
      %p173 = scmp.eq.s32.totalorder %s22, 0
      %p174 = por %p172, %p173
      %p175 = scmp.ne.s32.totalorder %s161, %s162
      %p176 = scmp.eq.s32.totalorder %s23, 1
      %p177 = por %p175, %p176
      %p179 = scmp.ne.s32.totalorder %s162, %s178
      %p180 = scmp.eq.s32.totalorder %s23, 0
      %p181 = por %p179, %p180
      %p182 = scmp.le.s32.totalorder 1, %s17
      %p183 = scmp.lt.s32.totalorder %s17, 3
      %p184 = pnand %p182, %p183
      %p185 = pneg %p184
      // Predicated region
      $region9: #{tpu_custom_call.1} parent=5 // pred_check
        _
      $region10: #{tpu_custom_call.1} parent=5 // pred_check_branch
        %187 = sbr.rel (%p184) target = $region12
      $region11: #{tpu_custom_call.1} parent=5 // pred_region
        %s188 = ssub.s32 %s17, 1
        // Predicated region
        $region13: #{tpu_custom_call.1} parent=11 // pred_check
          %p189 = pneg %p64
        $region14: #{tpu_custom_call.1} parent=11 // pred_check_branch
          %191 = sbr.rel (%p189) target = $region16
        $region15: #{tpu_custom_call.1} parent=11 // pred_region
          %s193 = ssub.s32 4096, 4096
          %194 = vsyncadd [#allocation4], %s193
          %s195 = sshll.u32 [#allocation3], 4
          %s196 = int_to_ptr.vmem [resolvable:$true] %s195
          %201 = dma.hbm_to_vmem [thread:$0]  %s1, 4096, %s196, [#allocation4], 128, 128, 8
        $region16: #{tpu_custom_call.1} parent=11 // pred_fallthru
          _
        // Predicated region
        $region17: #{tpu_custom_call.1} parent=11 // pred_check
          %p202 = pneg %p85
        $region18: #{tpu_custom_call.1} parent=11 // pred_check_branch
          %204 = sbr.rel (%p202) target = $region20
        $region19: #{tpu_custom_call.1} parent=11 // pred_region
          _
        $region20: #{tpu_custom_call.1} parent=11 // pred_fallthru
          _
        // Predicated region
        $region21: #{tpu_custom_call.1} parent=11 // pred_check
          %p205 = pneg %p106
        $region22: #{tpu_custom_call.1} parent=11 // pred_check_branch
          %207 = sbr.rel (%p205) target = $region24
        $region23: #{tpu_custom_call.1} parent=11 // pred_region
          %s209 = ssub.s32 9216, 9216
          %210 = vsyncadd [#allocation7], %s209
          %s211 = sshll.u32 [#allocation6], 4
          %s212 = int_to_ptr.vmem [resolvable:$true] %s211
          %217 = dma.hbm_to_vmem [thread:$0]  %s3, 9216, %s212, [#allocation7], 64, 64, 4
        $region24: #{tpu_custom_call.1} parent=11 // pred_fallthru
          _
        // Predicated region
        $region25: #{tpu_custom_call.1} parent=11 // pred_check
          %p218 = pneg %p127
        $region26: #{tpu_custom_call.1} parent=11 // pred_check_branch
          %220 = sbr.rel (%p218) target = $region28
        $region27: #{tpu_custom_call.1} parent=11 // pred_region
          _
        $region28: #{tpu_custom_call.1} parent=11 // pred_fallthru
          _
        // Predicated region
        $region29: #{tpu_custom_call.1} parent=11 // pred_check
          %p221 = pneg %p148
        $region30: #{tpu_custom_call.1} parent=11 // pred_check_branch
          %223 = sbr.rel (%p221) target = $region32
        $region31: #{tpu_custom_call.1} parent=11 // pred_region
          _
        $region32: #{tpu_custom_call.1} parent=11 // pred_fallthru
          _
      $region12: #{tpu_custom_call.1} parent=5 // pred_fallthru
        _
      %p224 = scmp.lt.s32.totalorder %s17, 2
      // Predicated region
      $region33: #{tpu_custom_call.1} parent=5 // pred_check
        %p225 = pneg %p224
      $region34: #{tpu_custom_call.1} parent=5 // pred_check_branch
        %227 = sbr.rel (%p225) target = $region36
      $region35: #{tpu_custom_call.1} parent=5 // pred_region
        // Predicated region
        $region37: #{tpu_custom_call.1} parent=35 // pred_check
          %p228 = pneg %p37
        $region38: #{tpu_custom_call.1} parent=35 // pred_check_branch
          %230 = sbr.rel (%p228) target = $region40
        $region39: #{tpu_custom_call.1} parent=35 // pred_region
          %p231 = scmp.lt.s32.totalorder %s17, 1
          %s232 = scalar_select %p231, %s17, 1
          %s233 = smul.addr %s232, 36
          %s234 = smul.addr %s233, 4
          %s235 = scalar_lea.vmem %s0, %s234
        $region40: #{tpu_custom_call.1} parent=35 // pred_fallthru
          _
      $region36: #{tpu_custom_call.1} parent=5 // pred_fallthru
        _
      %p236 = scmp.le.s32.totalorder 1, %s17
      %p237 = scmp.lt.s32.totalorder %s17, 3
      %p238 = pnand %p236, %p237
      %p239 = pneg %p238
      // Predicated region
      $region41: #{tpu_custom_call.1} parent=5 // pred_check
        _
      $region42: #{tpu_custom_call.1} parent=5 // pred_check_branch
        %241 = sbr.rel (%p238) target = $region44
      $region43: #{tpu_custom_call.1} parent=5 // pred_region
        %s242 = ssub.s32 %s17, 1
        // Predicated region
        $region45: #{tpu_custom_call.1} parent=43 // pred_check
          %p243 = pneg %p64
        $region46: #{tpu_custom_call.1} parent=43 // pred_check_branch
          %245 = sbr.rel (%p243) target = $region48
        $region47: #{tpu_custom_call.1} parent=43 // pred_region
          %246 = dma.done [#allocation4], 4096
        $region48: #{tpu_custom_call.1} parent=43 // pred_fallthru
          _
        // Predicated region
        $region49: #{tpu_custom_call.1} parent=43 // pred_check
          %p247 = pneg %p106
        $region50: #{tpu_custom_call.1} parent=43 // pred_check_branch
          %249 = sbr.rel (%p247) target = $region52
        $region51: #{tpu_custom_call.1} parent=43 // pred_region
          %250 = dma.done [#allocation7], 9216
        $region52: #{tpu_custom_call.1} parent=43 // pred_fallthru
          _
        %p251 = scmp.lt.s32.totalorder %s22, 1
        %s252 = scalar_select %p251, %s22, 1
        %s253 = smul.addr %s252, 36
        %s254 = smul.addr %s253, 4
        %s255 = scalar_lea.vmem %s0, %s254
        %p256 = pneg %p43
        %p257 = pneg %p40
        %p258 = pneg %p64
        %p259 = pneg %p61
        %p260 = pneg %p85
        %p261 = pneg %p82
        %p262 = pneg %p106
        %p263 = pneg %p103
        %p264 = pneg %p127
        %p265 = pneg %p124
        %p266 = pneg %p148
        %p267 = pneg %p145
        %p268 = pneg %p174
        %p269 = pneg %p171
        %s270 = sand.u32 %s161, 1
        %s271 = scalar_lea.sflag [#allocation5], %s270
        %s272 = sand.u32 %s161, 1
        %s273 = smul.addr %s272, 32
        %s274 = scalar_lea.vmem [#allocation8], %s273
        %p275 = scmp.lt.s32.totalorder %s22, 1
        %s276 = scalar_select %p275, %s22, 1
        %s277 = smul.addr %s276, 36
        %s278 = smul.addr %s277, 4
        %s279 = scalar_lea.vmem %s0, %s278
        %v281 = vld [vmem:[%s279] sm:$0xff]
        %v282 = vld [vmem:[%s279 + $0x10] sm:$0xff]
        %v283 = vld [vmem:[%s279 + $0x20] sm:$0xff]
        %v284 = vld [vmem:[%s279 + $0x30] sm:$0xff]
        %v285 = vld [vmem:[%s279 + $0x40] sm:$0xff]
        %v286 = vld [vmem:[%s279 + $0x50] sm:$0xff]
        %v287 = vld [vmem:[%s279 + $0x60] sm:$0xff]
        %v288 = vld [vmem:[%s279 + $0x70] sm:$0xff]
        %v289 = vld [vmem:[%s279 + $0x80] sm:$0xff]
        %v290 = vld [vmem:[%s279 + $0x8] sm:$0x11]
        %v291 = vld [vmem:[%s279 + $0x18] sm:$0x11]
        %v292 = vld [vmem:[%s279 + $0x28] sm:$0x11]
        %v293 = vld [vmem:[%s279 + $0x38] sm:$0x11]
        %v294 = vld [vmem:[%s279 + $0x48] sm:$0x11]
        %v295 = vld [vmem:[%s279 + $0x58] sm:$0x11]
        %v296 = vld [vmem:[%s279 + $0x68] sm:$0x11]
        %v297 = vld [vmem:[%s279 + $0x78] sm:$0x11]
        %v298 = vld [vmem:[%s279 + $0x88] sm:$0x11]
        %v299 = vld [vmem:[#allocation3] sm:$0xff]
        %v300 = vld [vmem:[#allocation3 + $0x8] sm:$0xff]
        %v301 = vld [vmem:[#allocation3 + $0x10] sm:$0xff]
        %v302 = vld [vmem:[#allocation3 + $0x18] sm:$0xff]
        %v303 = vld [vmem:[#allocation3 + $0x20] sm:$0xff]
        %v304 = vld [vmem:[#allocation3 + $0x28] sm:$0xff]
        %v305 = vld [vmem:[#allocation3 + $0x30] sm:$0xff]
        %v306 = vld [vmem:[#allocation3 + $0x38] sm:$0xff]
        %v307 = vld [vmem:[#allocation3 + $0x40] sm:$0xff]
        %v308 = vld [vmem:[#allocation3 + $0x48] sm:$0xff]
        %v309 = vld [vmem:[#allocation3 + $0x50] sm:$0xff]
        %v310 = vld [vmem:[#allocation3 + $0x58] sm:$0xff]
        %v311 = vld [vmem:[#allocation3 + $0x60] sm:$0xff]
        %v312 = vld [vmem:[#allocation3 + $0x68] sm:$0xff]
        %v313 = vld [vmem:[#allocation3 + $0x70] sm:$0xff]
        %v314 = vld [vmem:[#allocation3 + $0x78] sm:$0xff]
        %v315 = vld [vmem:[#allocation3 + $0x80] sm:$0xff]
        %v316 = vld [vmem:[#allocation3 + $0x88] sm:$0xff]
        %v317 = vld [vmem:[#allocation3 + $0x90] sm:$0xff]
        %v318 = vld [vmem:[#allocation3 + $0x98] sm:$0xff]
        %v319 = vld [vmem:[#allocation3 + $0xa0] sm:$0xff]
        %v320 = vld [vmem:[#allocation3 + $0xa8] sm:$0xff]
        %v321 = vld [vmem:[#allocation3 + $0xb0] sm:$0xff]
        %v322 = vld [vmem:[#allocation3 + $0xb8] sm:$0xff]
        %v323 = vld [vmem:[#allocation3 + $0xc0] sm:$0xff]
        %v324 = vld [vmem:[#allocation3 + $0xc8] sm:$0xff]
        %v325 = vld [vmem:[#allocation3 + $0xd0] sm:$0xff]
        %v326 = vld [vmem:[#allocation3 + $0xd8] sm:$0xff]
        %v327 = vld [vmem:[#allocation3 + $0xe0] sm:$0xff]
        %v328 = vld [vmem:[#allocation3 + $0xe8] sm:$0xff]
        %v329 = vld [vmem:[#allocation3 + $0xf0] sm:$0xff]
        %v330 = vld [vmem:[#allocation3 + $0xf8] sm:$0xff]
        %v339 = vunpack.c.l.b16 %v281
        %v340 = vunpack.c.h.b16 %v281
        %v341 = vunpack.c.l.b16 %v282
        %v342 = vunpack.c.h.b16 %v282
        %v343 = vunpack.c.l.b16 %v283
        %v344 = vunpack.c.h.b16 %v283
        %v345 = vunpack.c.l.b16 %v284
        %v346 = vunpack.c.h.b16 %v284
        %v347 = vunpack.c.l.b16 %v285
        %v348 = vunpack.c.h.b16 %v285
        %v349 = vunpack.c.l.b16 %v286
        %v350 = vunpack.c.h.b16 %v286
        %v351 = vunpack.c.l.b16 %v287
        %v352 = vunpack.c.h.b16 %v287
        %v353 = vunpack.c.l.b16 %v288
        %v354 = vunpack.c.h.b16 %v288
        %v355 = vpack.c.b16 %v341, %v339
        %v356 = vpack.c.b16 %v342, %v340
        %v357 = vpack.c.b16 %v345, %v343
        %v358 = vpack.c.b16 %v346, %v344
        %v359 = vpack.c.b16 %v349, %v347
        %v360 = vpack.c.b16 %v350, %v348
        %v361 = vpack.c.b16 %v353, %v351
        %v362 = vpack.c.b16 %v354, %v352
        %v403 = vunpack.c.l.b16 %v299
        %v404 = vunpack.c.h.b16 %v299
        %v405 = vunpack.c.l.b16 %v300
        %v406 = vunpack.c.h.b16 %v300
        %v407 = vunpack.c.l.b16 %v301
        %v408 = vunpack.c.h.b16 %v301
        %v409 = vunpack.c.l.b16 %v302
        %v410 = vunpack.c.h.b16 %v302
        %v411 = vunpack.c.l.b16 %v303
        %v412 = vunpack.c.h.b16 %v303
        %v413 = vunpack.c.l.b16 %v304
        %v414 = vunpack.c.h.b16 %v304
        %v415 = vunpack.c.l.b16 %v305
        %v416 = vunpack.c.h.b16 %v305
        %v417 = vunpack.c.l.b16 %v306
        %v418 = vunpack.c.h.b16 %v306
        %v419 = vunpack.c.l.b16 %v307
        %v420 = vunpack.c.h.b16 %v307
        %v421 = vunpack.c.l.b16 %v308
        %v422 = vunpack.c.h.b16 %v308
        %v423 = vunpack.c.l.b16 %v309
        %v424 = vunpack.c.h.b16 %v309
        %v425 = vunpack.c.l.b16 %v310
        %v426 = vunpack.c.h.b16 %v310
        %v427 = vunpack.c.l.b16 %v311
        %v428 = vunpack.c.h.b16 %v311
        %v429 = vunpack.c.l.b16 %v312
        %v430 = vunpack.c.h.b16 %v312
        %v431 = vunpack.c.l.b16 %v313
        %v432 = vunpack.c.h.b16 %v313
        %v433 = vunpack.c.l.b16 %v314
        %v434 = vunpack.c.h.b16 %v314
        %v435 = vunpack.c.l.b16 %v315
        %v436 = vunpack.c.h.b16 %v315
        %v437 = vunpack.c.l.b16 %v316
        %v438 = vunpack.c.h.b16 %v316
        %v439 = vunpack.c.l.b16 %v317
        %v440 = vunpack.c.h.b16 %v317
        %v441 = vunpack.c.l.b16 %v318
        %v442 = vunpack.c.h.b16 %v318
        %v443 = vunpack.c.l.b16 %v319
        %v444 = vunpack.c.h.b16 %v319
        %v445 = vunpack.c.l.b16 %v320
        %v446 = vunpack.c.h.b16 %v320
        %v447 = vunpack.c.l.b16 %v321
        %v448 = vunpack.c.h.b16 %v321
        %v449 = vunpack.c.l.b16 %v322
        %v450 = vunpack.c.h.b16 %v322
        %v451 = vunpack.c.l.b16 %v323
        %v452 = vunpack.c.h.b16 %v323
        %v453 = vunpack.c.l.b16 %v324
        %v454 = vunpack.c.h.b16 %v324
        %v455 = vunpack.c.l.b16 %v325
        %v456 = vunpack.c.h.b16 %v325
        %v457 = vunpack.c.l.b16 %v326
        %v458 = vunpack.c.h.b16 %v326
        %v459 = vunpack.c.l.b16 %v327
        %v460 = vunpack.c.h.b16 %v327
        %v461 = vunpack.c.l.b16 %v328
        %v462 = vunpack.c.h.b16 %v328
        %v463 = vunpack.c.l.b16 %v329
        %v464 = vunpack.c.h.b16 %v329
        %v465 = vunpack.c.l.b16 %v330
        %v466 = vunpack.c.h.b16 %v330
        %v467 = vpack.c.b16 %v405, %v403
        %v468 = vpack.c.b16 %v406, %v404
        %v469 = vpack.c.b16 %v409, %v407
        %v470 = vpack.c.b16 %v410, %v408
        %v471 = vpack.c.b16 %v413, %v411
        %v472 = vpack.c.b16 %v414, %v412
        %v473 = vpack.c.b16 %v417, %v415
        %v474 = vpack.c.b16 %v418, %v416
        %v475 = vpack.c.b16 %v421, %v419
        %v476 = vpack.c.b16 %v422, %v420
        %v477 = vpack.c.b16 %v425, %v423
        %v478 = vpack.c.b16 %v426, %v424
        %v479 = vpack.c.b16 %v429, %v427
        %v480 = vpack.c.b16 %v430, %v428
        %v481 = vpack.c.b16 %v433, %v431
        %v482 = vpack.c.b16 %v434, %v432
        %v483 = vpack.c.b16 %v437, %v435
        %v484 = vpack.c.b16 %v438, %v436
        %v485 = vpack.c.b16 %v441, %v439
        %v486 = vpack.c.b16 %v442, %v440
        %v487 = vpack.c.b16 %v445, %v443
        %v488 = vpack.c.b16 %v446, %v444
        %v489 = vpack.c.b16 %v449, %v447
        %v490 = vpack.c.b16 %v450, %v448
        %v491 = vpack.c.b16 %v453, %v451
        %v492 = vpack.c.b16 %v454, %v452
        %v493 = vpack.c.b16 %v457, %v455
        %v494 = vpack.c.b16 %v458, %v456
        %v495 = vpack.c.b16 %v461, %v459
        %v496 = vpack.c.b16 %v462, %v460
        %v497 = vpack.c.b16 %v465, %v463
        %v498 = vpack.c.b16 %v466, %v464
        %531 = vmatprep.subr.bf16.mxu0 %v468
        %532 = vmatpush1.bf16.msra.mxu0 %v467
        %533 = vmatprep.subr.bf16.mxu0 %v470
        %534 = vmatpush1.bf16.msra.mxu0 %v469
        %535 = vmatprep.subr.bf16.mxu0 %v472
        %536 = vmatpush1.bf16.msra.mxu0 %v471
        %537 = vmatprep.subr.bf16.mxu0 %v474
        %538 = vmatpush1.bf16.msra.mxu0 %v473
        %539 = vmatprep.subr.bf16.mxu0 %v476
        %540 = vmatpush1.bf16.msra.mxu0 %v475
        %541 = vmatprep.subr.bf16.mxu0 %v478
        %542 = vmatpush1.bf16.msra.mxu0 %v477
        %543 = vmatprep.subr.bf16.mxu0 %v480
        %544 = vmatpush1.bf16.msra.mxu0 %v479
        %545 = vmatprep.subr.bf16.mxu0 %v482
        %546 = vmatpush1.bf16.msra.mxu0 %v481
        %547 = vmatprep.subr.bf16.mxu0 %v484
        %548 = vmatpush1.bf16.msra.mxu0 %v483
        %549 = vmatprep.subr.bf16.mxu0 %v486
        %550 = vmatpush1.bf16.msra.mxu0 %v485
        %551 = vmatprep.subr.bf16.mxu0 %v488
        %552 = vmatpush1.bf16.msra.mxu0 %v487
        %553 = vmatprep.subr.bf16.mxu0 %v490
        %554 = vmatpush1.bf16.msra.mxu0 %v489
        %555 = vmatprep.subr.bf16.mxu0 %v492
        %556 = vmatpush1.bf16.msra.mxu0 %v491
        %557 = vmatprep.subr.bf16.mxu0 %v494
        %558 = vmatpush1.bf16.msra.mxu0 %v493
        %559 = vmatprep.subr.bf16.mxu0 %v496
        %560 = vmatpush1.bf16.msra.mxu0 %v495
        %561 = vmatprep.subr.bf16.mxu0 %v498
        %562 = vmatpush1.bf16.msra.mxu0 %v497
        %563 = vmatprep.mubr.bf16.mxu0 %v356
        %564 = vmatmul.mubr.bf16.gmra.mrb[0].mxu0 %v355
        %v565 = vpop.f32.mrb[0].mxu0
        %v566 = vadd.f32 0.0, %v565
        %v567 = vpop.f32.mrb[0].mxu0
        %v568 = vadd.f32 0.0, %v567
        %v569 = vpop.f32.mrb[0].mxu0
        %v570 = vadd.f32 0.0, %v569
        %v571 = vpop.f32.mrb[0].mxu0
        %v572 = vadd.f32 0.0, %v571
        %573 = vmatprep.mubr.bf16.mxu0 %v358
        %574 = vmatmul.mubr.bf16.gmra.mrb[0].mxu0 %v357
        %v575 = vpop.f32.mrb[0].mxu0
        %v576 = vadd.f32 0.0, %v575
        %v577 = vpop.f32.mrb[0].mxu0
        %v578 = vadd.f32 0.0, %v577
        %v579 = vpop.f32.mrb[0].mxu0
        %v580 = vadd.f32 0.0, %v579
        %v581 = vpop.f32.mrb[0].mxu0
        %v582 = vadd.f32 0.0, %v581
        %583 = vmatprep.mubr.bf16.mxu0 %v360
        %584 = vmatmul.mubr.bf16.gmra.mrb[0].mxu0 %v359
        %v585 = vpop.f32.mrb[0].mxu0
        %v586 = vadd.f32 0.0, %v585
        %v587 = vpop.f32.mrb[0].mxu0
        %v588 = vadd.f32 0.0, %v587
        %v589 = vpop.f32.mrb[0].mxu0
        %v590 = vadd.f32 0.0, %v589
        %v591 = vpop.f32.mrb[0].mxu0
        %v592 = vadd.f32 0.0, %v591
        %593 = vmatprep.mubr.bf16.mxu0 %v362
        %594 = vmatmul.mubr.bf16.gmra.mrb[0].mxu0 %v361
        %v595 = vpop.f32.mrb[0].mxu0
        %v596 = vadd.f32 0.0, %v595
        %v597 = vpop.f32.mrb[0].mxu0
        %v598 = vadd.f32 0.0, %v597
        %v599 = vpop.f32.mrb[0].mxu0
        %v600 = vadd.f32 0.0, %v599
        %v601 = vpop.f32.mrb[0].mxu0
        %v602 = vadd.f32 0.0, %v601
        %603 = vdwg.mxu0
        %vm604 = vsmask.f32 3328
        %vm605 = vsmask.f32 7440
        %vm606 = vmor %vm604, %vm605
        %v608 = vshrl.u32 %v281, 16
        %v610 = vrot.slane %v608, 4
        %v611 = vshll.u32 %v281, 16
        %v613 = vrot.slane %v611, 5
        %v614 = vor.u32 %v610, %v613
        %v615 = vrot.slane %v614, 4
        %v617 = vshll.u32 %v290, 16
        %v619 = vrot.slane %v617, 5
        %v620 = vsel %vm606, %v615, %v619
        %v622 = vshrl.u32 %v282, 16
        %v624 = vrot.slane %v622, 4
        %v625 = vshll.u32 %v282, 16
        %v627 = vrot.slane %v625, 5
        %v628 = vor.u32 %v624, %v627
        %v629 = vrot.slane %v628, 4
        %v631 = vshll.u32 %v291, 16
        %v633 = vrot.slane %v631, 5
        %v634 = vsel %vm606, %v629, %v633
        %v636 = vshrl.u32 %v283, 16
        %v638 = vrot.slane %v636, 4
        %v639 = vshll.u32 %v283, 16
        %v641 = vrot.slane %v639, 5
        %v642 = vor.u32 %v638, %v641
        %v643 = vrot.slane %v642, 4
        %v645 = vshll.u32 %v292, 16
        %v647 = vrot.slane %v645, 5
        %v648 = vsel %vm606, %v643, %v647
        %v650 = vshrl.u32 %v284, 16
        %v652 = vrot.slane %v650, 4
        %v653 = vshll.u32 %v284, 16
        %v655 = vrot.slane %v653, 5
        %v656 = vor.u32 %v652, %v655
        %v657 = vrot.slane %v656, 4
        %v659 = vshll.u32 %v293, 16
        %v661 = vrot.slane %v659, 5
        %v662 = vsel %vm606, %v657, %v661
        %v664 = vshrl.u32 %v285, 16
        %v666 = vrot.slane %v664, 4
        %v667 = vshll.u32 %v285, 16
        %v669 = vrot.slane %v667, 5
        %v670 = vor.u32 %v666, %v669
        %v671 = vrot.slane %v670, 4
        %v673 = vshll.u32 %v294, 16
        %v675 = vrot.slane %v673, 5
        %v676 = vsel %vm606, %v671, %v675
        %v678 = vshrl.u32 %v286, 16
        %v680 = vrot.slane %v678, 4
        %v681 = vshll.u32 %v286, 16
        %v683 = vrot.slane %v681, 5
        %v684 = vor.u32 %v680, %v683
        %v685 = vrot.slane %v684, 4
        %v687 = vshll.u32 %v295, 16
        %v689 = vrot.slane %v687, 5
        %v690 = vsel %vm606, %v685, %v689
        %v692 = vshrl.u32 %v287, 16
        %v694 = vrot.slane %v692, 4
        %v695 = vshll.u32 %v287, 16
        %v697 = vrot.slane %v695, 5
        %v698 = vor.u32 %v694, %v697
        %v699 = vrot.slane %v698, 4
        %v701 = vshll.u32 %v296, 16
        %v703 = vrot.slane %v701, 5
        %v704 = vsel %vm606, %v699, %v703
        %v706 = vshrl.u32 %v288, 16
        %v708 = vrot.slane %v706, 4
        %v709 = vshll.u32 %v288, 16
        %v711 = vrot.slane %v709, 5
        %v712 = vor.u32 %v708, %v711
        %v713 = vrot.slane %v712, 4
        %v715 = vshll.u32 %v297, 16
        %v717 = vrot.slane %v715, 5
        %v718 = vsel %vm606, %v713, %v717
        %v719 = vld [vmem:[%s2] sm:$0xf]
        %v720 = vld [vmem:[%s2 + $0x4] sm:$0xf]
        %v721 = vld [vmem:[%s2 + $0x8] sm:$0xf]
        %v722 = vld [vmem:[%s2 + $0xc] sm:$0xf]
        %v723 = vld [vmem:[%s2 + $0x10] sm:$0xf]
        %v724 = vld [vmem:[%s2 + $0x14] sm:$0xf]
        %v725 = vld [vmem:[%s2 + $0x18] sm:$0xf]
        %v726 = vld [vmem:[%s2 + $0x1c] sm:$0xf]
        %v727 = vld [vmem:[%s2 + $0x20] sm:$0xf]
        %v728 = vld [vmem:[%s2 + $0x24] sm:$0xf]
        %v729 = vld [vmem:[%s2 + $0x28] sm:$0xf]
        %v730 = vld [vmem:[%s2 + $0x2c] sm:$0xf]
        %v731 = vld [vmem:[%s2 + $0x30] sm:$0xf]
        %v732 = vld [vmem:[%s2 + $0x34] sm:$0xf]
        %v733 = vld [vmem:[%s2 + $0x38] sm:$0xf]
        %v734 = vld [vmem:[%s2 + $0x3c] sm:$0xf]
        %v735 = vld [vmem:[%s2 + $0x40] sm:$0xf]
        %v736 = vld [vmem:[%s2 + $0x44] sm:$0xf]
        %v737 = vld [vmem:[%s2 + $0x48] sm:$0xf]
        %v738 = vld [vmem:[%s2 + $0x4c] sm:$0xf]
        %v739 = vld [vmem:[%s2 + $0x50] sm:$0xf]
        %v740 = vld [vmem:[%s2 + $0x54] sm:$0xf]
        %v741 = vld [vmem:[%s2 + $0x58] sm:$0xf]
        %v742 = vld [vmem:[%s2 + $0x5c] sm:$0xf]
        %v743 = vld [vmem:[%s2 + $0x60] sm:$0xf]
        %v744 = vld [vmem:[%s2 + $0x64] sm:$0xf]
        %v745 = vld [vmem:[%s2 + $0x68] sm:$0xf]
        %v746 = vld [vmem:[%s2 + $0x6c] sm:$0xf]
        %v747 = vld [vmem:[%s2 + $0x70] sm:$0xf]
        %v748 = vld [vmem:[%s2 + $0x74] sm:$0xf]
        %v749 = vld [vmem:[%s2 + $0x78] sm:$0xf]
        %v750 = vld [vmem:[%s2 + $0x7c] sm:$0xf]
        %v751 = vunpack.c.l.b16 %v620
        %v752 = vunpack.c.h.b16 %v620
        %v753 = vunpack.c.l.b16 %v634
        %v754 = vunpack.c.h.b16 %v634
        %v755 = vunpack.c.l.b16 %v648
        %v756 = vunpack.c.h.b16 %v648
        %v757 = vunpack.c.l.b16 %v662
        %v758 = vunpack.c.h.b16 %v662
        %v759 = vunpack.c.l.b16 %v676
        %v760 = vunpack.c.h.b16 %v676
        %v761 = vunpack.c.l.b16 %v690
        %v762 = vunpack.c.h.b16 %v690
        %v763 = vunpack.c.l.b16 %v704
        %v764 = vunpack.c.h.b16 %v704
        %v765 = vunpack.c.l.b16 %v718
        %v766 = vunpack.c.h.b16 %v718
        %v767 = vpack.c.b16 %v753, %v751
        %v768 = vpack.c.b16 %v754, %v752
        %v769 = vpack.c.b16 %v757, %v755
        %v770 = vpack.c.b16 %v758, %v756
        %v771 = vpack.c.b16 %v761, %v759
        %v772 = vpack.c.b16 %v762, %v760
        %v773 = vpack.c.b16 %v765, %v763
        %v774 = vpack.c.b16 %v766, %v764
        %v815 = vunpack.c.l.b16 %v719
        %v816 = vunpack.c.l.b16 %v720
        %v817 = vunpack.c.l.b16 %v721
        %v818 = vunpack.c.l.b16 %v722
        %v819 = vunpack.c.l.b16 %v723
        %v820 = vunpack.c.l.b16 %v724
        %v821 = vunpack.c.l.b16 %v725
        %v822 = vunpack.c.l.b16 %v726
        %v823 = vunpack.c.l.b16 %v727
        %v824 = vunpack.c.l.b16 %v728
        %v825 = vunpack.c.l.b16 %v729
        %v826 = vunpack.c.l.b16 %v730
        %v827 = vunpack.c.l.b16 %v731
        %v828 = vunpack.c.l.b16 %v732
        %v829 = vunpack.c.l.b16 %v733
        %v830 = vunpack.c.l.b16 %v734
        %v831 = vunpack.c.l.b16 %v735
        %v832 = vunpack.c.l.b16 %v736
        %v833 = vunpack.c.l.b16 %v737
        %v834 = vunpack.c.l.b16 %v738
        %v835 = vunpack.c.l.b16 %v739
        %v836 = vunpack.c.l.b16 %v740
        %v837 = vunpack.c.l.b16 %v741
        %v838 = vunpack.c.l.b16 %v742
        %v839 = vunpack.c.l.b16 %v743
        %v840 = vunpack.c.l.b16 %v744
        %v841 = vunpack.c.l.b16 %v745
        %v842 = vunpack.c.l.b16 %v746
        %v843 = vunpack.c.l.b16 %v747
        %v844 = vunpack.c.l.b16 %v748
        %v845 = vunpack.c.l.b16 %v749
        %v846 = vunpack.c.l.b16 %v750
        %v847 = vpack.c.b16 %v816, %v815
        %v848 = vpack.c.b16 %v818, %v817
        %v849 = vpack.c.b16 %v820, %v819
        %v850 = vpack.c.b16 %v822, %v821
        %v851 = vpack.c.b16 %v824, %v823
        %v852 = vpack.c.b16 %v826, %v825
        %v853 = vpack.c.b16 %v828, %v827
        %v854 = vpack.c.b16 %v830, %v829
        %v855 = vpack.c.b16 %v832, %v831
        %v856 = vpack.c.b16 %v834, %v833
        %v857 = vpack.c.b16 %v836, %v835
        %v858 = vpack.c.b16 %v838, %v837
        %v859 = vpack.c.b16 %v840, %v839
        %v860 = vpack.c.b16 %v842, %v841
        %v861 = vpack.c.b16 %v844, %v843
        %v862 = vpack.c.b16 %v846, %v845
        %879 = vmatprep.subr.bf16.mxu0 0
        %880 = vmatpush1.bf16.msra.mxu0 %v847
        %881 = vmatprep.subr.bf16.mxu0 0
        %882 = vmatpush1.bf16.msra.mxu0 %v848
        %883 = vmatprep.subr.bf16.mxu0 0
        %884 = vmatpush1.bf16.msra.mxu0 %v849
        %885 = vmatprep.subr.bf16.mxu0 0
        %886 = vmatpush1.bf16.msra.mxu0 %v850
        %887 = vmatprep.subr.bf16.mxu0 0
        %888 = vmatpush1.bf16.msra.mxu0 %v851
        %889 = vmatprep.subr.bf16.mxu0 0
        %890 = vmatpush1.bf16.msra.mxu0 %v852
        %891 = vmatprep.subr.bf16.mxu0 0
        %892 = vmatpush1.bf16.msra.mxu0 %v853
        %893 = vmatprep.subr.bf16.mxu0 0
        %894 = vmatpush1.bf16.msra.mxu0 %v854
        %895 = vmatprep.subr.bf16.mxu0 0
        %896 = vmatpush1.bf16.msra.mxu0 %v855
        %897 = vmatprep.subr.bf16.mxu0 0
        %898 = vmatpush1.bf16.msra.mxu0 %v856
        %899 = vmatprep.subr.bf16.mxu0 0
        %900 = vmatpush1.bf16.msra.mxu0 %v857
        %901 = vmatprep.subr.bf16.mxu0 0
        %902 = vmatpush1.bf16.msra.mxu0 %v858
        %903 = vmatprep.subr.bf16.mxu0 0
        %904 = vmatpush1.bf16.msra.mxu0 %v859
        %905 = vmatprep.subr.bf16.mxu0 0
        %906 = vmatpush1.bf16.msra.mxu0 %v860
        %907 = vmatprep.subr.bf16.mxu0 0
        %908 = vmatpush1.bf16.msra.mxu0 %v861
        %909 = vmatprep.subr.bf16.mxu0 0
        %910 = vmatpush1.bf16.msra.mxu0 %v862
        %911 = vmatprep.mubr.bf16.mxu0 %v768
        %912 = vmatmul.mubr.bf16.gmra.mrb[0].mxu0 %v767
        %v913 = vpop.f32.mrb[0].mxu0
        %v914 = vadd.f32 0.0, %v913
        %v915 = vpop.f32.mrb[0].mxu0
        %v916 = vpop.f32.mrb[0].mxu0
        %v917 = vadd.f32 0.0, %v916
        %v918 = vpop.f32.mrb[0].mxu0
        %919 = vmatprep.mubr.bf16.mxu0 %v770
        %920 = vmatmul.mubr.bf16.gmra.mrb[0].mxu0 %v769
        %v921 = vpop.f32.mrb[0].mxu0
        %v922 = vadd.f32 0.0, %v921
        %v923 = vpop.f32.mrb[0].mxu0
        %v924 = vpop.f32.mrb[0].mxu0
        %v925 = vadd.f32 0.0, %v924
        %v926 = vpop.f32.mrb[0].mxu0
        %927 = vmatprep.mubr.bf16.mxu0 %v772
        %928 = vmatmul.mubr.bf16.gmra.mrb[0].mxu0 %v771
        %v929 = vpop.f32.mrb[0].mxu0
        %v930 = vadd.f32 0.0, %v929
        %v931 = vpop.f32.mrb[0].mxu0
        %v932 = vpop.f32.mrb[0].mxu0
        %v933 = vadd.f32 0.0, %v932
        %v934 = vpop.f32.mrb[0].mxu0
        %935 = vmatprep.mubr.bf16.mxu0 %v774
        %936 = vmatmul.mubr.bf16.gmra.mrb[0].mxu0 %v773
        %v937 = vpop.f32.mrb[0].mxu0
        %v938 = vadd.f32 0.0, %v937
        %v939 = vpop.f32.mrb[0].mxu0
        %v940 = vpop.f32.mrb[0].mxu0
        %v941 = vadd.f32 0.0, %v940
        %v942 = vpop.f32.mrb[0].mxu0
        %943 = vdwg.mxu0
        %v944 = vadd.f32 %v566, %v914
        %v945 = vadd.f32 %v570, %v917
        %v946 = vadd.f32 %v576, %v922
        %v947 = vadd.f32 %v580, %v925
        %v948 = vadd.f32 %v586, %v930
        %v949 = vadd.f32 %v590, %v933
        %v950 = vadd.f32 %v596, %v938
        %v951 = vadd.f32 %v600, %v941
        %s952 = scalar_lea.vmem %s2, 128
        %v953 = vld [vmem:[%s952] sm:$0xf]
        %v954 = vld [vmem:[%s952 + $0x4] sm:$0xf]
        %v955 = vld [vmem:[%s952 + $0x8] sm:$0xf]
        %v956 = vld [vmem:[%s952 + $0xc] sm:$0xf]
        %v957 = vld [vmem:[%s952 + $0x10] sm:$0xf]
        %v958 = vld [vmem:[%s952 + $0x14] sm:$0xf]
        %v959 = vld [vmem:[%s952 + $0x18] sm:$0xf]
        %v960 = vld [vmem:[%s952 + $0x1c] sm:$0xf]
        %v961 = vld [vmem:[%s952 + $0x20] sm:$0xf]
        %v962 = vld [vmem:[%s952 + $0x24] sm:$0xf]
        %v963 = vld [vmem:[%s952 + $0x28] sm:$0xf]
        %v964 = vld [vmem:[%s952 + $0x2c] sm:$0xf]
        %v965 = vld [vmem:[%s952 + $0x30] sm:$0xf]
        %v966 = vld [vmem:[%s952 + $0x34] sm:$0xf]
        %v967 = vld [vmem:[%s952 + $0x38] sm:$0xf]
        %v968 = vld [vmem:[%s952 + $0x3c] sm:$0xf]
        %v969 = vld [vmem:[%s952 + $0x40] sm:$0xf]
        %v970 = vld [vmem:[%s952 + $0x44] sm:$0xf]
        %v971 = vld [vmem:[%s952 + $0x48] sm:$0xf]
        %v972 = vld [vmem:[%s952 + $0x4c] sm:$0xf]
        %v973 = vld [vmem:[%s952 + $0x50] sm:$0xf]
        %v974 = vld [vmem:[%s952 + $0x54] sm:$0xf]
        %v975 = vld [vmem:[%s952 + $0x58] sm:$0xf]
        %v976 = vld [vmem:[%s952 + $0x5c] sm:$0xf]
        %v977 = vld [vmem:[%s952 + $0x60] sm:$0xf]
        %v978 = vld [vmem:[%s952 + $0x64] sm:$0xf]
        %v979 = vld [vmem:[%s952 + $0x68] sm:$0xf]
        %v980 = vld [vmem:[%s952 + $0x6c] sm:$0xf]
        %v981 = vld [vmem:[%s952 + $0x70] sm:$0xf]
        %v982 = vld [vmem:[%s952 + $0x74] sm:$0xf]
        %v983 = vld [vmem:[%s952 + $0x78] sm:$0xf]
        %v984 = vld [vmem:[%s952 + $0x7c] sm:$0xf]
        %v986 = vunpack.c.l.b16 %v289
        %v987 = vunpack.c.h.b16 %v289
        %v988 = vpack.c.b16 %v343, %v341
        %v989 = vpack.c.b16 %v344, %v342
        %v990 = vpack.c.b16 %v347, %v345
        %v991 = vpack.c.b16 %v348, %v346
        %v992 = vpack.c.b16 %v351, %v349
        %v993 = vpack.c.b16 %v352, %v350
        %v994 = vpack.c.b16 %v986, %v353
        %v995 = vpack.c.b16 %v987, %v354
        %v1036 = vunpack.c.l.b16 %v953
        %v1037 = vunpack.c.l.b16 %v954
        %v1038 = vunpack.c.l.b16 %v955
        %v1039 = vunpack.c.l.b16 %v956
        %v1040 = vunpack.c.l.b16 %v957
        %v1041 = vunpack.c.l.b16 %v958
        %v1042 = vunpack.c.l.b16 %v959
        %v1043 = vunpack.c.l.b16 %v960
        %v1044 = vunpack.c.l.b16 %v961
        %v1045 = vunpack.c.l.b16 %v962
        %v1046 = vunpack.c.l.b16 %v963
        %v1047 = vunpack.c.l.b16 %v964
        %v1048 = vunpack.c.l.b16 %v965
        %v1049 = vunpack.c.l.b16 %v966
        %v1050 = vunpack.c.l.b16 %v967
        %v1051 = vunpack.c.l.b16 %v968
        %v1052 = vunpack.c.l.b16 %v969
        %v1053 = vunpack.c.l.b16 %v970
        %v1054 = vunpack.c.l.b16 %v971
        %v1055 = vunpack.c.l.b16 %v972
        %v1056 = vunpack.c.l.b16 %v973
        %v1057 = vunpack.c.l.b16 %v974
        %v1058 = vunpack.c.l.b16 %v975
        %v1059 = vunpack.c.l.b16 %v976
        %v1060 = vunpack.c.l.b16 %v977
        %v1061 = vunpack.c.l.b16 %v978
        %v1062 = vunpack.c.l.b16 %v979
        %v1063 = vunpack.c.l.b16 %v980
        %v1064 = vunpack.c.l.b16 %v981
        %v1065 = vunpack.c.l.b16 %v982
        %v1066 = vunpack.c.l.b16 %v983
        %v1067 = vunpack.c.l.b16 %v984
        %v1068 = vpack.c.b16 %v1037, %v1036
        %v1069 = vpack.c.b16 %v1039, %v1038
        %v1070 = vpack.c.b16 %v1041, %v1040
        %v1071 = vpack.c.b16 %v1043, %v1042
        %v1072 = vpack.c.b16 %v1045, %v1044
        %v1073 = vpack.c.b16 %v1047, %v1046
        %v1074 = vpack.c.b16 %v1049, %v1048
        %v1075 = vpack.c.b16 %v1051, %v1050
        %v1076 = vpack.c.b16 %v1053, %v1052
        %v1077 = vpack.c.b16 %v1055, %v1054
        %v1078 = vpack.c.b16 %v1057, %v1056
        %v1079 = vpack.c.b16 %v1059, %v1058
        %v1080 = vpack.c.b16 %v1061, %v1060
        %v1081 = vpack.c.b16 %v1063, %v1062
        %v1082 = vpack.c.b16 %v1065, %v1064
        %v1083 = vpack.c.b16 %v1067, %v1066
        %1100 = vmatprep.subr.bf16.mxu0 0
        %1101 = vmatpush1.bf16.msra.mxu0 %v1068
        %1102 = vmatprep.subr.bf16.mxu0 0
        %1103 = vmatpush1.bf16.msra.mxu0 %v1069
        %1104 = vmatprep.subr.bf16.mxu0 0
        %1105 = vmatpush1.bf16.msra.mxu0 %v1070
        %1106 = vmatprep.subr.bf16.mxu0 0
        %1107 = vmatpush1.bf16.msra.mxu0 %v1071
        %1108 = vmatprep.subr.bf16.mxu0 0
        %1109 = vmatpush1.bf16.msra.mxu0 %v1072
        %1110 = vmatprep.subr.bf16.mxu0 0
        %1111 = vmatpush1.bf16.msra.mxu0 %v1073
        %1112 = vmatprep.subr.bf16.mxu0 0
        %1113 = vmatpush1.bf16.msra.mxu0 %v1074
        %1114 = vmatprep.subr.bf16.mxu0 0
        %1115 = vmatpush1.bf16.msra.mxu0 %v1075
        %1116 = vmatprep.subr.bf16.mxu0 0
        %1117 = vmatpush1.bf16.msra.mxu0 %v1076
        %1118 = vmatprep.subr.bf16.mxu0 0
        %1119 = vmatpush1.bf16.msra.mxu0 %v1077
        %1120 = vmatprep.subr.bf16.mxu0 0
        %1121 = vmatpush1.bf16.msra.mxu0 %v1078
        %1122 = vmatprep.subr.bf16.mxu0 0
        %1123 = vmatpush1.bf16.msra.mxu0 %v1079
        %1124 = vmatprep.subr.bf16.mxu0 0
        %1125 = vmatpush1.bf16.msra.mxu0 %v1080
        %1126 = vmatprep.subr.bf16.mxu0 0
        %1127 = vmatpush1.bf16.msra.mxu0 %v1081
        %1128 = vmatprep.subr.bf16.mxu0 0
        %1129 = vmatpush1.bf16.msra.mxu0 %v1082
        %1130 = vmatprep.subr.bf16.mxu0 0
        %1131 = vmatpush1.bf16.msra.mxu0 %v1083
        %1132 = vmatprep.mubr.bf16.mxu0 %v989
        %1133 = vmatmul.mubr.bf16.gmra.mrb[0].mxu0 %v988
        %v1134 = vpop.f32.mrb[0].mxu0
        %v1135 = vadd.f32 0.0, %v1134
        %v1136 = vpop.f32.mrb[0].mxu0
        %v1137 = vpop.f32.mrb[0].mxu0
        %v1138 = vadd.f32 0.0, %v1137
        %v1139 = vpop.f32.mrb[0].mxu0
        %1140 = vmatprep.mubr.bf16.mxu0 %v991
        %1141 = vmatmul.mubr.bf16.gmra.mrb[0].mxu0 %v990
        %v1142 = vpop.f32.mrb[0].mxu0
        %v1143 = vadd.f32 0.0, %v1142
        %v1144 = vpop.f32.mrb[0].mxu0
        %v1145 = vpop.f32.mrb[0].mxu0
        %v1146 = vadd.f32 0.0, %v1145
        %v1147 = vpop.f32.mrb[0].mxu0
        %1148 = vmatprep.mubr.bf16.mxu0 %v993
        %1149 = vmatmul.mubr.bf16.gmra.mrb[0].mxu0 %v992
        %v1150 = vpop.f32.mrb[0].mxu0
        %v1151 = vadd.f32 0.0, %v1150
        %v1152 = vpop.f32.mrb[0].mxu0
        %v1153 = vpop.f32.mrb[0].mxu0
        %v1154 = vadd.f32 0.0, %v1153
        %v1155 = vpop.f32.mrb[0].mxu0
        %1156 = vmatprep.mubr.bf16.mxu0 %v995
        %1157 = vmatmul.mubr.bf16.gmra.mrb[0].mxu0 %v994
        %v1158 = vpop.f32.mrb[0].mxu0
        %v1159 = vadd.f32 0.0, %v1158
        %v1160 = vpop.f32.mrb[0].mxu0
        %v1161 = vpop.f32.mrb[0].mxu0
        %v1162 = vadd.f32 0.0, %v1161
        %v1163 = vpop.f32.mrb[0].mxu0
        %1164 = vdwg.mxu0
        %v1165 = vadd.f32 %v944, %v1135
        %v1166 = vadd.f32 %v945, %v1138
        %v1167 = vadd.f32 %v946, %v1143
        %v1168 = vadd.f32 %v947, %v1146
        %v1169 = vadd.f32 %v948, %v1151
        %v1170 = vadd.f32 %v949, %v1154
        %v1171 = vadd.f32 %v950, %v1159
        %v1172 = vadd.f32 %v951, %v1162
        %v1174 = vshrl.u32 %v289, 16
        %v1176 = vrot.slane %v1174, 4
        %v1177 = vshll.u32 %v289, 16
        %v1179 = vrot.slane %v1177, 5
        %v1180 = vor.u32 %v1176, %v1179
        %v1181 = vrot.slane %v1180, 4
        %v1183 = vshll.u32 %v298, 16
        %v1185 = vrot.slane %v1183, 5
        %v1186 = vsel %vm606, %v1181, %v1185
        %s1187 = scalar_lea.vmem %s2, 256
        %v1188 = vld [vmem:[%s1187] sm:$0xf]
        %v1189 = vld [vmem:[%s1187 + $0x4] sm:$0xf]
        %v1190 = vld [vmem:[%s1187 + $0x8] sm:$0xf]
        %v1191 = vld [vmem:[%s1187 + $0xc] sm:$0xf]
        %v1192 = vld [vmem:[%s1187 + $0x10] sm:$0xf]
        %v1193 = vld [vmem:[%s1187 + $0x14] sm:$0xf]
        %v1194 = vld [vmem:[%s1187 + $0x18] sm:$0xf]
        %v1195 = vld [vmem:[%s1187 + $0x1c] sm:$0xf]
        %v1196 = vld [vmem:[%s1187 + $0x20] sm:$0xf]
        %v1197 = vld [vmem:[%s1187 + $0x24] sm:$0xf]
        %v1198 = vld [vmem:[%s1187 + $0x28] sm:$0xf]
        %v1199 = vld [vmem:[%s1187 + $0x2c] sm:$0xf]
        %v1200 = vld [vmem:[%s1187 + $0x30] sm:$0xf]
        %v1201 = vld [vmem:[%s1187 + $0x34] sm:$0xf]
        %v1202 = vld [vmem:[%s1187 + $0x38] sm:$0xf]
        %v1203 = vld [vmem:[%s1187 + $0x3c] sm:$0xf]
        %v1204 = vld [vmem:[%s1187 + $0x40] sm:$0xf]
        %v1205 = vld [vmem:[%s1187 + $0x44] sm:$0xf]
        %v1206 = vld [vmem:[%s1187 + $0x48] sm:$0xf]
        %v1207 = vld [vmem:[%s1187 + $0x4c] sm:$0xf]
        %v1208 = vld [vmem:[%s1187 + $0x50] sm:$0xf]
        %v1209 = vld [vmem:[%s1187 + $0x54] sm:$0xf]
        %v1210 = vld [vmem:[%s1187 + $0x58] sm:$0xf]
        %v1211 = vld [vmem:[%s1187 + $0x5c] sm:$0xf]
        %v1212 = vld [vmem:[%s1187 + $0x60] sm:$0xf]
        %v1213 = vld [vmem:[%s1187 + $0x64] sm:$0xf]
        %v1214 = vld [vmem:[%s1187 + $0x68] sm:$0xf]
        %v1215 = vld [vmem:[%s1187 + $0x6c] sm:$0xf]
        %v1216 = vld [vmem:[%s1187 + $0x70] sm:$0xf]
        %v1217 = vld [vmem:[%s1187 + $0x74] sm:$0xf]
        %v1218 = vld [vmem:[%s1187 + $0x78] sm:$0xf]
        %v1219 = vld [vmem:[%s1187 + $0x7c] sm:$0xf]
        %v1220 = vunpack.c.l.b16 %v1186
        %v1221 = vunpack.c.h.b16 %v1186
        %v1222 = vpack.c.b16 %v755, %v753
        %v1223 = vpack.c.b16 %v756, %v754
        %v1224 = vpack.c.b16 %v759, %v757
        %v1225 = vpack.c.b16 %v760, %v758
        %v1226 = vpack.c.b16 %v763, %v761
        %v1227 = vpack.c.b16 %v764, %v762
        %v1228 = vpack.c.b16 %v1220, %v765
        %v1229 = vpack.c.b16 %v1221, %v766
        %v1270 = vunpack.c.l.b16 %v1188
        %v1271 = vunpack.c.l.b16 %v1189
        %v1272 = vunpack.c.l.b16 %v1190
        %v1273 = vunpack.c.l.b16 %v1191
        %v1274 = vunpack.c.l.b16 %v1192
        %v1275 = vunpack.c.l.b16 %v1193
        %v1276 = vunpack.c.l.b16 %v1194
        %v1277 = vunpack.c.l.b16 %v1195
        %v1278 = vunpack.c.l.b16 %v1196
        %v1279 = vunpack.c.l.b16 %v1197
        %v1280 = vunpack.c.l.b16 %v1198
        %v1281 = vunpack.c.l.b16 %v1199
        %v1282 = vunpack.c.l.b16 %v1200
        %v1283 = vunpack.c.l.b16 %v1201
        %v1284 = vunpack.c.l.b16 %v1202
        %v1285 = vunpack.c.l.b16 %v1203
        %v1286 = vunpack.c.l.b16 %v1204
        %v1287 = vunpack.c.l.b16 %v1205
        %v1288 = vunpack.c.l.b16 %v1206
        %v1289 = vunpack.c.l.b16 %v1207
        %v1290 = vunpack.c.l.b16 %v1208
        %v1291 = vunpack.c.l.b16 %v1209
        %v1292 = vunpack.c.l.b16 %v1210
        %v1293 = vunpack.c.l.b16 %v1211
        %v1294 = vunpack.c.l.b16 %v1212
        %v1295 = vunpack.c.l.b16 %v1213
        %v1296 = vunpack.c.l.b16 %v1214
        %v1297 = vunpack.c.l.b16 %v1215
        %v1298 = vunpack.c.l.b16 %v1216
        %v1299 = vunpack.c.l.b16 %v1217
        %v1300 = vunpack.c.l.b16 %v1218
        %v1301 = vunpack.c.l.b16 %v1219
        %v1302 = vpack.c.b16 %v1271, %v1270
        %v1303 = vpack.c.b16 %v1273, %v1272
        %v1304 = vpack.c.b16 %v1275, %v1274
        %v1305 = vpack.c.b16 %v1277, %v1276
        %v1306 = vpack.c.b16 %v1279, %v1278
        %v1307 = vpack.c.b16 %v1281, %v1280
        %v1308 = vpack.c.b16 %v1283, %v1282
        %v1309 = vpack.c.b16 %v1285, %v1284
        %v1310 = vpack.c.b16 %v1287, %v1286
        %v1311 = vpack.c.b16 %v1289, %v1288
        %v1312 = vpack.c.b16 %v1291, %v1290
        %v1313 = vpack.c.b16 %v1293, %v1292
        %v1314 = vpack.c.b16 %v1295, %v1294
        %v1315 = vpack.c.b16 %v1297, %v1296
        %v1316 = vpack.c.b16 %v1299, %v1298
        %v1317 = vpack.c.b16 %v1301, %v1300
        %1334 = vmatprep.subr.bf16.mxu0 0
        %1335 = vmatpush1.bf16.msra.mxu0 %v1302
        %1336 = vmatprep.subr.bf16.mxu0 0
        %1337 = vmatpush1.bf16.msra.mxu0 %v1303
        %1338 = vmatprep.subr.bf16.mxu0 0
        %1339 = vmatpush1.bf16.msra.mxu0 %v1304
        %1340 = vmatprep.subr.bf16.mxu0 0
        %1341 = vmatpush1.bf16.msra.mxu0 %v1305
        %1342 = vmatprep.subr.bf16.mxu0 0
        %1343 = vmatpush1.bf16.msra.mxu0 %v1306
        %1344 = vmatprep.subr.bf16.mxu0 0
        %1345 = vmatpush1.bf16.msra.mxu0 %v1307
        %1346 = vmatprep.subr.bf16.mxu0 0
        %1347 = vmatpush1.bf16.msra.mxu0 %v1308
        %1348 = vmatprep.subr.bf16.mxu0 0
        %1349 = vmatpush1.bf16.msra.mxu0 %v1309
        %1350 = vmatprep.subr.bf16.mxu0 0
        %1351 = vmatpush1.bf16.msra.mxu0 %v1310
        %1352 = vmatprep.subr.bf16.mxu0 0
        %1353 = vmatpush1.bf16.msra.mxu0 %v1311
        %1354 = vmatprep.subr.bf16.mxu0 0
        %1355 = vmatpush1.bf16.msra.mxu0 %v1312
        %1356 = vmatprep.subr.bf16.mxu0 0
        %1357 = vmatpush1.bf16.msra.mxu0 %v1313
        %1358 = vmatprep.subr.bf16.mxu0 0
        %1359 = vmatpush1.bf16.msra.mxu0 %v1314
        %1360 = vmatprep.subr.bf16.mxu0 0
        %1361 = vmatpush1.bf16.msra.mxu0 %v1315
        %1362 = vmatprep.subr.bf16.mxu0 0
        %1363 = vmatpush1.bf16.msra.mxu0 %v1316
        %1364 = vmatprep.subr.bf16.mxu0 0
        %1365 = vmatpush1.bf16.msra.mxu0 %v1317
        %1366 = vmatprep.mubr.bf16.mxu0 %v1223
        %1367 = vmatmul.mubr.bf16.gmra.mrb[0].mxu0 %v1222
        %v1368 = vpop.f32.mrb[0].mxu0
        %v1369 = vadd.f32 0.0, %v1368
        %v1370 = vpop.f32.mrb[0].mxu0
        %v1371 = vpop.f32.mrb[0].mxu0
        %v1372 = vadd.f32 0.0, %v1371
        %v1373 = vpop.f32.mrb[0].mxu0
        %1374 = vmatprep.mubr.bf16.mxu0 %v1225
        %1375 = vmatmul.mubr.bf16.gmra.mrb[0].mxu0 %v1224
        %v1376 = vpop.f32.mrb[0].mxu0
        %v1377 = vadd.f32 0.0, %v1376
        %v1378 = vpop.f32.mrb[0].mxu0
        %v1379 = vpop.f32.mrb[0].mxu0
        %v1380 = vadd.f32 0.0, %v1379
        %v1381 = vpop.f32.mrb[0].mxu0
        %1382 = vmatprep.mubr.bf16.mxu0 %v1227
        %1383 = vmatmul.mubr.bf16.gmra.mrb[0].mxu0 %v1226
        %v1384 = vpop.f32.mrb[0].mxu0
        %v1385 = vadd.f32 0.0, %v1384
        %v1386 = vpop.f32.mrb[0].mxu0
        %v1387 = vpop.f32.mrb[0].mxu0
        %v1388 = vadd.f32 0.0, %v1387
        %v1389 = vpop.f32.mrb[0].mxu0
        %1390 = vmatprep.mubr.bf16.mxu0 %v1229
        %1391 = vmatmul.mubr.bf16.gmra.mrb[0].mxu0 %v1228
        %v1392 = vpop.f32.mrb[0].mxu0
        %v1393 = vadd.f32 0.0, %v1392
        %v1394 = vpop.f32.mrb[0].mxu0
        %v1395 = vpop.f32.mrb[0].mxu0
        %v1396 = vadd.f32 0.0, %v1395
        %v1397 = vpop.f32.mrb[0].mxu0
        %1398 = vdwg.mxu0
        %v1399 = vadd.f32 %v1165, %v1369
        %v1400 = vadd.f32 %v1166, %v1372
        %v1401 = vadd.f32 %v1167, %v1377
        %v1402 = vadd.f32 %v1168, %v1380
        %v1403 = vadd.f32 %v1169, %v1385
        %v1404 = vadd.f32 %v1170, %v1388
        %v1405 = vadd.f32 %v1171, %v1393
        %v1406 = vadd.f32 %v1172, %v1396
        %v1407 = vld [vmem:[%s4] sm:$0x1]
        %v1409 = vlaneseq
        %v1410 = vshrl.u32 %v1409, 7
        %v1411 = vsub.s32 0, %v1410
        %v1412 = vrot.slane %v1407, %v1411
        %v1414 = vadd.f32 %v1399, %v1412
        %v1415 = vadd.f32 %v1400, %v1412
        %v1416 = vadd.f32 %v1401, %v1412
        %v1417 = vadd.f32 %v1402, %v1412
        %v1418 = vadd.f32 %v1403, %v1412
        %v1419 = vadd.f32 %v1404, %v1412
        %v1420 = vadd.f32 %v1405, %v1412
        %v1421 = vadd.f32 %v1406, %v1412
        %v1422 = vmax.f32 %v1414, 0.0
        %v1423 = vmax.f32 %v1415, 0.0
        %v1424 = vmax.f32 %v1416, 0.0
        %v1425 = vmax.f32 %v1417, 0.0
        %v1426 = vmax.f32 %v1418, 0.0
        %v1427 = vmax.f32 %v1419, 0.0
        %v1428 = vmax.f32 %v1420, 0.0
        %v1429 = vmax.f32 %v1421, 0.0
        %v1430 = vpack.c.bf16 %v1423, %v1422
        %v1431 = vpack.c.bf16 %v1425, %v1424
        %v1432 = vpack.c.bf16 %v1427, %v1426
        %v1433 = vpack.c.bf16 %v1429, %v1428
        %1434 = vst [vmem:[#allocation2] sm:$0xf] 0
        %1435 = vst [vmem:[#allocation2 + $0x4] sm:$0x1] 0
        %s1436 = scalar_lea.vmem [#allocation2], 72
        %1437 = vst [vmem:[%s1436] sm:$0xf] 0
        %1438 = vst [vmem:[%s1436 + $0x4] sm:$0x1] 0
        %vm1439 = vcmask 1040384
        %vm1440 = vsmask.f32 256
        %vm1441 = vmand %vm1439, %vm1440
        %v1442 = vld [vmem:[#allocation2] sm:$0x1]
        %v1443 = vsel %vm1441, 0, %v1442
        %1444 = vst [vmem:[#allocation2] sm:$0x1] %v1443
        %v1445 = vld [vmem:[#allocation2 + $0x8] sm:$0x1]
        %v1446 = vsel %vm1441, 0, %v1445
        %1447 = vst [vmem:[#allocation2 + $0x8] sm:$0x1] %v1446
        %v1448 = vld [vmem:[#allocation2 + $0x10] sm:$0x1]
        %v1449 = vsel %vm1441, 0, %v1448
        %1450 = vst [vmem:[#allocation2 + $0x10] sm:$0x1] %v1449
        %v1451 = vld [vmem:[#allocation2 + $0x18] sm:$0x1]
        %v1452 = vsel %vm1441, 0, %v1451
        %1453 = vst [vmem:[#allocation2 + $0x18] sm:$0x1] %v1452
        %v1454 = vld [vmem:[#allocation2 + $0x20] sm:$0x1]
        %v1455 = vsel %vm1441, 0, %v1454
        %1456 = vst [vmem:[#allocation2 + $0x20] sm:$0x1] %v1455
        %v1457 = vld [vmem:[#allocation2 + $0x28] sm:$0x1]
        %v1458 = vsel %vm1441, 0, %v1457
        %1459 = vst [vmem:[#allocation2 + $0x28] sm:$0x1] %v1458
        %v1460 = vld [vmem:[#allocation2 + $0x30] sm:$0x1]
        %v1461 = vsel %vm1441, 0, %v1460
        %1462 = vst [vmem:[#allocation2 + $0x30] sm:$0x1] %v1461
        %v1463 = vld [vmem:[#allocation2 + $0x38] sm:$0x1]
        %v1464 = vsel %vm1441, 0, %v1463
        %1465 = vst [vmem:[#allocation2 + $0x38] sm:$0x1] %v1464
        %v1466 = vld [vmem:[#allocation2 + $0x40] sm:$0x1]
        %v1467 = vsel %vm1441, 0, %v1466
        %1468 = vst [vmem:[#allocation2 + $0x40] sm:$0x1] %v1467
        %v1469 = vld [vmem:[#allocation2 + $0x48] sm:$0x1]
        %v1470 = vsel %vm1441, 0, %v1469
        %1471 = vst [vmem:[#allocation2 + $0x48] sm:$0x1] %v1470
        %vm1472 = vsmask.f32 7938
        %vm1473 = vmand %vm1439, %vm1472
        %v1474 = vld [vmem:[#allocation2 + $0x4] sm:$0x1]
        %v1475 = vsel %vm1473, 0, %v1474
        %1476 = vst [vmem:[#allocation2 + $0x4] sm:$0x1] %v1475
        %v1477 = vld [vmem:[#allocation2 + $0xc] sm:$0x1]
        %v1478 = vsel %vm1473, 0, %v1477
        %1479 = vst [vmem:[#allocation2 + $0xc] sm:$0x1] %v1478
        %v1480 = vld [vmem:[#allocation2 + $0x14] sm:$0x1]
        %v1481 = vsel %vm1473, 0, %v1480
        %1482 = vst [vmem:[#allocation2 + $0x14] sm:$0x1] %v1481
        %v1483 = vld [vmem:[#allocation2 + $0x1c] sm:$0x1]
        %v1484 = vsel %vm1473, 0, %v1483
        %1485 = vst [vmem:[#allocation2 + $0x1c] sm:$0x1] %v1484
        %v1486 = vld [vmem:[#allocation2 + $0x24] sm:$0x1]
        %v1487 = vsel %vm1473, 0, %v1486
        %1488 = vst [vmem:[#allocation2 + $0x24] sm:$0x1] %v1487
        %v1489 = vld [vmem:[#allocation2 + $0x2c] sm:$0x1]
        %v1490 = vsel %vm1473, 0, %v1489
        %1491 = vst [vmem:[#allocation2 + $0x2c] sm:$0x1] %v1490
        %v1492 = vld [vmem:[#allocation2 + $0x34] sm:$0x1]
        %v1493 = vsel %vm1473, 0, %v1492
        %1494 = vst [vmem:[#allocation2 + $0x34] sm:$0x1] %v1493
        %v1495 = vld [vmem:[#allocation2 + $0x3c] sm:$0x1]
        %v1496 = vsel %vm1473, 0, %v1495
        %1497 = vst [vmem:[#allocation2 + $0x3c] sm:$0x1] %v1496
        %v1498 = vld [vmem:[#allocation2 + $0x44] sm:$0x1]
        %v1499 = vsel %vm1473, 0, %v1498
        %1500 = vst [vmem:[#allocation2 + $0x44] sm:$0x1] %v1499
        %v1501 = vld [vmem:[#allocation2 + $0x4c] sm:$0x1]
        %v1502 = vsel %vm1473, 0, %v1501
        %1503 = vst [vmem:[#allocation2 + $0x4c] sm:$0x1] %v1502
        %v1508 = vunpack.c.l.b16 %v1430
        %v1509 = vunpack.c.h.b16 %v1430
        %v1510 = vunpack.c.l.b16 %v1431
        %v1511 = vunpack.c.h.b16 %v1431
        %v1512 = vunpack.c.l.b16 %v1432
        %v1513 = vunpack.c.h.b16 %v1432
        %v1514 = vunpack.c.l.b16 %v1433
        %v1515 = vunpack.c.h.b16 %v1433
        %v1516 = vpack.c.b16 %v1508, %v1508
        %v1517 = vpack.c.b16 %v1509, %v1509
        %v1518 = vpack.c.b16 %v1510, %v1510
        %v1519 = vpack.c.b16 %v1511, %v1511
        %v1520 = vpack.c.b16 %v1512, %v1512
        %v1521 = vpack.c.b16 %v1513, %v1513
        %v1522 = vpack.c.b16 %v1514, %v1514
        %v1523 = vpack.c.b16 %v1515, %v1515
        %v1525 = vshrl.u32 %v1516, 16
        %v1527 = vrot.slane %v1525, 7
        %v1528 = vshll.u32 %v1516, 16
        %v1530 = vor.u32 %v1527, %v1528
        %v1531 = vrot.slane %v1527, 4
        %v1533 = vshrl.u32 %v1517, 16
        %v1535 = vrot.slane %v1533, 7
        %v1536 = vshll.u32 %v1517, 16
        %v1538 = vor.u32 %v1535, %v1536
        %v1539 = vrot.slane %v1535, 4
        %v1541 = vshrl.u32 %v1518, 16
        %v1543 = vrot.slane %v1541, 7
        %v1544 = vshll.u32 %v1518, 16
        %v1546 = vor.u32 %v1543, %v1544
        %v1547 = vrot.slane %v1543, 4
        %v1549 = vshrl.u32 %v1519, 16
        %v1551 = vrot.slane %v1549, 7
        %v1552 = vshll.u32 %v1519, 16
        %v1554 = vor.u32 %v1551, %v1552
        %v1555 = vrot.slane %v1551, 4
        %v1557 = vshrl.u32 %v1520, 16
        %v1559 = vrot.slane %v1557, 7
        %v1560 = vshll.u32 %v1520, 16
        %v1562 = vor.u32 %v1559, %v1560
        %v1563 = vrot.slane %v1559, 4
        %v1565 = vshrl.u32 %v1521, 16
        %v1567 = vrot.slane %v1565, 7
        %v1568 = vshll.u32 %v1521, 16
        %v1570 = vor.u32 %v1567, %v1568
        %v1571 = vrot.slane %v1567, 4
        %v1573 = vshrl.u32 %v1522, 16
        %v1575 = vrot.slane %v1573, 7
        %v1576 = vshll.u32 %v1522, 16
        %v1578 = vor.u32 %v1575, %v1576
        %v1579 = vrot.slane %v1575, 4
        %v1581 = vshrl.u32 %v1523, 16
        %v1583 = vrot.slane %v1581, 7
        %v1584 = vshll.u32 %v1523, 16
        %v1586 = vor.u32 %v1583, %v1584
        %v1587 = vrot.slane %v1583, 4
        %s1604 = scalar_lea.vmem [#allocation2], 8
        %vm1605 = vcmask 1043456
        %vm1606 = vmand %vm1605, %vm1472
        %v1607 = vld [vmem:[%s1604] sm:$0xf]
        %v1608 = vsel %vm1606, %v1530, %v1607
        %1609 = vst [vmem:[%s1604] sm:$0xf] %v1608
        %v1610 = vld [vmem:[%s1604 + $0x4] sm:$0x1]
        %v1611 = vsel %vm1441, %v1531, %v1610
        %1612 = vst [vmem:[%s1604 + $0x4] sm:$0x1] %v1611
        %v1613 = vld [vmem:[%s1604 + $0x8] sm:$0xf]
        %v1614 = vsel %vm1606, %v1538, %v1613
        %1615 = vst [vmem:[%s1604 + $0x8] sm:$0xf] %v1614
        %v1616 = vld [vmem:[%s1604 + $0xc] sm:$0x1]
        %v1617 = vsel %vm1441, %v1539, %v1616
        %1618 = vst [vmem:[%s1604 + $0xc] sm:$0x1] %v1617
        %v1619 = vld [vmem:[%s1604 + $0x10] sm:$0xf]
        %v1620 = vsel %vm1606, %v1546, %v1619
        %1621 = vst [vmem:[%s1604 + $0x10] sm:$0xf] %v1620
        %v1622 = vld [vmem:[%s1604 + $0x14] sm:$0x1]
        %v1623 = vsel %vm1441, %v1547, %v1622
        %1624 = vst [vmem:[%s1604 + $0x14] sm:$0x1] %v1623
        %v1625 = vld [vmem:[%s1604 + $0x18] sm:$0xf]
        %v1626 = vsel %vm1606, %v1554, %v1625
        %1627 = vst [vmem:[%s1604 + $0x18] sm:$0xf] %v1626
        %v1628 = vld [vmem:[%s1604 + $0x1c] sm:$0x1]
        %v1629 = vsel %vm1441, %v1555, %v1628
        %1630 = vst [vmem:[%s1604 + $0x1c] sm:$0x1] %v1629
        %v1631 = vld [vmem:[%s1604 + $0x20] sm:$0xf]
        %v1632 = vsel %vm1606, %v1562, %v1631
        %1633 = vst [vmem:[%s1604 + $0x20] sm:$0xf] %v1632
        %v1634 = vld [vmem:[%s1604 + $0x24] sm:$0x1]
        %v1635 = vsel %vm1441, %v1563, %v1634
        %1636 = vst [vmem:[%s1604 + $0x24] sm:$0x1] %v1635
        %v1637 = vld [vmem:[%s1604 + $0x28] sm:$0xf]
        %v1638 = vsel %vm1606, %v1570, %v1637
        %1639 = vst [vmem:[%s1604 + $0x28] sm:$0xf] %v1638
        %v1640 = vld [vmem:[%s1604 + $0x2c] sm:$0x1]
        %v1641 = vsel %vm1441, %v1571, %v1640
        %1642 = vst [vmem:[%s1604 + $0x2c] sm:$0x1] %v1641
        %v1643 = vld [vmem:[%s1604 + $0x30] sm:$0xf]
        %v1644 = vsel %vm1606, %v1578, %v1643
        %1645 = vst [vmem:[%s1604 + $0x30] sm:$0xf] %v1644
        %v1646 = vld [vmem:[%s1604 + $0x34] sm:$0x1]
        %v1647 = vsel %vm1441, %v1579, %v1646
        %1648 = vst [vmem:[%s1604 + $0x34] sm:$0x1] %v1647
        %v1649 = vld [vmem:[%s1604 + $0x38] sm:$0xf]
        %v1650 = vsel %vm1606, %v1586, %v1649
        %1651 = vst [vmem:[%s1604 + $0x38] sm:$0xf] %v1650
        %v1652 = vld [vmem:[%s1604 + $0x3c] sm:$0x1]
        %v1653 = vsel %vm1441, %v1587, %v1652
        %1654 = vst [vmem:[%s1604 + $0x3c] sm:$0x1] %v1653
        %v1655 = vld [vmem:[#allocation2] sm:$0xf]
        %v1656 = vld [vmem:[#allocation2 + $0x8] sm:$0xf]
        %v1657 = vld [vmem:[#allocation2 + $0x10] sm:$0xf]
        %v1658 = vld [vmem:[#allocation2 + $0x18] sm:$0xf]
        %v1659 = vld [vmem:[#allocation2 + $0x20] sm:$0xf]
        %v1660 = vld [vmem:[#allocation2 + $0x28] sm:$0xf]
        %v1661 = vld [vmem:[#allocation2 + $0x30] sm:$0xf]
        %v1662 = vld [vmem:[#allocation2 + $0x38] sm:$0xf]
        %v1663 = vld [vmem:[#allocation2 + $0x40] sm:$0xf]
        %v1664 = vld [vmem:[#allocation2 + $0x48] sm:$0xf]
        %v1665 = vld [vmem:[#allocation6] sm:$0xf]
        %v1666 = vld [vmem:[#allocation6 + $0x4] sm:$0xf]
        %v1667 = vld [vmem:[#allocation6 + $0x8] sm:$0xf]
        %v1668 = vld [vmem:[#allocation6 + $0xc] sm:$0xf]
        %v1669 = vld [vmem:[#allocation6 + $0x10] sm:$0xf]
        %v1670 = vld [vmem:[#allocation6 + $0x14] sm:$0xf]
        %v1671 = vld [vmem:[#allocation6 + $0x18] sm:$0xf]
        %v1672 = vld [vmem:[#allocation6 + $0x1c] sm:$0xf]
        %v1673 = vld [vmem:[#allocation6 + $0x20] sm:$0xf]
        %v1674 = vld [vmem:[#allocation6 + $0x24] sm:$0xf]
        %v1675 = vld [vmem:[#allocation6 + $0x28] sm:$0xf]
        %v1676 = vld [vmem:[#allocation6 + $0x2c] sm:$0xf]
        %v1677 = vld [vmem:[#allocation6 + $0x30] sm:$0xf]
        %v1678 = vld [vmem:[#allocation6 + $0x34] sm:$0xf]
        %v1679 = vld [vmem:[#allocation6 + $0x38] sm:$0xf]
        %v1680 = vld [vmem:[#allocation6 + $0x3c] sm:$0xf]
        %v1689 = vunpack.c.l.b16 %v1655
        %v1690 = vunpack.c.l.b16 %v1656
        %v1691 = vunpack.c.l.b16 %v1657
        %v1692 = vunpack.c.l.b16 %v1658
        %v1693 = vunpack.c.l.b16 %v1659
        %v1694 = vunpack.c.l.b16 %v1660
        %v1695 = vunpack.c.l.b16 %v1661
        %v1696 = vunpack.c.l.b16 %v1662
        %v1697 = vpack.c.b16 %v1690, %v1689
        %v1698 = vpack.c.b16 %v1692, %v1691
        %v1699 = vpack.c.b16 %v1694, %v1693
        %v1700 = vpack.c.b16 %v1696, %v1695
        %v1721 = vunpack.c.l.b16 %v1665
        %v1722 = vunpack.c.l.b16 %v1666
        %v1723 = vunpack.c.l.b16 %v1667
        %v1724 = vunpack.c.l.b16 %v1668
        %v1725 = vunpack.c.l.b16 %v1669
        %v1726 = vunpack.c.l.b16 %v1670
        %v1727 = vunpack.c.l.b16 %v1671
        %v1728 = vunpack.c.l.b16 %v1672
        %v1729 = vunpack.c.l.b16 %v1673
        %v1730 = vunpack.c.l.b16 %v1674
        %v1731 = vunpack.c.l.b16 %v1675
        %v1732 = vunpack.c.l.b16 %v1676
        %v1733 = vunpack.c.l.b16 %v1677
        %v1734 = vunpack.c.l.b16 %v1678
        %v1735 = vunpack.c.l.b16 %v1679
        %v1736 = vunpack.c.l.b16 %v1680
        %v1737 = vpack.c.b16 %v1722, %v1721
        %v1738 = vpack.c.b16 %v1724, %v1723
        %v1739 = vpack.c.b16 %v1726, %v1725
        %v1740 = vpack.c.b16 %v1728, %v1727
        %v1741 = vpack.c.b16 %v1730, %v1729
        %v1742 = vpack.c.b16 %v1732, %v1731
        %v1743 = vpack.c.b16 %v1734, %v1733
        %v1744 = vpack.c.b16 %v1736, %v1735
        %1753 = vmatprep.subr.bf16.mxu0 0
        %1754 = vmatpush1.bf16.msra.mxu0 %v1737
        %1755 = vmatprep.subr.bf16.mxu0 0
        %1756 = vmatpush1.bf16.msra.mxu0 %v1738
        %1757 = vmatprep.subr.bf16.mxu0 0
        %1758 = vmatpush1.bf16.msra.mxu0 %v1739
        %1759 = vmatprep.subr.bf16.mxu0 0
        %1760 = vmatpush1.bf16.msra.mxu0 %v1740
        %1761 = vmatprep.subr.bf16.mxu0 0
        %1762 = vmatpush1.bf16.msra.mxu0 %v1741
        %1763 = vmatprep.subr.bf16.mxu0 0
        %1764 = vmatpush1.bf16.msra.mxu0 %v1742
        %1765 = vmatprep.subr.bf16.mxu0 0
        %1766 = vmatpush1.bf16.msra.mxu0 %v1743
        %1767 = vmatprep.subr.bf16.mxu0 0
        %1768 = vmatpush1.bf16.msra.mxu0 %v1744
        %1769 = vmatprep.subr.bf16.mxu0 0
        %1770 = vmatpush1.bf16.msra.mxu0 0
        %1771 = vmatprep.subr.bf16.mxu0 0
        %1772 = vmatpush1.bf16.msra.mxu0 0
        %1773 = vmatprep.subr.bf16.mxu0 0
        %1774 = vmatpush1.bf16.msra.mxu0 0
        %1775 = vmatprep.subr.bf16.mxu0 0
        %1776 = vmatpush1.bf16.msra.mxu0 0
        %1777 = vmatprep.subr.bf16.mxu0 0
        %1778 = vmatpush1.bf16.msra.mxu0 0
        %1779 = vmatprep.subr.bf16.mxu0 0
        %1780 = vmatpush1.bf16.msra.mxu0 0
        %1781 = vmatprep.subr.bf16.mxu0 0
        %1782 = vmatpush1.bf16.msra.mxu0 0
        %1783 = vmatprep.subr.bf16.mxu0 0
        %1784 = vmatpush1.bf16.msra.mxu0 0
        %1785 = vmatprep.mubr.bf16.mxu0 0
        %1786 = vmatmul.mubr.bf16.gmra.mrb[0].mxu0 %v1697
        %v1787 = vpop.f32.mrb[0].mxu0
        %v1788 = vadd.f32 0.0, %v1787
        %v1789 = vpop.f32.mrb[0].mxu0
        %v1790 = vpop.f32.mrb[0].mxu0
        %v1791 = vadd.f32 0.0, %v1790
        %v1792 = vpop.f32.mrb[0].mxu0
        %1793 = vmatprep.mubr.bf16.mxu0 0
        %1794 = vmatmul.mubr.bf16.gmra.mrb[0].mxu0 %v1698
        %v1795 = vpop.f32.mrb[0].mxu0
        %v1796 = vadd.f32 0.0, %v1795
        %v1797 = vpop.f32.mrb[0].mxu0
        %v1798 = vpop.f32.mrb[0].mxu0
        %v1799 = vadd.f32 0.0, %v1798
        %v1800 = vpop.f32.mrb[0].mxu0
        %1801 = vmatprep.mubr.bf16.mxu0 0
        %1802 = vmatmul.mubr.bf16.gmra.mrb[0].mxu0 %v1699
        %v1803 = vpop.f32.mrb[0].mxu0
        %v1804 = vadd.f32 0.0, %v1803
        %v1805 = vpop.f32.mrb[0].mxu0
        %v1806 = vpop.f32.mrb[0].mxu0
        %v1807 = vadd.f32 0.0, %v1806
        %v1808 = vpop.f32.mrb[0].mxu0
        %1809 = vmatprep.mubr.bf16.mxu0 0
        %1810 = vmatmul.mubr.bf16.gmra.mrb[0].mxu0 %v1700
        %v1811 = vpop.f32.mrb[0].mxu0
        %v1812 = vadd.f32 0.0, %v1811
        %v1813 = vpop.f32.mrb[0].mxu0
        %v1814 = vpop.f32.mrb[0].mxu0
        %v1815 = vadd.f32 0.0, %v1814
        %v1816 = vpop.f32.mrb[0].mxu0
        %1817 = vdwg.mxu0
        %v1818 = vadd.f32 %v568, %v1788
        %v1819 = vadd.f32 %v572, %v1791
        %v1820 = vadd.f32 %v578, %v1796
        %v1821 = vadd.f32 %v582, %v1799
        %v1822 = vadd.f32 %v588, %v1804
        %v1823 = vadd.f32 %v592, %v1807
        %v1824 = vadd.f32 %v598, %v1812
        %v1825 = vadd.f32 %v602, %v1815
        %s1826 = scalar_lea.vmem [#allocation6], 192
        %v1827 = vld [vmem:[%s1826] sm:$0xf]
        %v1828 = vld [vmem:[%s1826 + $0x4] sm:$0xf]
        %v1829 = vld [vmem:[%s1826 + $0x8] sm:$0xf]
        %v1830 = vld [vmem:[%s1826 + $0xc] sm:$0xf]
        %v1831 = vld [vmem:[%s1826 + $0x10] sm:$0xf]
        %v1832 = vld [vmem:[%s1826 + $0x14] sm:$0xf]
        %v1833 = vld [vmem:[%s1826 + $0x18] sm:$0xf]
        %v1834 = vld [vmem:[%s1826 + $0x1c] sm:$0xf]
        %v1835 = vld [vmem:[%s1826 + $0x20] sm:$0xf]
        %v1836 = vld [vmem:[%s1826 + $0x24] sm:$0xf]
        %v1837 = vld [vmem:[%s1826 + $0x28] sm:$0xf]
        %v1838 = vld [vmem:[%s1826 + $0x2c] sm:$0xf]
        %v1839 = vld [vmem:[%s1826 + $0x30] sm:$0xf]
        %v1840 = vld [vmem:[%s1826 + $0x34] sm:$0xf]
        %v1841 = vld [vmem:[%s1826 + $0x38] sm:$0xf]
        %v1842 = vld [vmem:[%s1826 + $0x3c] sm:$0xf]
        %v1844 = vunpack.c.l.b16 %v1663
        %v1845 = vpack.c.b16 %v1691, %v1690
        %v1846 = vpack.c.b16 %v1693, %v1692
        %v1847 = vpack.c.b16 %v1695, %v1694
        %v1848 = vpack.c.b16 %v1844, %v1696
        %v1869 = vunpack.c.l.b16 %v1827
        %v1870 = vunpack.c.l.b16 %v1828
        %v1871 = vunpack.c.l.b16 %v1829
        %v1872 = vunpack.c.l.b16 %v1830
        %v1873 = vunpack.c.l.b16 %v1831
        %v1874 = vunpack.c.l.b16 %v1832
        %v1875 = vunpack.c.l.b16 %v1833
        %v1876 = vunpack.c.l.b16 %v1834
        %v1877 = vunpack.c.l.b16 %v1835
        %v1878 = vunpack.c.l.b16 %v1836
        %v1879 = vunpack.c.l.b16 %v1837
        %v1880 = vunpack.c.l.b16 %v1838
        %v1881 = vunpack.c.l.b16 %v1839
        %v1882 = vunpack.c.l.b16 %v1840
        %v1883 = vunpack.c.l.b16 %v1841
        %v1884 = vunpack.c.l.b16 %v1842
        %v1885 = vpack.c.b16 %v1870, %v1869
        %v1886 = vpack.c.b16 %v1872, %v1871
        %v1887 = vpack.c.b16 %v1874, %v1873
        %v1888 = vpack.c.b16 %v1876, %v1875
        %v1889 = vpack.c.b16 %v1878, %v1877
        %v1890 = vpack.c.b16 %v1880, %v1879
        %v1891 = vpack.c.b16 %v1882, %v1881
        %v1892 = vpack.c.b16 %v1884, %v1883
        %1901 = vmatprep.subr.bf16.mxu0 0
        %1902 = vmatpush1.bf16.msra.mxu0 %v1885
        %1903 = vmatprep.subr.bf16.mxu0 0
        %1904 = vmatpush1.bf16.msra.mxu0 %v1886
        %1905 = vmatprep.subr.bf16.mxu0 0
        %1906 = vmatpush1.bf16.msra.mxu0 %v1887
        %1907 = vmatprep.subr.bf16.mxu0 0
        %1908 = vmatpush1.bf16.msra.mxu0 %v1888
        %1909 = vmatprep.subr.bf16.mxu0 0
        %1910 = vmatpush1.bf16.msra.mxu0 %v1889
        %1911 = vmatprep.subr.bf16.mxu0 0
        %1912 = vmatpush1.bf16.msra.mxu0 %v1890
        %1913 = vmatprep.subr.bf16.mxu0 0
        %1914 = vmatpush1.bf16.msra.mxu0 %v1891
        %1915 = vmatprep.subr.bf16.mxu0 0
        %1916 = vmatpush1.bf16.msra.mxu0 %v1892
        %1917 = vmatprep.subr.bf16.mxu0 0
        %1918 = vmatpush1.bf16.msra.mxu0 0
        %1919 = vmatprep.subr.bf16.mxu0 0
        %1920 = vmatpush1.bf16.msra.mxu0 0
        %1921 = vmatprep.subr.bf16.mxu0 0
        %1922 = vmatpush1.bf16.msra.mxu0 0
        %1923 = vmatprep.subr.bf16.mxu0 0
        %1924 = vmatpush1.bf16.msra.mxu0 0
        %1925 = vmatprep.subr.bf16.mxu0 0
        %1926 = vmatpush1.bf16.msra.mxu0 0
        %1927 = vmatprep.subr.bf16.mxu0 0
        %1928 = vmatpush1.bf16.msra.mxu0 0
        %1929 = vmatprep.subr.bf16.mxu0 0
        %1930 = vmatpush1.bf16.msra.mxu0 0
        %1931 = vmatprep.subr.bf16.mxu0 0
        %1932 = vmatpush1.bf16.msra.mxu0 0
        %1933 = vmatprep.mubr.bf16.mxu0 0
        %1934 = vmatmul.mubr.bf16.gmra.mrb[0].mxu0 %v1845
        %v1935 = vpop.f32.mrb[0].mxu0
        %v1936 = vadd.f32 0.0, %v1935
        %v1937 = vpop.f32.mrb[0].mxu0
        %v1938 = vpop.f32.mrb[0].mxu0
        %v1939 = vadd.f32 0.0, %v1938
        %v1940 = vpop.f32.mrb[0].mxu0
        %1941 = vmatprep.mubr.bf16.mxu0 0
        %1942 = vmatmul.mubr.bf16.gmra.mrb[0].mxu0 %v1846
        %v1943 = vpop.f32.mrb[0].mxu0
        %v1944 = vadd.f32 0.0, %v1943
        %v1945 = vpop.f32.mrb[0].mxu0
        %v1946 = vpop.f32.mrb[0].mxu0
        %v1947 = vadd.f32 0.0, %v1946
        %v1948 = vpop.f32.mrb[0].mxu0
        %1949 = vmatprep.mubr.bf16.mxu0 0
        %1950 = vmatmul.mubr.bf16.gmra.mrb[0].mxu0 %v1847
        %v1951 = vpop.f32.mrb[0].mxu0
        %v1952 = vadd.f32 0.0, %v1951
        %v1953 = vpop.f32.mrb[0].mxu0
        %v1954 = vpop.f32.mrb[0].mxu0
        %v1955 = vadd.f32 0.0, %v1954
        %v1956 = vpop.f32.mrb[0].mxu0
        %1957 = vmatprep.mubr.bf16.mxu0 0
        %1958 = vmatmul.mubr.bf16.gmra.mrb[0].mxu0 %v1848
        %v1959 = vpop.f32.mrb[0].mxu0
        %v1960 = vadd.f32 0.0, %v1959
        %v1961 = vpop.f32.mrb[0].mxu0
        %v1962 = vpop.f32.mrb[0].mxu0
        %v1963 = vadd.f32 0.0, %v1962
        %v1964 = vpop.f32.mrb[0].mxu0
        %1965 = vdwg.mxu0
        %v1966 = vadd.f32 %v1818, %v1936
        %v1967 = vadd.f32 %v1819, %v1939
        %v1968 = vadd.f32 %v1820, %v1944
        %v1969 = vadd.f32 %v1821, %v1947
        %v1970 = vadd.f32 %v1822, %v1952
        %v1971 = vadd.f32 %v1823, %v1955
        %v1972 = vadd.f32 %v1824, %v1960
        %v1973 = vadd.f32 %v1825, %v1963
        %s1974 = scalar_lea.vmem [#allocation6], 384
        %v1975 = vld [vmem:[%s1974] sm:$0xf]
        %v1976 = vld [vmem:[%s1974 + $0x4] sm:$0xf]
        %v1977 = vld [vmem:[%s1974 + $0x8] sm:$0xf]
        %v1978 = vld [vmem:[%s1974 + $0xc] sm:$0xf]
        %v1979 = vld [vmem:[%s1974 + $0x10] sm:$0xf]
        %v1980 = vld [vmem:[%s1974 + $0x14] sm:$0xf]
        %v1981 = vld [vmem:[%s1974 + $0x18] sm:$0xf]
        %v1982 = vld [vmem:[%s1974 + $0x1c] sm:$0xf]
        %v1983 = vld [vmem:[%s1974 + $0x20] sm:$0xf]
        %v1984 = vld [vmem:[%s1974 + $0x24] sm:$0xf]
        %v1985 = vld [vmem:[%s1974 + $0x28] sm:$0xf]
        %v1986 = vld [vmem:[%s1974 + $0x2c] sm:$0xf]
        %v1987 = vld [vmem:[%s1974 + $0x30] sm:$0xf]
        %v1988 = vld [vmem:[%s1974 + $0x34] sm:$0xf]
        %v1989 = vld [vmem:[%s1974 + $0x38] sm:$0xf]
        %v1990 = vld [vmem:[%s1974 + $0x3c] sm:$0xf]
        %v1992 = vunpack.c.l.b16 %v1664
        %v1993 = vpack.c.b16 %v1992, %v1844
        %v2011 = vunpack.c.l.b16 %v1975
        %v2012 = vunpack.c.l.b16 %v1976
        %v2013 = vunpack.c.l.b16 %v1977
        %v2014 = vunpack.c.l.b16 %v1978
        %v2015 = vunpack.c.l.b16 %v1979
        %v2016 = vunpack.c.l.b16 %v1980
        %v2017 = vunpack.c.l.b16 %v1981
        %v2018 = vunpack.c.l.b16 %v1982
        %v2019 = vunpack.c.l.b16 %v1983
        %v2020 = vunpack.c.l.b16 %v1984
        %v2021 = vunpack.c.l.b16 %v1985
        %v2022 = vunpack.c.l.b16 %v1986
        %v2023 = vunpack.c.l.b16 %v1987
        %v2024 = vunpack.c.l.b16 %v1988
        %v2025 = vunpack.c.l.b16 %v1989
        %v2026 = vunpack.c.l.b16 %v1990
        %v2027 = vpack.c.b16 %v2012, %v2011
        %v2028 = vpack.c.b16 %v2014, %v2013
        %v2029 = vpack.c.b16 %v2016, %v2015
        %v2030 = vpack.c.b16 %v2018, %v2017
        %v2031 = vpack.c.b16 %v2020, %v2019
        %v2032 = vpack.c.b16 %v2022, %v2021
        %v2033 = vpack.c.b16 %v2024, %v2023
        %v2034 = vpack.c.b16 %v2026, %v2025
        %2043 = vmatprep.subr.bf16.mxu0 0
        %2044 = vmatpush1.bf16.msra.mxu0 %v2027
        %2045 = vmatprep.subr.bf16.mxu0 0
        %2046 = vmatpush1.bf16.msra.mxu0 %v2028
        %2047 = vmatprep.subr.bf16.mxu0 0
        %2048 = vmatpush1.bf16.msra.mxu0 %v2029
        %2049 = vmatprep.subr.bf16.mxu0 0
        %2050 = vmatpush1.bf16.msra.mxu0 %v2030
        %2051 = vmatprep.subr.bf16.mxu0 0
        %2052 = vmatpush1.bf16.msra.mxu0 %v2031
        %2053 = vmatprep.subr.bf16.mxu0 0
        %2054 = vmatpush1.bf16.msra.mxu0 %v2032
        %2055 = vmatprep.subr.bf16.mxu0 0
        %2056 = vmatpush1.bf16.msra.mxu0 %v2033
        %2057 = vmatprep.subr.bf16.mxu0 0
        %2058 = vmatpush1.bf16.msra.mxu0 %v2034
        %2059 = vmatprep.subr.bf16.mxu0 0
        %2060 = vmatpush1.bf16.msra.mxu0 0
        %2061 = vmatprep.subr.bf16.mxu0 0
        %2062 = vmatpush1.bf16.msra.mxu0 0
        %2063 = vmatprep.subr.bf16.mxu0 0
        %2064 = vmatpush1.bf16.msra.mxu0 0
        %2065 = vmatprep.subr.bf16.mxu0 0
        %2066 = vmatpush1.bf16.msra.mxu0 0
        %2067 = vmatprep.subr.bf16.mxu0 0
        %2068 = vmatpush1.bf16.msra.mxu0 0
        %2069 = vmatprep.subr.bf16.mxu0 0
        %2070 = vmatpush1.bf16.msra.mxu0 0
        %2071 = vmatprep.subr.bf16.mxu0 0
        %2072 = vmatpush1.bf16.msra.mxu0 0
        %2073 = vmatprep.subr.bf16.mxu0 0
        %2074 = vmatpush1.bf16.msra.mxu0 0
        %2075 = vmatprep.mubr.bf16.mxu0 0
        %2076 = vmatmul.mubr.bf16.gmra.mrb[0].mxu0 %v1698
        %v2077 = vpop.f32.mrb[0].mxu0
        %v2078 = vadd.f32 0.0, %v2077
        %v2079 = vpop.f32.mrb[0].mxu0
        %v2080 = vpop.f32.mrb[0].mxu0
        %v2081 = vadd.f32 0.0, %v2080
        %v2082 = vpop.f32.mrb[0].mxu0
        %2083 = vmatprep.mubr.bf16.mxu0 0
        %2084 = vmatmul.mubr.bf16.gmra.mrb[0].mxu0 %v1699
        %v2085 = vpop.f32.mrb[0].mxu0
        %v2086 = vadd.f32 0.0, %v2085
        %v2087 = vpop.f32.mrb[0].mxu0
        %v2088 = vpop.f32.mrb[0].mxu0
        %v2089 = vadd.f32 0.0, %v2088
        %v2090 = vpop.f32.mrb[0].mxu0
        %2091 = vmatprep.mubr.bf16.mxu0 0
        %2092 = vmatmul.mubr.bf16.gmra.mrb[0].mxu0 %v1700
        %v2093 = vpop.f32.mrb[0].mxu0
        %v2094 = vadd.f32 0.0, %v2093
        %v2095 = vpop.f32.mrb[0].mxu0
        %v2096 = vpop.f32.mrb[0].mxu0
        %v2097 = vadd.f32 0.0, %v2096
        %v2098 = vpop.f32.mrb[0].mxu0
        %2099 = vmatprep.mubr.bf16.mxu0 0
        %2100 = vmatmul.mubr.bf16.gmra.mrb[0].mxu0 %v1993
        %v2101 = vpop.f32.mrb[0].mxu0
        %v2102 = vadd.f32 0.0, %v2101
        %v2103 = vpop.f32.mrb[0].mxu0
        %v2104 = vpop.f32.mrb[0].mxu0
        %v2105 = vadd.f32 0.0, %v2104
        %v2106 = vpop.f32.mrb[0].mxu0
        %2107 = vdwg.mxu0
        %v2108 = vadd.f32 %v1966, %v2078
        %v2109 = vadd.f32 %v1967, %v2081
        %v2110 = vadd.f32 %v1968, %v2086
        %v2111 = vadd.f32 %v1969, %v2089
        %v2112 = vadd.f32 %v1970, %v2094
        %v2113 = vadd.f32 %v1971, %v2097
        %v2114 = vadd.f32 %v1972, %v2102
        %v2115 = vadd.f32 %v1973, %v2105
        %v2116 = vld [vmem:[#allocation2] sm:$0xf]
        %v2117 = vld [vmem:[#allocation2 + $0x4] sm:$0x1]
        %v2118 = vld [vmem:[#allocation2 + $0x8] sm:$0xf]
        %v2119 = vld [vmem:[#allocation2 + $0xc] sm:$0x1]
        %v2120 = vld [vmem:[#allocation2 + $0x10] sm:$0xf]
        %v2121 = vld [vmem:[#allocation2 + $0x14] sm:$0x1]
        %v2122 = vld [vmem:[#allocation2 + $0x18] sm:$0xf]
        %v2123 = vld [vmem:[#allocation2 + $0x1c] sm:$0x1]
        %v2124 = vld [vmem:[#allocation2 + $0x20] sm:$0xf]
        %v2125 = vld [vmem:[#allocation2 + $0x24] sm:$0x1]
        %v2126 = vld [vmem:[#allocation2 + $0x28] sm:$0xf]
        %v2127 = vld [vmem:[#allocation2 + $0x2c] sm:$0x1]
        %v2128 = vld [vmem:[#allocation2 + $0x30] sm:$0xf]
        %v2129 = vld [vmem:[#allocation2 + $0x34] sm:$0x1]
        %v2130 = vld [vmem:[#allocation2 + $0x38] sm:$0xf]
        %v2131 = vld [vmem:[#allocation2 + $0x3c] sm:$0x1]
        %v2132 = vld [vmem:[#allocation2 + $0x40] sm:$0xf]
        %v2133 = vld [vmem:[#allocation2 + $0x44] sm:$0x1]
        %v2134 = vld [vmem:[#allocation2 + $0x48] sm:$0xf]
        %v2135 = vld [vmem:[#allocation2 + $0x4c] sm:$0x1]
        %v2137 = vshrl.u32 %v2116, 16
        %v2139 = vrot.slane %v2137, 4
        %v2140 = vshll.u32 %v2116, 16
        %v2142 = vrot.slane %v2140, 5
        %v2143 = vor.u32 %v2139, %v2142
        %v2144 = vrot.slane %v2143, 4
        %v2146 = vshll.u32 %v2117, 16
        %v2148 = vrot.slane %v2146, 5
        %v2149 = vsel %vm606, %v2144, %v2148
        %v2151 = vshrl.u32 %v2118, 16
        %v2153 = vrot.slane %v2151, 4
        %v2154 = vshll.u32 %v2118, 16
        %v2156 = vrot.slane %v2154, 5
        %v2157 = vor.u32 %v2153, %v2156
        %v2158 = vrot.slane %v2157, 4
        %v2160 = vshll.u32 %v2119, 16
        %v2162 = vrot.slane %v2160, 5
        %v2163 = vsel %vm606, %v2158, %v2162
        %v2165 = vshrl.u32 %v2120, 16
        %v2167 = vrot.slane %v2165, 4
        %v2168 = vshll.u32 %v2120, 16
        %v2170 = vrot.slane %v2168, 5
        %v2171 = vor.u32 %v2167, %v2170
        %v2172 = vrot.slane %v2171, 4
        %v2174 = vshll.u32 %v2121, 16
        %v2176 = vrot.slane %v2174, 5
        %v2177 = vsel %vm606, %v2172, %v2176
        %v2179 = vshrl.u32 %v2122, 16
        %v2181 = vrot.slane %v2179, 4
        %v2182 = vshll.u32 %v2122, 16
        %v2184 = vrot.slane %v2182, 5
        %v2185 = vor.u32 %v2181, %v2184
        %v2186 = vrot.slane %v2185, 4
        %v2188 = vshll.u32 %v2123, 16
        %v2190 = vrot.slane %v2188, 5
        %v2191 = vsel %vm606, %v2186, %v2190
        %v2193 = vshrl.u32 %v2124, 16
        %v2195 = vrot.slane %v2193, 4
        %v2196 = vshll.u32 %v2124, 16
        %v2198 = vrot.slane %v2196, 5
        %v2199 = vor.u32 %v2195, %v2198
        %v2200 = vrot.slane %v2199, 4
        %v2202 = vshll.u32 %v2125, 16
        %v2204 = vrot.slane %v2202, 5
        %v2205 = vsel %vm606, %v2200, %v2204
        %v2207 = vshrl.u32 %v2126, 16
        %v2209 = vrot.slane %v2207, 4
        %v2210 = vshll.u32 %v2126, 16
        %v2212 = vrot.slane %v2210, 5
        %v2213 = vor.u32 %v2209, %v2212
        %v2214 = vrot.slane %v2213, 4
        %v2216 = vshll.u32 %v2127, 16
        %v2218 = vrot.slane %v2216, 5
        %v2219 = vsel %vm606, %v2214, %v2218
        %v2221 = vshrl.u32 %v2128, 16
        %v2223 = vrot.slane %v2221, 4
        %v2224 = vshll.u32 %v2128, 16
        %v2226 = vrot.slane %v2224, 5
        %v2227 = vor.u32 %v2223, %v2226
        %v2228 = vrot.slane %v2227, 4
        %v2230 = vshll.u32 %v2129, 16
        %v2232 = vrot.slane %v2230, 5
        %v2233 = vsel %vm606, %v2228, %v2232
        %v2235 = vshrl.u32 %v2130, 16
        %v2237 = vrot.slane %v2235, 4
        %v2238 = vshll.u32 %v2130, 16
        %v2240 = vrot.slane %v2238, 5
        %v2241 = vor.u32 %v2237, %v2240
        %v2242 = vrot.slane %v2241, 4
        %v2244 = vshll.u32 %v2131, 16
        %v2246 = vrot.slane %v2244, 5
        %v2247 = vsel %vm606, %v2242, %v2246
        %s2248 = scalar_lea.vmem [#allocation6], 64
        %v2249 = vld [vmem:[%s2248] sm:$0xf]
        %v2250 = vld [vmem:[%s2248 + $0x4] sm:$0xf]
        %v2251 = vld [vmem:[%s2248 + $0x8] sm:$0xf]
        %v2252 = vld [vmem:[%s2248 + $0xc] sm:$0xf]
        %v2253 = vld [vmem:[%s2248 + $0x10] sm:$0xf]
        %v2254 = vld [vmem:[%s2248 + $0x14] sm:$0xf]
        %v2255 = vld [vmem:[%s2248 + $0x18] sm:$0xf]
        %v2256 = vld [vmem:[%s2248 + $0x1c] sm:$0xf]
        %v2257 = vld [vmem:[%s2248 + $0x20] sm:$0xf]
        %v2258 = vld [vmem:[%s2248 + $0x24] sm:$0xf]
        %v2259 = vld [vmem:[%s2248 + $0x28] sm:$0xf]
        %v2260 = vld [vmem:[%s2248 + $0x2c] sm:$0xf]
        %v2261 = vld [vmem:[%s2248 + $0x30] sm:$0xf]
        %v2262 = vld [vmem:[%s2248 + $0x34] sm:$0xf]
        %v2263 = vld [vmem:[%s2248 + $0x38] sm:$0xf]
        %v2264 = vld [vmem:[%s2248 + $0x3c] sm:$0xf]
        %v2265 = vunpack.c.l.b16 %v2149
        %v2266 = vunpack.c.l.b16 %v2163
        %v2267 = vunpack.c.l.b16 %v2177
        %v2268 = vunpack.c.l.b16 %v2191
        %v2269 = vunpack.c.l.b16 %v2205
        %v2270 = vunpack.c.l.b16 %v2219
        %v2271 = vunpack.c.l.b16 %v2233
        %v2272 = vunpack.c.l.b16 %v2247
        %v2273 = vpack.c.b16 %v2266, %v2265
        %v2274 = vpack.c.b16 %v2268, %v2267
        %v2275 = vpack.c.b16 %v2270, %v2269
        %v2276 = vpack.c.b16 %v2272, %v2271
        %v2297 = vunpack.c.l.b16 %v2249
        %v2298 = vunpack.c.l.b16 %v2250
        %v2299 = vunpack.c.l.b16 %v2251
        %v2300 = vunpack.c.l.b16 %v2252
        %v2301 = vunpack.c.l.b16 %v2253
        %v2302 = vunpack.c.l.b16 %v2254
        %v2303 = vunpack.c.l.b16 %v2255
        %v2304 = vunpack.c.l.b16 %v2256
        %v2305 = vunpack.c.l.b16 %v2257
        %v2306 = vunpack.c.l.b16 %v2258
        %v2307 = vunpack.c.l.b16 %v2259
        %v2308 = vunpack.c.l.b16 %v2260
        %v2309 = vunpack.c.l.b16 %v2261
        %v2310 = vunpack.c.l.b16 %v2262
        %v2311 = vunpack.c.l.b16 %v2263
        %v2312 = vunpack.c.l.b16 %v2264
        %v2313 = vpack.c.b16 %v2298, %v2297
        %v2314 = vpack.c.b16 %v2300, %v2299
        %v2315 = vpack.c.b16 %v2302, %v2301
        %v2316 = vpack.c.b16 %v2304, %v2303
        %v2317 = vpack.c.b16 %v2306, %v2305
        %v2318 = vpack.c.b16 %v2308, %v2307
        %v2319 = vpack.c.b16 %v2310, %v2309
        %v2320 = vpack.c.b16 %v2312, %v2311
        %2329 = vmatprep.subr.bf16.mxu0 0
        %2330 = vmatpush1.bf16.msra.mxu0 %v2313
        %2331 = vmatprep.subr.bf16.mxu0 0
        %2332 = vmatpush1.bf16.msra.mxu0 %v2314
        %2333 = vmatprep.subr.bf16.mxu0 0
        %2334 = vmatpush1.bf16.msra.mxu0 %v2315
        %2335 = vmatprep.subr.bf16.mxu0 0
        %2336 = vmatpush1.bf16.msra.mxu0 %v2316
        %2337 = vmatprep.subr.bf16.mxu0 0
        %2338 = vmatpush1.bf16.msra.mxu0 %v2317
        %2339 = vmatprep.subr.bf16.mxu0 0
        %2340 = vmatpush1.bf16.msra.mxu0 %v2318
        %2341 = vmatprep.subr.bf16.mxu0 0
        %2342 = vmatpush1.bf16.msra.mxu0 %v2319
        %2343 = vmatprep.subr.bf16.mxu0 0
        %2344 = vmatpush1.bf16.msra.mxu0 %v2320
        %2345 = vmatprep.subr.bf16.mxu0 0
        %2346 = vmatpush1.bf16.msra.mxu0 0
        %2347 = vmatprep.subr.bf16.mxu0 0
        %2348 = vmatpush1.bf16.msra.mxu0 0
        %2349 = vmatprep.subr.bf16.mxu0 0
        %2350 = vmatpush1.bf16.msra.mxu0 0
        %2351 = vmatprep.subr.bf16.mxu0 0
        %2352 = vmatpush1.bf16.msra.mxu0 0
        %2353 = vmatprep.subr.bf16.mxu0 0
        %2354 = vmatpush1.bf16.msra.mxu0 0
        %2355 = vmatprep.subr.bf16.mxu0 0
        %2356 = vmatpush1.bf16.msra.mxu0 0
        %2357 = vmatprep.subr.bf16.mxu0 0
        %2358 = vmatpush1.bf16.msra.mxu0 0
        %2359 = vmatprep.subr.bf16.mxu0 0
        %2360 = vmatpush1.bf16.msra.mxu0 0
        %2361 = vmatprep.mubr.bf16.mxu0 0
        %2362 = vmatmul.mubr.bf16.gmra.mrb[0].mxu0 %v2273
        %v2363 = vpop.f32.mrb[0].mxu0
        %v2364 = vadd.f32 0.0, %v2363
        %v2365 = vpop.f32.mrb[0].mxu0
        %v2366 = vpop.f32.mrb[0].mxu0
        %v2367 = vadd.f32 0.0, %v2366
        %v2368 = vpop.f32.mrb[0].mxu0
        %2369 = vmatprep.mubr.bf16.mxu0 0
        %2370 = vmatmul.mubr.bf16.gmra.mrb[0].mxu0 %v2274
        %v2371 = vpop.f32.mrb[0].mxu0
        %v2372 = vadd.f32 0.0, %v2371
        %v2373 = vpop.f32.mrb[0].mxu0
        %v2374 = vpop.f32.mrb[0].mxu0
        %v2375 = vadd.f32 0.0, %v2374
        %v2376 = vpop.f32.mrb[0].mxu0
        %2377 = vmatprep.mubr.bf16.mxu0 0
        %2378 = vmatmul.mubr.bf16.gmra.mrb[0].mxu0 %v2275
        %v2379 = vpop.f32.mrb[0].mxu0
        %v2380 = vadd.f32 0.0, %v2379
        %v2381 = vpop.f32.mrb[0].mxu0
        %v2382 = vpop.f32.mrb[0].mxu0
        %v2383 = vadd.f32 0.0, %v2382
        %v2384 = vpop.f32.mrb[0].mxu0
        %2385 = vmatprep.mubr.bf16.mxu0 0
        %2386 = vmatmul.mubr.bf16.gmra.mrb[0].mxu0 %v2276
        %v2387 = vpop.f32.mrb[0].mxu0
        %v2388 = vadd.f32 0.0, %v2387
        %v2389 = vpop.f32.mrb[0].mxu0
        %v2390 = vpop.f32.mrb[0].mxu0
        %v2391 = vadd.f32 0.0, %v2390
        %v2392 = vpop.f32.mrb[0].mxu0
        %2393 = vdwg.mxu0
        %v2394 = vadd.f32 %v2108, %v2364
        %v2395 = vadd.f32 %v2109, %v2367
        %v2396 = vadd.f32 %v2110, %v2372
        %v2397 = vadd.f32 %v2111, %v2375
        %v2398 = vadd.f32 %v2112, %v2380
        %v2399 = vadd.f32 %v2113, %v2383
        %v2400 = vadd.f32 %v2114, %v2388
        %v2401 = vadd.f32 %v2115, %v2391
        %v2403 = vshrl.u32 %v2132, 16
        %v2405 = vrot.slane %v2403, 4
        %v2406 = vshll.u32 %v2132, 16
        %v2408 = vrot.slane %v2406, 5
        %v2409 = vor.u32 %v2405, %v2408
        %v2410 = vrot.slane %v2409, 4
        %v2412 = vshll.u32 %v2133, 16
        %v2414 = vrot.slane %v2412, 5
        %v2415 = vsel %vm606, %v2410, %v2414
        %s2416 = scalar_lea.vmem [#allocation6], 256
        %v2417 = vld [vmem:[%s2416] sm:$0xf]
        %v2418 = vld [vmem:[%s2416 + $0x4] sm:$0xf]
        %v2419 = vld [vmem:[%s2416 + $0x8] sm:$0xf]
        %v2420 = vld [vmem:[%s2416 + $0xc] sm:$0xf]
        %v2421 = vld [vmem:[%s2416 + $0x10] sm:$0xf]
        %v2422 = vld [vmem:[%s2416 + $0x14] sm:$0xf]
        %v2423 = vld [vmem:[%s2416 + $0x18] sm:$0xf]
        %v2424 = vld [vmem:[%s2416 + $0x1c] sm:$0xf]
        %v2425 = vld [vmem:[%s2416 + $0x20] sm:$0xf]
        %v2426 = vld [vmem:[%s2416 + $0x24] sm:$0xf]
        %v2427 = vld [vmem:[%s2416 + $0x28] sm:$0xf]
        %v2428 = vld [vmem:[%s2416 + $0x2c] sm:$0xf]
        %v2429 = vld [vmem:[%s2416 + $0x30] sm:$0xf]
        %v2430 = vld [vmem:[%s2416 + $0x34] sm:$0xf]
        %v2431 = vld [vmem:[%s2416 + $0x38] sm:$0xf]
        %v2432 = vld [vmem:[%s2416 + $0x3c] sm:$0xf]
        %v2433 = vunpack.c.l.b16 %v2415
        %v2434 = vpack.c.b16 %v2267, %v2266
        %v2435 = vpack.c.b16 %v2269, %v2268
        %v2436 = vpack.c.b16 %v2271, %v2270
        %v2437 = vpack.c.b16 %v2433, %v2272
        %v2458 = vunpack.c.l.b16 %v2417
        %v2459 = vunpack.c.l.b16 %v2418
        %v2460 = vunpack.c.l.b16 %v2419
        %v2461 = vunpack.c.l.b16 %v2420
        %v2462 = vunpack.c.l.b16 %v2421
        %v2463 = vunpack.c.l.b16 %v2422
        %v2464 = vunpack.c.l.b16 %v2423
        %v2465 = vunpack.c.l.b16 %v2424
        %v2466 = vunpack.c.l.b16 %v2425
        %v2467 = vunpack.c.l.b16 %v2426
        %v2468 = vunpack.c.l.b16 %v2427
        %v2469 = vunpack.c.l.b16 %v2428
        %v2470 = vunpack.c.l.b16 %v2429
        %v2471 = vunpack.c.l.b16 %v2430
        %v2472 = vunpack.c.l.b16 %v2431
        %v2473 = vunpack.c.l.b16 %v2432
        %v2474 = vpack.c.b16 %v2459, %v2458
        %v2475 = vpack.c.b16 %v2461, %v2460
        %v2476 = vpack.c.b16 %v2463, %v2462
        %v2477 = vpack.c.b16 %v2465, %v2464
        %v2478 = vpack.c.b16 %v2467, %v2466
        %v2479 = vpack.c.b16 %v2469, %v2468
        %v2480 = vpack.c.b16 %v2471, %v2470
        %v2481 = vpack.c.b16 %v2473, %v2472
        %2490 = vmatprep.subr.bf16.mxu0 0
        %2491 = vmatpush1.bf16.msra.mxu0 %v2474
        %2492 = vmatprep.subr.bf16.mxu0 0
        %2493 = vmatpush1.bf16.msra.mxu0 %v2475
        %2494 = vmatprep.subr.bf16.mxu0 0
        %2495 = vmatpush1.bf16.msra.mxu0 %v2476
        %2496 = vmatprep.subr.bf16.mxu0 0
        %2497 = vmatpush1.bf16.msra.mxu0 %v2477
        %2498 = vmatprep.subr.bf16.mxu0 0
        %2499 = vmatpush1.bf16.msra.mxu0 %v2478
        %2500 = vmatprep.subr.bf16.mxu0 0
        %2501 = vmatpush1.bf16.msra.mxu0 %v2479
        %2502 = vmatprep.subr.bf16.mxu0 0
        %2503 = vmatpush1.bf16.msra.mxu0 %v2480
        %2504 = vmatprep.subr.bf16.mxu0 0
        %2505 = vmatpush1.bf16.msra.mxu0 %v2481
        %2506 = vmatprep.subr.bf16.mxu0 0
        %2507 = vmatpush1.bf16.msra.mxu0 0
        %2508 = vmatprep.subr.bf16.mxu0 0
        %2509 = vmatpush1.bf16.msra.mxu0 0
        %2510 = vmatprep.subr.bf16.mxu0 0
        %2511 = vmatpush1.bf16.msra.mxu0 0
        %2512 = vmatprep.subr.bf16.mxu0 0
        %2513 = vmatpush1.bf16.msra.mxu0 0
        %2514 = vmatprep.subr.bf16.mxu0 0
        %2515 = vmatpush1.bf16.msra.mxu0 0
        %2516 = vmatprep.subr.bf16.mxu0 0
        %2517 = vmatpush1.bf16.msra.mxu0 0
        %2518 = vmatprep.subr.bf16.mxu0 0
        %2519 = vmatpush1.bf16.msra.mxu0 0
        %2520 = vmatprep.subr.bf16.mxu0 0
        %2521 = vmatpush1.bf16.msra.mxu0 0
        %2522 = vmatprep.mubr.bf16.mxu0 0
        %2523 = vmatmul.mubr.bf16.gmra.mrb[0].mxu0 %v2434
        %v2524 = vpop.f32.mrb[0].mxu0
        %v2525 = vadd.f32 0.0, %v2524
        %v2526 = vpop.f32.mrb[0].mxu0
        %v2527 = vpop.f32.mrb[0].mxu0
        %v2528 = vadd.f32 0.0, %v2527
        %v2529 = vpop.f32.mrb[0].mxu0
        %2530 = vmatprep.mubr.bf16.mxu0 0
        %2531 = vmatmul.mubr.bf16.gmra.mrb[0].mxu0 %v2435
        %v2532 = vpop.f32.mrb[0].mxu0
        %v2533 = vadd.f32 0.0, %v2532
        %v2534 = vpop.f32.mrb[0].mxu0
        %v2535 = vpop.f32.mrb[0].mxu0
        %v2536 = vadd.f32 0.0, %v2535
        %v2537 = vpop.f32.mrb[0].mxu0
        %2538 = vmatprep.mubr.bf16.mxu0 0
        %2539 = vmatmul.mubr.bf16.gmra.mrb[0].mxu0 %v2436
        %v2540 = vpop.f32.mrb[0].mxu0
        %v2541 = vadd.f32 0.0, %v2540
        %v2542 = vpop.f32.mrb[0].mxu0
        %v2543 = vpop.f32.mrb[0].mxu0
        %v2544 = vadd.f32 0.0, %v2543
        %v2545 = vpop.f32.mrb[0].mxu0
        %2546 = vmatprep.mubr.bf16.mxu0 0
        %2547 = vmatmul.mubr.bf16.gmra.mrb[0].mxu0 %v2437
        %v2548 = vpop.f32.mrb[0].mxu0
        %v2549 = vadd.f32 0.0, %v2548
        %v2550 = vpop.f32.mrb[0].mxu0
        %v2551 = vpop.f32.mrb[0].mxu0
        %v2552 = vadd.f32 0.0, %v2551
        %v2553 = vpop.f32.mrb[0].mxu0
        %2554 = vdwg.mxu0
        %v2555 = vadd.f32 %v2394, %v2525
        %v2556 = vadd.f32 %v2395, %v2528
        %v2557 = vadd.f32 %v2396, %v2533
        %v2558 = vadd.f32 %v2397, %v2536
        %v2559 = vadd.f32 %v2398, %v2541
        %v2560 = vadd.f32 %v2399, %v2544
        %v2561 = vadd.f32 %v2400, %v2549
        %v2562 = vadd.f32 %v2401, %v2552
        %v2564 = vshrl.u32 %v2134, 16
        %v2566 = vrot.slane %v2564, 4
        %v2567 = vshll.u32 %v2134, 16
        %v2569 = vrot.slane %v2567, 5
        %v2570 = vor.u32 %v2566, %v2569
        %v2571 = vrot.slane %v2570, 4
        %v2573 = vshll.u32 %v2135, 16
        %v2575 = vrot.slane %v2573, 5
        %v2576 = vsel %vm606, %v2571, %v2575
        %s2577 = scalar_lea.vmem [#allocation6], 448
        %v2578 = vld [vmem:[%s2577] sm:$0xf]
        %v2579 = vld [vmem:[%s2577 + $0x4] sm:$0xf]
        %v2580 = vld [vmem:[%s2577 + $0x8] sm:$0xf]
        %v2581 = vld [vmem:[%s2577 + $0xc] sm:$0xf]
        %v2582 = vld [vmem:[%s2577 + $0x10] sm:$0xf]
        %v2583 = vld [vmem:[%s2577 + $0x14] sm:$0xf]
        %v2584 = vld [vmem:[%s2577 + $0x18] sm:$0xf]
        %v2585 = vld [vmem:[%s2577 + $0x1c] sm:$0xf]
        %v2586 = vld [vmem:[%s2577 + $0x20] sm:$0xf]
        %v2587 = vld [vmem:[%s2577 + $0x24] sm:$0xf]
        %v2588 = vld [vmem:[%s2577 + $0x28] sm:$0xf]
        %v2589 = vld [vmem:[%s2577 + $0x2c] sm:$0xf]
        %v2590 = vld [vmem:[%s2577 + $0x30] sm:$0xf]
        %v2591 = vld [vmem:[%s2577 + $0x34] sm:$0xf]
        %v2592 = vld [vmem:[%s2577 + $0x38] sm:$0xf]
        %v2593 = vld [vmem:[%s2577 + $0x3c] sm:$0xf]
        %v2594 = vunpack.c.l.b16 %v2576
        %v2595 = vpack.c.b16 %v2594, %v2433
        %v2613 = vunpack.c.l.b16 %v2578
        %v2614 = vunpack.c.l.b16 %v2579
        %v2615 = vunpack.c.l.b16 %v2580
        %v2616 = vunpack.c.l.b16 %v2581
        %v2617 = vunpack.c.l.b16 %v2582
        %v2618 = vunpack.c.l.b16 %v2583
        %v2619 = vunpack.c.l.b16 %v2584
        %v2620 = vunpack.c.l.b16 %v2585
        %v2621 = vunpack.c.l.b16 %v2586
        %v2622 = vunpack.c.l.b16 %v2587
        %v2623 = vunpack.c.l.b16 %v2588
        %v2624 = vunpack.c.l.b16 %v2589
        %v2625 = vunpack.c.l.b16 %v2590
        %v2626 = vunpack.c.l.b16 %v2591
        %v2627 = vunpack.c.l.b16 %v2592
        %v2628 = vunpack.c.l.b16 %v2593
        %v2629 = vpack.c.b16 %v2614, %v2613
        %v2630 = vpack.c.b16 %v2616, %v2615
        %v2631 = vpack.c.b16 %v2618, %v2617
        %v2632 = vpack.c.b16 %v2620, %v2619
        %v2633 = vpack.c.b16 %v2622, %v2621
        %v2634 = vpack.c.b16 %v2624, %v2623
        %v2635 = vpack.c.b16 %v2626, %v2625
        %v2636 = vpack.c.b16 %v2628, %v2627
        %2645 = vmatprep.subr.bf16.mxu0 0
        %2646 = vmatpush1.bf16.msra.mxu0 %v2629
        %2647 = vmatprep.subr.bf16.mxu0 0
        %2648 = vmatpush1.bf16.msra.mxu0 %v2630
        %2649 = vmatprep.subr.bf16.mxu0 0
        %2650 = vmatpush1.bf16.msra.mxu0 %v2631
        %2651 = vmatprep.subr.bf16.mxu0 0
        %2652 = vmatpush1.bf16.msra.mxu0 %v2632
        %2653 = vmatprep.subr.bf16.mxu0 0
        %2654 = vmatpush1.bf16.msra.mxu0 %v2633
        %2655 = vmatprep.subr.bf16.mxu0 0
        %2656 = vmatpush1.bf16.msra.mxu0 %v2634
        %2657 = vmatprep.subr.bf16.mxu0 0
        %2658 = vmatpush1.bf16.msra.mxu0 %v2635
        %2659 = vmatprep.subr.bf16.mxu0 0
        %2660 = vmatpush1.bf16.msra.mxu0 %v2636
        %2661 = vmatprep.subr.bf16.mxu0 0
        %2662 = vmatpush1.bf16.msra.mxu0 0
        %2663 = vmatprep.subr.bf16.mxu0 0
        %2664 = vmatpush1.bf16.msra.mxu0 0
        %2665 = vmatprep.subr.bf16.mxu0 0
        %2666 = vmatpush1.bf16.msra.mxu0 0
        %2667 = vmatprep.subr.bf16.mxu0 0
        %2668 = vmatpush1.bf16.msra.mxu0 0
        %2669 = vmatprep.subr.bf16.mxu0 0
        %2670 = vmatpush1.bf16.msra.mxu0 0
        %2671 = vmatprep.subr.bf16.mxu0 0
        %2672 = vmatpush1.bf16.msra.mxu0 0
        %2673 = vmatprep.subr.bf16.mxu0 0
        %2674 = vmatpush1.bf16.msra.mxu0 0
        %2675 = vmatprep.subr.bf16.mxu0 0
        %2676 = vmatpush1.bf16.msra.mxu0 0
        %2677 = vmatprep.mubr.bf16.mxu0 0
        %2678 = vmatmul.mubr.bf16.gmra.mrb[0].mxu0 %v2274
        %v2679 = vpop.f32.mrb[0].mxu0
        %v2680 = vadd.f32 0.0, %v2679
        %v2681 = vpop.f32.mrb[0].mxu0
        %v2682 = vpop.f32.mrb[0].mxu0
        %v2683 = vadd.f32 0.0, %v2682
        %v2684 = vpop.f32.mrb[0].mxu0
        %2685 = vmatprep.mubr.bf16.mxu0 0
        %2686 = vmatmul.mubr.bf16.gmra.mrb[0].mxu0 %v2275
        %v2687 = vpop.f32.mrb[0].mxu0
        %v2688 = vadd.f32 0.0, %v2687
        %v2689 = vpop.f32.mrb[0].mxu0
        %v2690 = vpop.f32.mrb[0].mxu0
        %v2691 = vadd.f32 0.0, %v2690
        %v2692 = vpop.f32.mrb[0].mxu0
        %2693 = vmatprep.mubr.bf16.mxu0 0
        %2694 = vmatmul.mubr.bf16.gmra.mrb[0].mxu0 %v2276
        %v2695 = vpop.f32.mrb[0].mxu0
        %v2696 = vadd.f32 0.0, %v2695
        %v2697 = vpop.f32.mrb[0].mxu0
        %v2698 = vpop.f32.mrb[0].mxu0
        %v2699 = vadd.f32 0.0, %v2698
        %v2700 = vpop.f32.mrb[0].mxu0
        %2701 = vmatprep.mubr.bf16.mxu0 0
        %2702 = vmatmul.mubr.bf16.gmra.mrb[0].mxu0 %v2595
        %v2703 = vpop.f32.mrb[0].mxu0
        %v2704 = vadd.f32 0.0, %v2703
        %v2705 = vpop.f32.mrb[0].mxu0
        %v2706 = vpop.f32.mrb[0].mxu0
        %v2707 = vadd.f32 0.0, %v2706
        %v2708 = vpop.f32.mrb[0].mxu0
        %2709 = vdwg.mxu0
        %v2710 = vadd.f32 %v2555, %v2680
        %v2711 = vadd.f32 %v2556, %v2683
        %v2712 = vadd.f32 %v2557, %v2688
        %v2713 = vadd.f32 %v2558, %v2691
        %v2714 = vadd.f32 %v2559, %v2696
        %v2715 = vadd.f32 %v2560, %v2699
        %v2716 = vadd.f32 %v2561, %v2704
        %v2717 = vadd.f32 %v2562, %v2707
        %v2718 = vld [vmem:[#allocation2] sm:$0xe]
        %v2719 = vld [vmem:[#allocation2 + $0x8] sm:$0xe]
        %v2720 = vld [vmem:[#allocation2 + $0x10] sm:$0xe]
        %v2721 = vld [vmem:[#allocation2 + $0x18] sm:$0xe]
        %v2722 = vld [vmem:[#allocation2 + $0x20] sm:$0xe]
        %v2723 = vld [vmem:[#allocation2 + $0x28] sm:$0xe]
        %v2724 = vld [vmem:[#allocation2 + $0x30] sm:$0xe]
        %v2725 = vld [vmem:[#allocation2 + $0x38] sm:$0xe]
        %v2726 = vld [vmem:[#allocation2 + $0x40] sm:$0xe]
        %v2727 = vld [vmem:[#allocation2 + $0x48] sm:$0xe]
        %vm2744 = vcmask 1042432
        %vm2745 = vcmask 1046532
        %vm2746 = vmor %vm2744, %vm2745
        %v2747 = vrot.slane %v2718, 5
        %v2748 = vrot.slane %v2747, 4
        %v2749 = vrot.slane %v2117, 5
        %v2750 = vsel %vm2746, %v2748, %v2749
        %v2751 = vrot.slane %v2719, 5
        %v2752 = vrot.slane %v2751, 4
        %v2753 = vrot.slane %v2119, 5
        %v2754 = vsel %vm2746, %v2752, %v2753
        %v2755 = vrot.slane %v2720, 5
        %v2756 = vrot.slane %v2755, 4
        %v2757 = vrot.slane %v2121, 5
        %v2758 = vsel %vm2746, %v2756, %v2757
        %v2759 = vrot.slane %v2721, 5
        %v2760 = vrot.slane %v2759, 4
        %v2761 = vrot.slane %v2123, 5
        %v2762 = vsel %vm2746, %v2760, %v2761
        %v2763 = vrot.slane %v2722, 5
        %v2764 = vrot.slane %v2763, 4
        %v2765 = vrot.slane %v2125, 5
        %v2766 = vsel %vm2746, %v2764, %v2765
        %v2767 = vrot.slane %v2723, 5
        %v2768 = vrot.slane %v2767, 4
        %v2769 = vrot.slane %v2127, 5
        %v2770 = vsel %vm2746, %v2768, %v2769
        %v2771 = vrot.slane %v2724, 5
        %v2772 = vrot.slane %v2771, 4
        %v2773 = vrot.slane %v2129, 5
        %v2774 = vsel %vm2746, %v2772, %v2773
        %v2775 = vrot.slane %v2725, 5
        %v2776 = vrot.slane %v2775, 4
        %v2777 = vrot.slane %v2131, 5
        %v2778 = vsel %vm2746, %v2776, %v2777
        %s2779 = scalar_lea.vmem [#allocation6], 128
        %v2780 = vld [vmem:[%s2779] sm:$0xf]
        %v2781 = vld [vmem:[%s2779 + $0x4] sm:$0xf]
        %v2782 = vld [vmem:[%s2779 + $0x8] sm:$0xf]
        %v2783 = vld [vmem:[%s2779 + $0xc] sm:$0xf]
        %v2784 = vld [vmem:[%s2779 + $0x10] sm:$0xf]
        %v2785 = vld [vmem:[%s2779 + $0x14] sm:$0xf]
        %v2786 = vld [vmem:[%s2779 + $0x18] sm:$0xf]
        %v2787 = vld [vmem:[%s2779 + $0x1c] sm:$0xf]
        %v2788 = vld [vmem:[%s2779 + $0x20] sm:$0xf]
        %v2789 = vld [vmem:[%s2779 + $0x24] sm:$0xf]
        %v2790 = vld [vmem:[%s2779 + $0x28] sm:$0xf]
        %v2791 = vld [vmem:[%s2779 + $0x2c] sm:$0xf]
        %v2792 = vld [vmem:[%s2779 + $0x30] sm:$0xf]
        %v2793 = vld [vmem:[%s2779 + $0x34] sm:$0xf]
        %v2794 = vld [vmem:[%s2779 + $0x38] sm:$0xf]
        %v2795 = vld [vmem:[%s2779 + $0x3c] sm:$0xf]
        %v2796 = vunpack.c.l.b16 %v2750
        %v2797 = vunpack.c.l.b16 %v2754
        %v2798 = vunpack.c.l.b16 %v2758
        %v2799 = vunpack.c.l.b16 %v2762
        %v2800 = vunpack.c.l.b16 %v2766
        %v2801 = vunpack.c.l.b16 %v2770
        %v2802 = vunpack.c.l.b16 %v2774
        %v2803 = vunpack.c.l.b16 %v2778
        %v2804 = vpack.c.b16 %v2797, %v2796
        %v2805 = vpack.c.b16 %v2799, %v2798
        %v2806 = vpack.c.b16 %v2801, %v2800
        %v2807 = vpack.c.b16 %v2803, %v2802
        %v2828 = vunpack.c.l.b16 %v2780
        %v2829 = vunpack.c.l.b16 %v2781
        %v2830 = vunpack.c.l.b16 %v2782
        %v2831 = vunpack.c.l.b16 %v2783
        %v2832 = vunpack.c.l.b16 %v2784
        %v2833 = vunpack.c.l.b16 %v2785
        %v2834 = vunpack.c.l.b16 %v2786
        %v2835 = vunpack.c.l.b16 %v2787
        %v2836 = vunpack.c.l.b16 %v2788
        %v2837 = vunpack.c.l.b16 %v2789
        %v2838 = vunpack.c.l.b16 %v2790
        %v2839 = vunpack.c.l.b16 %v2791
        %v2840 = vunpack.c.l.b16 %v2792
        %v2841 = vunpack.c.l.b16 %v2793
        %v2842 = vunpack.c.l.b16 %v2794
        %v2843 = vunpack.c.l.b16 %v2795
        %v2844 = vpack.c.b16 %v2829, %v2828
        %v2845 = vpack.c.b16 %v2831, %v2830
        %v2846 = vpack.c.b16 %v2833, %v2832
        %v2847 = vpack.c.b16 %v2835, %v2834
        %v2848 = vpack.c.b16 %v2837, %v2836
        %v2849 = vpack.c.b16 %v2839, %v2838
        %v2850 = vpack.c.b16 %v2841, %v2840
        %v2851 = vpack.c.b16 %v2843, %v2842
        %2860 = vmatprep.subr.bf16.mxu0 0
        %2861 = vmatpush1.bf16.msra.mxu0 %v2844
        %2862 = vmatprep.subr.bf16.mxu0 0
        %2863 = vmatpush1.bf16.msra.mxu0 %v2845
        %2864 = vmatprep.subr.bf16.mxu0 0
        %2865 = vmatpush1.bf16.msra.mxu0 %v2846
        %2866 = vmatprep.subr.bf16.mxu0 0
        %2867 = vmatpush1.bf16.msra.mxu0 %v2847
        %2868 = vmatprep.subr.bf16.mxu0 0
        %2869 = vmatpush1.bf16.msra.mxu0 %v2848
        %2870 = vmatprep.subr.bf16.mxu0 0
        %2871 = vmatpush1.bf16.msra.mxu0 %v2849
        %2872 = vmatprep.subr.bf16.mxu0 0
        %2873 = vmatpush1.bf16.msra.mxu0 %v2850
        %2874 = vmatprep.subr.bf16.mxu0 0
        %2875 = vmatpush1.bf16.msra.mxu0 %v2851
        %2876 = vmatprep.subr.bf16.mxu0 0
        %2877 = vmatpush1.bf16.msra.mxu0 0
        %2878 = vmatprep.subr.bf16.mxu0 0
        %2879 = vmatpush1.bf16.msra.mxu0 0
        %2880 = vmatprep.subr.bf16.mxu0 0
        %2881 = vmatpush1.bf16.msra.mxu0 0
        %2882 = vmatprep.subr.bf16.mxu0 0
        %2883 = vmatpush1.bf16.msra.mxu0 0
        %2884 = vmatprep.subr.bf16.mxu0 0
        %2885 = vmatpush1.bf16.msra.mxu0 0
        %2886 = vmatprep.subr.bf16.mxu0 0
        %2887 = vmatpush1.bf16.msra.mxu0 0
        %2888 = vmatprep.subr.bf16.mxu0 0
        %2889 = vmatpush1.bf16.msra.mxu0 0
        %2890 = vmatprep.subr.bf16.mxu0 0
        %2891 = vmatpush1.bf16.msra.mxu0 0
        %2892 = vmatprep.mubr.bf16.mxu0 0
        %2893 = vmatmul.mubr.bf16.gmra.mrb[0].mxu0 %v2804
        %v2894 = vpop.f32.mrb[0].mxu0
        %v2895 = vadd.f32 0.0, %v2894
        %v2896 = vpop.f32.mrb[0].mxu0
        %v2897 = vpop.f32.mrb[0].mxu0
        %v2898 = vadd.f32 0.0, %v2897
        %v2899 = vpop.f32.mrb[0].mxu0
        %2900 = vmatprep.mubr.bf16.mxu0 0
        %2901 = vmatmul.mubr.bf16.gmra.mrb[0].mxu0 %v2805
        %v2902 = vpop.f32.mrb[0].mxu0
        %v2903 = vadd.f32 0.0, %v2902
        %v2904 = vpop.f32.mrb[0].mxu0
        %v2905 = vpop.f32.mrb[0].mxu0
        %v2906 = vadd.f32 0.0, %v2905
        %v2907 = vpop.f32.mrb[0].mxu0
        %2908 = vmatprep.mubr.bf16.mxu0 0
        %2909 = vmatmul.mubr.bf16.gmra.mrb[0].mxu0 %v2806
        %v2910 = vpop.f32.mrb[0].mxu0
        %v2911 = vadd.f32 0.0, %v2910
        %v2912 = vpop.f32.mrb[0].mxu0
        %v2913 = vpop.f32.mrb[0].mxu0
        %v2914 = vadd.f32 0.0, %v2913
        %v2915 = vpop.f32.mrb[0].mxu0
        %2916 = vmatprep.mubr.bf16.mxu0 0
        %2917 = vmatmul.mubr.bf16.gmra.mrb[0].mxu0 %v2807
        %v2918 = vpop.f32.mrb[0].mxu0
        %v2919 = vadd.f32 0.0, %v2918
        %v2920 = vpop.f32.mrb[0].mxu0
        %v2921 = vpop.f32.mrb[0].mxu0
        %v2922 = vadd.f32 0.0, %v2921
        %v2923 = vpop.f32.mrb[0].mxu0
        %2924 = vdwg.mxu0
        %v2925 = vadd.f32 %v2710, %v2895
        %v2926 = vadd.f32 %v2711, %v2898
        %v2927 = vadd.f32 %v2712, %v2903
        %v2928 = vadd.f32 %v2713, %v2906
        %v2929 = vadd.f32 %v2714, %v2911
        %v2930 = vadd.f32 %v2715, %v2914
        %v2931 = vadd.f32 %v2716, %v2919
        %v2932 = vadd.f32 %v2717, %v2922
        %v2935 = vrot.slane %v2726, 5
        %v2936 = vrot.slane %v2935, 4
        %v2937 = vrot.slane %v2133, 5
        %v2938 = vsel %vm2746, %v2936, %v2937
        %s2939 = scalar_lea.vmem [#allocation6], 320
        %v2940 = vld [vmem:[%s2939] sm:$0xf]
        %v2941 = vld [vmem:[%s2939 + $0x4] sm:$0xf]
        %v2942 = vld [vmem:[%s2939 + $0x8] sm:$0xf]
        %v2943 = vld [vmem:[%s2939 + $0xc] sm:$0xf]
        %v2944 = vld [vmem:[%s2939 + $0x10] sm:$0xf]
        %v2945 = vld [vmem:[%s2939 + $0x14] sm:$0xf]
        %v2946 = vld [vmem:[%s2939 + $0x18] sm:$0xf]
        %v2947 = vld [vmem:[%s2939 + $0x1c] sm:$0xf]
        %v2948 = vld [vmem:[%s2939 + $0x20] sm:$0xf]
        %v2949 = vld [vmem:[%s2939 + $0x24] sm:$0xf]
        %v2950 = vld [vmem:[%s2939 + $0x28] sm:$0xf]
        %v2951 = vld [vmem:[%s2939 + $0x2c] sm:$0xf]
        %v2952 = vld [vmem:[%s2939 + $0x30] sm:$0xf]
        %v2953 = vld [vmem:[%s2939 + $0x34] sm:$0xf]
        %v2954 = vld [vmem:[%s2939 + $0x38] sm:$0xf]
        %v2955 = vld [vmem:[%s2939 + $0x3c] sm:$0xf]
        %v2956 = vunpack.c.l.b16 %v2938
        %v2957 = vpack.c.b16 %v2798, %v2797
        %v2958 = vpack.c.b16 %v2800, %v2799
        %v2959 = vpack.c.b16 %v2802, %v2801
        %v2960 = vpack.c.b16 %v2956, %v2803
        %v2981 = vunpack.c.l.b16 %v2940
        %v2982 = vunpack.c.l.b16 %v2941
        %v2983 = vunpack.c.l.b16 %v2942
        %v2984 = vunpack.c.l.b16 %v2943
        %v2985 = vunpack.c.l.b16 %v2944
        %v2986 = vunpack.c.l.b16 %v2945
        %v2987 = vunpack.c.l.b16 %v2946
        %v2988 = vunpack.c.l.b16 %v2947
        %v2989 = vunpack.c.l.b16 %v2948
        %v2990 = vunpack.c.l.b16 %v2949
        %v2991 = vunpack.c.l.b16 %v2950
        %v2992 = vunpack.c.l.b16 %v2951
        %v2993 = vunpack.c.l.b16 %v2952
        %v2994 = vunpack.c.l.b16 %v2953
        %v2995 = vunpack.c.l.b16 %v2954
        %v2996 = vunpack.c.l.b16 %v2955
        %v2997 = vpack.c.b16 %v2982, %v2981
        %v2998 = vpack.c.b16 %v2984, %v2983
        %v2999 = vpack.c.b16 %v2986, %v2985
        %v3000 = vpack.c.b16 %v2988, %v2987
        %v3001 = vpack.c.b16 %v2990, %v2989
        %v3002 = vpack.c.b16 %v2992, %v2991
        %v3003 = vpack.c.b16 %v2994, %v2993
        %v3004 = vpack.c.b16 %v2996, %v2995
        %3013 = vmatprep.subr.bf16.mxu0 0
        %3014 = vmatpush1.bf16.msra.mxu0 %v2997
        %3015 = vmatprep.subr.bf16.mxu0 0
        %3016 = vmatpush1.bf16.msra.mxu0 %v2998
        %3017 = vmatprep.subr.bf16.mxu0 0
        %3018 = vmatpush1.bf16.msra.mxu0 %v2999
        %3019 = vmatprep.subr.bf16.mxu0 0
        %3020 = vmatpush1.bf16.msra.mxu0 %v3000
        %3021 = vmatprep.subr.bf16.mxu0 0
        %3022 = vmatpush1.bf16.msra.mxu0 %v3001
        %3023 = vmatprep.subr.bf16.mxu0 0
        %3024 = vmatpush1.bf16.msra.mxu0 %v3002
        %3025 = vmatprep.subr.bf16.mxu0 0
        %3026 = vmatpush1.bf16.msra.mxu0 %v3003
        %3027 = vmatprep.subr.bf16.mxu0 0
        %3028 = vmatpush1.bf16.msra.mxu0 %v3004
        %3029 = vmatprep.subr.bf16.mxu0 0
        %3030 = vmatpush1.bf16.msra.mxu0 0
        %3031 = vmatprep.subr.bf16.mxu0 0
        %3032 = vmatpush1.bf16.msra.mxu0 0
        %3033 = vmatprep.subr.bf16.mxu0 0
        %3034 = vmatpush1.bf16.msra.mxu0 0
        %3035 = vmatprep.subr.bf16.mxu0 0
        %3036 = vmatpush1.bf16.msra.mxu0 0
        %3037 = vmatprep.subr.bf16.mxu0 0
        %3038 = vmatpush1.bf16.msra.mxu0 0
        %3039 = vmatprep.subr.bf16.mxu0 0
        %3040 = vmatpush1.bf16.msra.mxu0 0
        %3041 = vmatprep.subr.bf16.mxu0 0
        %3042 = vmatpush1.bf16.msra.mxu0 0
        %3043 = vmatprep.subr.bf16.mxu0 0
        %3044 = vmatpush1.bf16.msra.mxu0 0
        %3045 = vmatprep.mubr.bf16.mxu0 0
        %3046 = vmatmul.mubr.bf16.gmra.mrb[0].mxu0 %v2957
        %v3047 = vpop.f32.mrb[0].mxu0
        %v3048 = vadd.f32 0.0, %v3047
        %v3049 = vpop.f32.mrb[0].mxu0
        %v3050 = vpop.f32.mrb[0].mxu0
        %v3051 = vadd.f32 0.0, %v3050
        %v3052 = vpop.f32.mrb[0].mxu0
        %3053 = vmatprep.mubr.bf16.mxu0 0
        %3054 = vmatmul.mubr.bf16.gmra.mrb[0].mxu0 %v2958
        %v3055 = vpop.f32.mrb[0].mxu0
        %v3056 = vadd.f32 0.0, %v3055
        %v3057 = vpop.f32.mrb[0].mxu0
        %v3058 = vpop.f32.mrb[0].mxu0
        %v3059 = vadd.f32 0.0, %v3058
        %v3060 = vpop.f32.mrb[0].mxu0
        %3061 = vmatprep.mubr.bf16.mxu0 0
        %3062 = vmatmul.mubr.bf16.gmra.mrb[0].mxu0 %v2959
        %v3063 = vpop.f32.mrb[0].mxu0
        %v3064 = vadd.f32 0.0, %v3063
        %v3065 = vpop.f32.mrb[0].mxu0
        %v3066 = vpop.f32.mrb[0].mxu0
        %v3067 = vadd.f32 0.0, %v3066
        %v3068 = vpop.f32.mrb[0].mxu0
        %3069 = vmatprep.mubr.bf16.mxu0 0
        %3070 = vmatmul.mubr.bf16.gmra.mrb[0].mxu0 %v2960
        %v3071 = vpop.f32.mrb[0].mxu0
        %v3072 = vadd.f32 0.0, %v3071
        %v3073 = vpop.f32.mrb[0].mxu0
        %v3074 = vpop.f32.mrb[0].mxu0
        %v3075 = vadd.f32 0.0, %v3074
        %v3076 = vpop.f32.mrb[0].mxu0
        %3077 = vdwg.mxu0
        %v3078 = vadd.f32 %v2925, %v3048
        %v3079 = vadd.f32 %v2926, %v3051
        %v3080 = vadd.f32 %v2927, %v3056
        %v3081 = vadd.f32 %v2928, %v3059
        %v3082 = vadd.f32 %v2929, %v3064
        %v3083 = vadd.f32 %v2930, %v3067
        %v3084 = vadd.f32 %v2931, %v3072
        %v3085 = vadd.f32 %v2932, %v3075
        %v3088 = vrot.slane %v2727, 5
        %v3089 = vrot.slane %v3088, 4
        %v3090 = vrot.slane %v2135, 5
        %v3091 = vsel %vm2746, %v3089, %v3090
        %s3092 = scalar_lea.vmem [#allocation6], 512
        %v3093 = vld [vmem:[%s3092] sm:$0xf]
        %v3094 = vld [vmem:[%s3092 + $0x4] sm:$0xf]
        %v3095 = vld [vmem:[%s3092 + $0x8] sm:$0xf]
        %v3096 = vld [vmem:[%s3092 + $0xc] sm:$0xf]
        %v3097 = vld [vmem:[%s3092 + $0x10] sm:$0xf]
        %v3098 = vld [vmem:[%s3092 + $0x14] sm:$0xf]
        %v3099 = vld [vmem:[%s3092 + $0x18] sm:$0xf]
        %v3100 = vld [vmem:[%s3092 + $0x1c] sm:$0xf]
        %v3101 = vld [vmem:[%s3092 + $0x20] sm:$0xf]
        %v3102 = vld [vmem:[%s3092 + $0x24] sm:$0xf]
        %v3103 = vld [vmem:[%s3092 + $0x28] sm:$0xf]
        %v3104 = vld [vmem:[%s3092 + $0x2c] sm:$0xf]
        %v3105 = vld [vmem:[%s3092 + $0x30] sm:$0xf]
        %v3106 = vld [vmem:[%s3092 + $0x34] sm:$0xf]
        %v3107 = vld [vmem:[%s3092 + $0x38] sm:$0xf]
        %v3108 = vld [vmem:[%s3092 + $0x3c] sm:$0xf]
        %v3109 = vunpack.c.l.b16 %v3091
        %v3110 = vpack.c.b16 %v3109, %v2956
        %v3128 = vunpack.c.l.b16 %v3093
        %v3129 = vunpack.c.l.b16 %v3094
        %v3130 = vunpack.c.l.b16 %v3095
        %v3131 = vunpack.c.l.b16 %v3096
        %v3132 = vunpack.c.l.b16 %v3097
        %v3133 = vunpack.c.l.b16 %v3098
        %v3134 = vunpack.c.l.b16 %v3099
        %v3135 = vunpack.c.l.b16 %v3100
        %v3136 = vunpack.c.l.b16 %v3101
        %v3137 = vunpack.c.l.b16 %v3102
        %v3138 = vunpack.c.l.b16 %v3103
        %v3139 = vunpack.c.l.b16 %v3104
        %v3140 = vunpack.c.l.b16 %v3105
        %v3141 = vunpack.c.l.b16 %v3106
        %v3142 = vunpack.c.l.b16 %v3107
        %v3143 = vunpack.c.l.b16 %v3108
        %v3144 = vpack.c.b16 %v3129, %v3128
        %v3145 = vpack.c.b16 %v3131, %v3130
        %v3146 = vpack.c.b16 %v3133, %v3132
        %v3147 = vpack.c.b16 %v3135, %v3134
        %v3148 = vpack.c.b16 %v3137, %v3136
        %v3149 = vpack.c.b16 %v3139, %v3138
        %v3150 = vpack.c.b16 %v3141, %v3140
        %v3151 = vpack.c.b16 %v3143, %v3142
        %3160 = vmatprep.subr.bf16.mxu0 0
        %3161 = vmatpush1.bf16.msra.mxu0 %v3144
        %3162 = vmatprep.subr.bf16.mxu0 0
        %3163 = vmatpush1.bf16.msra.mxu0 %v3145
        %3164 = vmatprep.subr.bf16.mxu0 0
        %3165 = vmatpush1.bf16.msra.mxu0 %v3146
        %3166 = vmatprep.subr.bf16.mxu0 0
        %3167 = vmatpush1.bf16.msra.mxu0 %v3147
        %3168 = vmatprep.subr.bf16.mxu0 0
        %3169 = vmatpush1.bf16.msra.mxu0 %v3148
        %3170 = vmatprep.subr.bf16.mxu0 0
        %3171 = vmatpush1.bf16.msra.mxu0 %v3149
        %3172 = vmatprep.subr.bf16.mxu0 0
        %3173 = vmatpush1.bf16.msra.mxu0 %v3150
        %3174 = vmatprep.subr.bf16.mxu0 0
        %3175 = vmatpush1.bf16.msra.mxu0 %v3151
        %3176 = vmatprep.subr.bf16.mxu0 0
        %3177 = vmatpush1.bf16.msra.mxu0 0
        %3178 = vmatprep.subr.bf16.mxu0 0
        %3179 = vmatpush1.bf16.msra.mxu0 0
        %3180 = vmatprep.subr.bf16.mxu0 0
        %3181 = vmatpush1.bf16.msra.mxu0 0
        %3182 = vmatprep.subr.bf16.mxu0 0
        %3183 = vmatpush1.bf16.msra.mxu0 0
        %3184 = vmatprep.subr.bf16.mxu0 0
        %3185 = vmatpush1.bf16.msra.mxu0 0
        %3186 = vmatprep.subr.bf16.mxu0 0
        %3187 = vmatpush1.bf16.msra.mxu0 0
        %3188 = vmatprep.subr.bf16.mxu0 0
        %3189 = vmatpush1.bf16.msra.mxu0 0
        %3190 = vmatprep.subr.bf16.mxu0 0
        %3191 = vmatpush1.bf16.msra.mxu0 0
        %3192 = vmatprep.mubr.bf16.mxu0 0
        %3193 = vmatmul.mubr.bf16.gmra.mrb[0].mxu0 %v2805
        %v3194 = vpop.f32.mrb[0].mxu0
        %v3195 = vadd.f32 0.0, %v3194
        %v3196 = vpop.f32.mrb[0].mxu0
        %v3197 = vpop.f32.mrb[0].mxu0
        %v3198 = vadd.f32 0.0, %v3197
        %v3199 = vpop.f32.mrb[0].mxu0
        %3200 = vmatprep.mubr.bf16.mxu0 0
        %3201 = vmatmul.mubr.bf16.gmra.mrb[0].mxu0 %v2806
        %v3202 = vpop.f32.mrb[0].mxu0
        %v3203 = vadd.f32 0.0, %v3202
        %v3204 = vpop.f32.mrb[0].mxu0
        %v3205 = vpop.f32.mrb[0].mxu0
        %v3206 = vadd.f32 0.0, %v3205
        %v3207 = vpop.f32.mrb[0].mxu0
        %3208 = vmatprep.mubr.bf16.mxu0 0
        %3209 = vmatmul.mubr.bf16.gmra.mrb[0].mxu0 %v2807
        %v3210 = vpop.f32.mrb[0].mxu0
        %v3211 = vadd.f32 0.0, %v3210
        %v3212 = vpop.f32.mrb[0].mxu0
        %v3213 = vpop.f32.mrb[0].mxu0
        %v3214 = vadd.f32 0.0, %v3213
        %v3215 = vpop.f32.mrb[0].mxu0
        %3216 = vmatprep.mubr.bf16.mxu0 0
        %3217 = vmatmul.mubr.bf16.gmra.mrb[0].mxu0 %v3110
        %v3218 = vpop.f32.mrb[0].mxu0
        %v3219 = vadd.f32 0.0, %v3218
        %v3220 = vpop.f32.mrb[0].mxu0
        %v3221 = vpop.f32.mrb[0].mxu0
        %v3222 = vadd.f32 0.0, %v3221
        %v3223 = vpop.f32.mrb[0].mxu0
        %3224 = vdwg.mxu0
        %v3225 = vadd.f32 %v3078, %v3195
        %v3226 = vadd.f32 %v3079, %v3198
        %v3227 = vadd.f32 %v3080, %v3203
        %v3228 = vadd.f32 %v3081, %v3206
        %v3229 = vadd.f32 %v3082, %v3211
        %v3230 = vadd.f32 %v3083, %v3214
        %v3231 = vadd.f32 %v3084, %v3219
        %v3232 = vadd.f32 %v3085, %v3222
        %v3233 = vld [vmem:[%s5] sm:$0x1]
        %v3235 = vlaneseq
        %v3236 = vshrl.u32 %v3235, 7
        %v3237 = vsub.s32 0, %v3236
        %v3238 = vrot.slane %v3233, %v3237
        %v3240 = vadd.f32 %v3225, %v3238
        %v3241 = vadd.f32 %v3226, %v3238
        %v3242 = vadd.f32 %v3227, %v3238
        %v3243 = vadd.f32 %v3228, %v3238
        %v3244 = vadd.f32 %v3229, %v3238
        %v3245 = vadd.f32 %v3230, %v3238
        %v3246 = vadd.f32 %v3231, %v3238
        %v3247 = vadd.f32 %v3232, %v3238
        %v3248 = vmax.f32 %v3240, 0.0
        %v3249 = vmax.f32 %v3241, 0.0
        %v3250 = vmax.f32 %v3242, 0.0
        %v3251 = vmax.f32 %v3243, 0.0
        %v3252 = vmax.f32 %v3244, 0.0
        %v3253 = vmax.f32 %v3245, 0.0
        %v3254 = vmax.f32 %v3246, 0.0
        %v3255 = vmax.f32 %v3247, 0.0
        %v3256 = vpack.c.bf16 %v3248, %v3248
        %v3257 = vpack.c.bf16 %v3249, %v3249
        %v3258 = vpack.c.bf16 %v3250, %v3250
        %v3259 = vpack.c.bf16 %v3251, %v3251
        %v3260 = vpack.c.bf16 %v3252, %v3252
        %v3261 = vpack.c.bf16 %v3253, %v3253
        %v3262 = vpack.c.bf16 %v3254, %v3254
        %v3263 = vpack.c.bf16 %v3255, %v3255
        %3264 = vst [vmem:[%s274] sm:$0xf] %v3256
        %3265 = vst [vmem:[%s274 + $0x4] sm:$0xf] %v3257
        %3266 = vst [vmem:[%s274 + $0x8] sm:$0xf] %v3258
        %3267 = vst [vmem:[%s274 + $0xc] sm:$0xf] %v3259
        %3268 = vst [vmem:[%s274 + $0x10] sm:$0xf] %v3260
        %3269 = vst [vmem:[%s274 + $0x14] sm:$0xf] %v3261
        %3270 = vst [vmem:[%s274 + $0x18] sm:$0xf] %v3262
        %3271 = vst [vmem:[%s274 + $0x1c] sm:$0xf] %v3263
        %s3272 = sand.u32 %s161, 1
        %s3273 = scalar_lea.sflag [#allocation5], %s3272
        %s3274 = sand.u32 %s161, 1
        %s3275 = smul.addr %s3274, 32
        %s3276 = scalar_lea.vmem [#allocation8], %s3275
        // Predicated region
        $region53: #{tpu_custom_call.1} parent=43 // pred_check
          %p3277 = pneg %p171
        $region54: #{tpu_custom_call.1} parent=43 // pred_check_branch
          %3279 = sbr.rel (%p3277) target = $region56
        $region55: #{tpu_custom_call.1} parent=43 // pred_region
          %s3281 = ssub.s32 512, 512
          %3282 = vsyncadd %s3273, %s3281
          %s3283 = smul.addr %s22, 8
          %s3284 = smul.addr %s3283, 64
          %s3285 = scalar_lea.hbm %s6, %s3284
          %s3286 = sshll.u32 %s3276, 4
          %s3287 = int_to_ptr.vmem [resolvable:$true] %s3286
          %3292 = dma.vmem_to_hbm [thread:$0]  %s3287, 512, %s3285, %s3273, 64, 64, 4
        $region56: #{tpu_custom_call.1} parent=43 // pred_fallthru
          _
      $region44: #{tpu_custom_call.1} parent=5 // pred_fallthru
        _
      %p3293 = scmp.le.s32.totalorder 2, %s17
      // Predicated region
      $region57: #{tpu_custom_call.1} parent=5 // pred_check
        %p3294 = pneg %p3293
      $region58: #{tpu_custom_call.1} parent=5 // pred_check_branch
        %3296 = sbr.rel (%p3294) target = $region60
      $region59: #{tpu_custom_call.1} parent=5 // pred_region
        %s3297 = ssub.s32 %s17, 2
        // Predicated region
        $region61: #{tpu_custom_call.1} parent=59 // pred_check
          %p3298 = pneg %p177
        $region62: #{tpu_custom_call.1} parent=59 // pred_check_branch
          %3300 = sbr.rel (%p3298) target = $region64
        $region63: #{tpu_custom_call.1} parent=59 // pred_region
          %s3301 = sand.u32 %s162, 1
          %s3302 = scalar_lea.sflag [#allocation5], %s3301
          %s3303 = sand.u32 %s162, 1
          %s3304 = smul.addr %s3303, 32
          %s3305 = scalar_lea.vmem [#allocation8], %s3304
          %3306 = dma.done %s3302, 512
        $region64: #{tpu_custom_call.1} parent=59 // pred_fallthru
          _
      $region60: #{tpu_custom_call.1} parent=5 // pred_fallthru
        _
    $region6: #{tpu_custom_call.1} parent=1 // loop_footer
      %s21 = sadd.s32 1, %s17
    $region7: #{tpu_custom_call.1} parent=1 // loop_footer_branch
      %16 = sbr.rel target = $region3
    $region8: #{tpu_custom_call.1} parent=1 // loop_exit
      _
    %3307 = vsyncpa [#allocation4], 1
    %s3308 = scalar_lea.sflag [#allocation4], 1
    %3309 = vsyncpa %s3308, 1
    %3310 = vsyncpa [#allocation7], 1
    %3311 = vsyncpa [#allocation5], 1
    %s3312 = scalar_lea.sflag [#allocation5], 1
    %3313 = vsyncpa %s3312, 1

</llo_original>
